<compile_context>
chip_gen: v7x
topology: tpu7x:2x2x1
jax: 0.10.0
libtpu: 0.0.40
codegen_flags: <defaults>
</compile_context>

<pallas_src>
import functools

import jax
import jax.numpy as jnp
from jax import lax
from jax.experimental import pallas as pl
from jax.experimental.pallas import tpu as pltpu


# ----------------------------- kernel helpers ------------------------------
def _layernorm_ch(x, g, b, eps=1e-5):
    """LayerNorm over the channel axis (axis 0) of a (C, HW) tile."""
    mu = jnp.mean(x, axis=0, keepdims=True)
    d = x - mu
    var = jnp.mean(d * d, axis=0, keepdims=True)
    return d * lax.rsqrt(var + eps) * g + b


def _dwconv3x3(x, taps, spmask, W):
    """3x3 depthwise conv, padding=1, on a stacked (Ct, H*W) tile.

    taps:   (Ct, 9)  per-channel tap weights, tap t = (dh+1)*3 + (dw+1)
    spmask: (9, HW)  spatial validity masks (zero padding), host precomputed.
    Spatial shifts are lane rolls (spatial lives on lanes).  The center tap
    (dh=dw=0) initializes the accumulator and needs no mask (all ones).
    """
    HW = x.shape[1]
    acc = taps[:, 4:5] * x
    for dh in (-1, 0, 1):
        for dw in (-1, 0, 1):
            if dh == 0 and dw == 0:
                continue
            t = (dh + 1) * 3 + (dw + 1)
            s = dh * W + dw
            rolled = pltpu.roll(x, shift=(-s) % HW, axis=1)
            acc = acc + taps[:, t:t + 1] * (spmask[t:t + 1] * rolled)
    return acc


# --------------------------------- kernel ----------------------------------
def _tblock_kernel(x_ref, ln_ref, spm_ref, hmask_ref, wqkv_ref, qkvtaps_ref,
                   temp_ref, wo_ref, win_ref, gtaps_ref, wout_ref, o_ref,
                   *, W, SC, HPAD):
    x = x_ref[0]                           # (C, HW)
    ln = ln_ref[...]                       # (C, 4): [ln1_g, ln1_b, ln2_g, ln2_b]
    spm = spm_ref[...]                     # (9, HW)

    # ---- norm1 (LayerNorm over channels, per pixel) ----
    xn1 = _layernorm_ch(x, ln[:, 0:1], ln[:, 1:2])

    # ---- fused q/k/v for all streams: one 1x1 matmul + one stacked dwconv ----
    qkv = jnp.dot(wqkv_ref[...], xn1, preferred_element_type=jnp.float32)     # (3*SC, HW)
    qkv = _dwconv3x3(qkv, qkvtaps_ref[...], spm, W)
    q = qkv[0:SC]
    k = qkv[SC:2 * SC]
    v = qkv[2 * SC:3 * SC]

    # ---- L2 normalize over spatial (lanes); fold per-head temperature into q ----
    qs = lax.rsqrt(jnp.maximum(jnp.sum(q * q, axis=1, keepdims=True), 1e-24)) * temp_ref[...]
    ks = lax.rsqrt(jnp.maximum(jnp.sum(k * k, axis=1, keepdims=True), 1e-24))
    qn = q * qs
    kn = k * ks

    # ---- block-diagonal channel attention: (SC, SC) gram + head mask + softmax ----
    logits = lax.dot_general(qn, kn, (((1,), (1,)), ((), ())),
                             preferred_element_type=jnp.float32)              # (SC, SC)
    logits = jnp.where(hmask_ref[...] > 0.5, logits, jnp.float32(-1e30))
    m = jnp.max(logits, axis=-1, keepdims=True)
    e = jnp.exp(logits - m)
    attn = e / jnp.sum(e, axis=-1, keepdims=True)

    # ---- reassociated output projection: (Wo @ attn) @ V ----
    # wo_ref already carries softmax(stream_w)[s] * res_scale per stream block.
    wo_attn = jnp.dot(wo_ref[...], attn, preferred_element_type=jnp.float32)  # (C, SC)
    x2 = x + jnp.dot(wo_attn, v, preferred_element_type=jnp.float32)          # (C, HW)

    # ---- norm2 + GDFN (both project_in halves fused, stacked dwconv) ----
    xn2 = _layernorm_ch(x2, ln[:, 2:3], ln[:, 3:4])
    y = jnp.dot(win_ref[...], xn2, preferred_element_type=jnp.float32)        # (2*HPAD, HW)
    y = _dwconv3x3(y, gtaps_ref[...], spm, W)
    b1 = y[0:HPAD]
    b2 = y[HPAD:2 * HPAD]
    gated = b1 * jnp.clip(b1 + 3.0, 0.0, 6.0) * (1.0 / 6.0) * b2              # h_swish(b1)*b2
    ffn = jnp.dot(wout_ref[...], gated, preferred_element_type=jnp.float32)   # res_scale folded

    o_ref[0] = (x2 + ffn).astype(o_ref.dtype)


# -------------------------------- wrapper -----------------------------------
def transformer_block_pallas(x, p, *, num_heads, streams, res_scale=0.1):
    B, C, H, W = x.shape
    HW = H * W
    S = streams
    SC = S * C
    hd = C // num_heads
    hidden = p["gdfn_out"].shape[1]
    hidden_p = ((hidden + 7) // 8) * 8        # sublane-align the GDFN split point

    # ---- host-side parameter packing / structural constants (glue) ----
    sw = jax.nn.softmax(p["stream_w"]).astype(jnp.float32)

    # fused q/k/v 1x1 weights, row order [q(all streams), k(...), v(...)]
    wqkv = p["qkv_w"].reshape(S, 3, C, C).transpose(1, 0, 2, 3).reshape(3 * SC, C)
    # matching depthwise taps, lane-dense: (3*SC, 9)
    qkv_taps = p["qkv_dw"].reshape(S, 3, C, 9).transpose(1, 0, 2, 3).reshape(3 * SC, 9)
    # per-row (per stream/head) temperature for q rows
    temp_col = jnp.repeat(p["temp"], hd, axis=1).reshape(SC, 1)
    # project_out with softmax(stream_w)[s] * res_scale folded in: (C, SC)
    wo_packed = jnp.concatenate(
        [sw[s] * res_scale * p["proj_w"][s] for s in range(S)], axis=1)

    # GDFN project_in / taps / project_out, hidden padded to a multiple of 8
    win = p["gdfn_in"].reshape(2, hidden, C)
    win_p = jnp.zeros((2, hidden_p, C), jnp.float32).at[:, :hidden].set(win)
    win_p = win_p.reshape(2 * hidden_p, C)
    gdw = p["gdfn_dw"].reshape(2, hidden, 9)
    gdw_p = jnp.zeros((2, hidden_p, 9), jnp.float32).at[:, :hidden].set(gdw)
    gdw_p = gdw_p.reshape(2 * hidden_p, 9)
    wout_p = jnp.zeros((C, hidden_p), jnp.float32).at[:, :hidden].set(p["gdfn_out"])
    wout_p = wout_p * res_scale

    # LayerNorm params packed lane-dense into one (C, 4) tile
    ln_pack = jnp.stack([p["ln1_g"], p["ln1_b"], p["ln2_g"], p["ln2_b"]], axis=1)

    # spatial zero-padding masks for the 3x3 depthwise convs: (9, HW)
    ii, jj = jnp.meshgrid(jnp.arange(H), jnp.arange(W), indexing="ij")
    ii = ii.reshape(HW)
    jj = jj.reshape(HW)
    masks = []
    for dh in (-1, 0, 1):
        for dw in (-1, 0, 1):
            m = ((ii + dh >= 0) & (ii + dh < H) & (jj + dw >= 0) & (jj + dw < W))
            masks.append(m.astype(jnp.float32))
    spmask = jnp.stack(masks, 0)                                  # (9, HW)

    # same-(stream, head) block mask on the combined channel axis
    ids = jnp.arange(SC) // hd
    hmask = (ids[:, None] == ids[None, :]).astype(jnp.float32)    # (SC, SC)

    x_flat = x.reshape(B, C, HW)

    kernel = functools.partial(_tblock_kernel, W=W, SC=SC, HPAD=hidden_p)

    def const(shape):
        nd = len(shape)
        return pl.BlockSpec(shape, lambda b, nd=nd: (0,) * nd)

    out = pl.pallas_call(
        kernel,
        out_shape=jax.ShapeDtypeStruct((B, C, HW), jnp.float32),
        grid=(B,),
        in_specs=[
            pl.BlockSpec((1, C, HW), lambda b: (b, 0, 0)),   # x
            const((C, 4)),                                   # packed LN gamma/beta
            const((9, HW)),                                  # spatial masks
            const((SC, SC)),                                 # head mask
            const((3 * SC, C)),                              # fused qkv 1x1 weights
            const((3 * SC, 9)),                              # fused qkv depthwise taps
            const((SC, 1)),                                  # per-head temperatures
            const((C, SC)),                                  # scaled project_out
            const((2 * hidden_p, C)),                        # fused GDFN project_in
            const((2 * hidden_p, 9)),                        # GDFN depthwise taps
            const((C, hidden_p)),                            # scaled GDFN project_out
        ],
        out_specs=pl.BlockSpec((1, C, HW), lambda b: (b, 0, 0)),
        compiler_params=pltpu.CompilerParams(
            dimension_semantics=("parallel",)),   # lets v7x shard batch over 2 TCs
    )(x_flat, ln_pack, spmask, hmask, wqkv, qkv_taps, temp_col, wo_packed,
      win_p, gdw_p, wout_p)
    return out.reshape(B, C, H, W)


# ------------------------- pure-JAX reference (NCHW) -------------------------
def ref_forward(x, p, *, num_heads, streams, res_scale):
    B, C, H, W = x.shape
    HP = lax.Precision.HIGHEST

    def conv1x1(z, w):
        return jnp.einsum("oi,bihw->bohw", w, z, precision=HP)

    def dwconv3(z, w):
        zp = jnp.pad(z, ((0, 0), (0, 0), (1, 1), (1, 1)))
        out = jnp.zeros_like(z)
        for a in range(3):
            for b_ in range(3):
                out = out + w[None, :, 0, a, b_, None, None] * zp[:, :, a:a + H, b_:b_ + W]
        return out

    def layernorm(z, g, b):
        zt = jnp.transpose(z, (0, 2, 3, 1))
        mu = jnp.mean(zt, -1, keepdims=True)
        var = jnp.mean((zt - mu) ** 2, -1, keepdims=True)
        zt = (zt - mu) / jnp.sqrt(var + 1e-5) * g + b
        return jnp.transpose(zt, (0, 3, 1, 2))

    def mdta(z, wqkv, wdw, wo, temp):
        qkv = dwconv3(conv1x1(z, wqkv), wdw)
        q, k, v = jnp.split(qkv, 3, axis=1)
        hd = C // num_heads
        rs = lambda t: t.reshape(B, num_heads, hd, H * W)
        q, k, v = rs(q), rs(k), rs(v)
        l2n = lambda t: t / jnp.maximum(
            jnp.sqrt(jnp.sum(t * t, -1, keepdims=True)), 1e-12)
        q, k = l2n(q), l2n(k)
        attn = jnp.einsum("bhie,bhje->bhij", q, k, precision=HP) * temp[None, :, None, None]
        attn = jax.nn.softmax(attn, -1)
        out = jnp.einsum("bhij,bhje->bhie", attn, v, precision=HP).reshape(B, C, H, W)
        return conv1x1(out, wo)

    def gdfn(z, win, wdw, wout):
        y = dwconv3(conv1x1(z, win), wdw)
        x1, x2 = jnp.split(y, 2, axis=1)
        gated = x1 * jnp.clip(x1 + 3.0, 0.0, 6.0) / 6.0 * x2
        return conv1x1(gated, wout)

    xn1 = layernorm(x, p["ln1_g"], p["ln1_b"])
    outs = jnp.stack([mdta(xn1, p["qkv_w"][s], p["qkv_dw"][s], p["proj_w"][s],
                           p["temp"][s]) for s in range(streams)], 0)
    wts = jax.nn.softmax(p["stream_w"])
    attn_out = jnp.sum(wts[:, None, None, None, None] * outs, 0)
    x = x + attn_out * res_scale
    identity = x
    xn2 = layernorm(x, p["ln2_g"], p["ln2_b"])
    out = gdfn(xn2, p["gdfn_in"], p["gdfn_dw"], p["gdfn_out"])
    return identity + out * res_scale


# --------------------------- deterministic params ----------------------------
def init_params(key, C, heads, streams, expansion):
    hidden = int(C * expansion)
    ks = jax.random.split(key, 12)
    n = lambda k, shape, s=0.2: s * jax.random.normal(k, shape, jnp.float32)
    params = dict(
        ln1_g=1.0 + n(ks[0], (C,), 0.1), ln1_b=n(ks[1], (C,), 0.1),
        ln2_g=1.0 + n(ks[2], (C,), 0.1), ln2_b=n(ks[3], (C,), 0.1),
        qkv_w=n(ks[4], (streams, 3 * C, C)),          # per-stream 1x1 qkv conv
        qkv_dw=n(ks[5], (streams, 3 * C, 1, 3, 3)),   # per-stream depthwise 3x3
        proj_w=n(ks[6], (streams, C, C)),             # per-stream project_out
        temp=1.0 + n(ks[7], (streams, heads), 0.1),   # per-stream temperature
        stream_w=1.0 + n(ks[8], (streams,), 0.5),     # stream mixing logits
        gdfn_in=n(ks[9], (2 * hidden, C)),            # GDFN project_in
        gdfn_dw=n(ks[10], (2 * hidden, 1, 3, 3)),     # GDFN depthwise 3x3
        gdfn_out=n(ks[11], (C, hidden)),              # GDFN project_out
    )
    return params, hidden


if __name__ == "__main__":
    B, C, H, W = 2, 16, 16, 16
    heads, streams, expansion, res_scale = 4, 2, 2.66, 0.1

    key = jax.random.PRNGKey(0)
    kx, kp = jax.random.split(key)
    x = jax.random.normal(kx, (B, C, H, W), jnp.float32)
    params, hidden = init_params(kp, C, heads, streams, expansion)

    out = transformer_block_pallas(x, params, num_heads=heads, streams=streams,
                                   res_scale=res_scale)
    out = jax.block_until_ready(out)

    ref = ref_forward(x, params, num_heads=heads, streams=streams,
                      res_scale=res_scale)
    ref = jax.block_until_ready(ref)

    assert out.shape == x.shape
    max_err = float(jnp.max(jnp.abs(out - ref)))
    # kernel matmuls run at default (bf16-pass) MXU precision; ref is HIGHEST
    assert jnp.allclose(out, ref, atol=4e-3, rtol=4e-3), f"max abs err {max_err}"
    print("KERNEL_OK")
</pallas_src>

<mosaic_0001>
module attributes {stable_mosaic.version = 11 : i64} {
  func.func @_tblock_kernel(%arg0: i32, %arg1: memref<1x16x256xf32, #tpu.memory_space<vmem>>, %arg2: memref<16x4xf32, #tpu.memory_space<vmem>>, %arg3: memref<9x256xf32, #tpu.memory_space<vmem>>, %arg4: memref<32x32xf32, #tpu.memory_space<vmem>>, %arg5: memref<96x16xf32, #tpu.memory_space<vmem>>, %arg6: memref<96x9xf32, #tpu.memory_space<vmem>>, %arg7: memref<32x1xf32, #tpu.memory_space<vmem>>, %arg8: memref<16x32xf32, #tpu.memory_space<vmem>>, %arg9: memref<96x16xf32, #tpu.memory_space<vmem>>, %arg10: memref<96x9xf32, #tpu.memory_space<vmem>>, %arg11: memref<16x48xf32, #tpu.memory_space<vmem>>, %arg12: memref<1x16x256xf32, #tpu.memory_space<vmem>>) attributes {dimension_semantics = [#tpu.dimension_semantics<parallel>], iteration_bounds = array<i64: 2>, scalar_prefetch = 0 : i64, scratch_operands = 0 : i64, tpu.core_type = #tpu.core_type<tc>, window_params = [{transform_indices = @transform_0, window_bounds = array<i64: 1, 16, 256>}, {pipeline_mode = #tpu.pipeline_mode<synchronous>, transform_indices = @transform_1, window_bounds = array<i64: 16, 4>}, {pipeline_mode = #tpu.pipeline_mode<synchronous>, transform_indices = @transform_2, window_bounds = array<i64: 9, 256>}, {pipeline_mode = #tpu.pipeline_mode<synchronous>, transform_indices = @transform_3, window_bounds = array<i64: 32, 32>}, {pipeline_mode = #tpu.pipeline_mode<synchronous>, transform_indices = @transform_4, window_bounds = array<i64: 96, 16>}, {pipeline_mode = #tpu.pipeline_mode<synchronous>, transform_indices = @transform_5, window_bounds = array<i64: 96, 9>}, {pipeline_mode = #tpu.pipeline_mode<synchronous>, transform_indices = @transform_6, window_bounds = array<i64: 32, 1>}, {pipeline_mode = #tpu.pipeline_mode<synchronous>, transform_indices = @transform_7, window_bounds = array<i64: 16, 32>}, {pipeline_mode = #tpu.pipeline_mode<synchronous>, transform_indices = @transform_8, window_bounds = array<i64: 96, 16>}, {pipeline_mode = #tpu.pipeline_mode<synchronous>, transform_indices = @transform_9, window_bounds = array<i64: 96, 9>}, {pipeline_mode = #tpu.pipeline_mode<synchronous>, transform_indices = @transform_10, window_bounds = array<i64: 16, 48>}, {transform_indices = @transform_11, window_bounds = array<i64: 1, 16, 256>}]} {
    %c0 = arith.constant 0 : index
    %c0_0 = arith.constant 0 : index
    %c0_1 = arith.constant 0 : index
    %0 = vector.load %arg1[%c0, %c0_0, %c0_1] : memref<1x16x256xf32, #tpu.memory_space<vmem>>, vector<1x16x256xf32>
    %1 = vector.shape_cast %0 : vector<1x16x256xf32> to vector<16x256xf32>
    %c0_2 = arith.constant 0 : index
    %c0_3 = arith.constant 0 : index
    %2 = vector.load %arg2[%c0_2, %c0_3] : memref<16x4xf32, #tpu.memory_space<vmem>>, vector<16x4xf32>
    %c0_4 = arith.constant 0 : index
    %c0_5 = arith.constant 0 : index
    %3 = vector.load %arg3[%c0_4, %c0_5] : memref<9x256xf32, #tpu.memory_space<vmem>>, vector<9x256xf32>
    %4 = vector.extract_strided_slice %2 {offsets = [0, 0], sizes = [16, 1], strides = [1, 1]} : vector<16x4xf32> to vector<16x1xf32>
    %5 = vector.extract_strided_slice %2 {offsets = [0, 1], sizes = [16, 1], strides = [1, 1]} : vector<16x4xf32> to vector<16x1xf32>
    %cst = arith.constant dense<0.000000e+00> : vector<256xf32>
    %6 = vector.multi_reduction <add>, %1, %cst [0] : vector<16x256xf32> to vector<256xf32>
    %7 = vector.shape_cast %6 : vector<256xf32> to vector<1x256xf32>
    %cst_6 = arith.constant 1.600000e+01 : f32
    %8 = vector.broadcast %cst_6 : f32 to vector<1x256xf32>
    %9 = arith.divf %7, %8 : vector<1x256xf32>
    %10 = vector.broadcast %9 : vector<1x256xf32> to vector<16x256xf32>
    %11 = arith.subf %1, %10 : vector<16x256xf32>
    %12 = arith.mulf %11, %11 : vector<16x256xf32>
    %cst_7 = arith.constant dense<0.000000e+00> : vector<256xf32>
    %13 = vector.multi_reduction <add>, %12, %cst_7 [0] : vector<16x256xf32> to vector<256xf32>
    %14 = vector.shape_cast %13 : vector<256xf32> to vector<1x256xf32>
    %cst_8 = arith.constant 1.600000e+01 : f32
    %15 = vector.broadcast %cst_8 : f32 to vector<1x256xf32>
    %16 = arith.divf %14, %15 : vector<1x256xf32>
    %cst_9 = arith.constant 9.99999974E-6 : f32
    %17 = vector.broadcast %cst_9 : f32 to vector<1x256xf32>
    %18 = arith.addf %16, %17 : vector<1x256xf32>
    %19 = math.rsqrt %18 : vector<1x256xf32>
    %20 = vector.broadcast %19 : vector<1x256xf32> to vector<16x256xf32>
    %21 = arith.mulf %11, %20 : vector<16x256xf32>
    %22 = vector.broadcast %4 : vector<16x1xf32> to vector<16x256xf32>
    %23 = arith.mulf %21, %22 : vector<16x256xf32>
    %24 = vector.broadcast %5 : vector<16x1xf32> to vector<16x256xf32>
    %25 = arith.addf %23, %24 : vector<16x256xf32>
    %c0_10 = arith.constant 0 : index
    %c0_11 = arith.constant 0 : index
    %26 = vector.load %arg5[%c0_10, %c0_11] : memref<96x16xf32, #tpu.memory_space<vmem>>, vector<96x16xf32>
    %cst_12 = arith.constant dense<0.000000e+00> : vector<96x256xf32>
    %27 = tpu.matmul %26, %25, %cst_12 {dimension_numbers = #tpu.dot_dimension_numbers<[1], [0], [0], [1], [0, 0, 1, 1], [], []>} : vector<96x16xf32>, vector<16x256xf32>, vector<96x256xf32> -> vector<96x256xf32>
    %c0_13 = arith.constant 0 : index
    %c0_14 = arith.constant 0 : index
    %28 = vector.load %arg6[%c0_13, %c0_14] : memref<96x9xf32, #tpu.memory_space<vmem>>, vector<96x9xf32>
    %29 = vector.extract_strided_slice %28 {offsets = [0, 4], sizes = [96, 1], strides = [1, 1]} : vector<96x9xf32> to vector<96x1xf32>
    %30 = vector.broadcast %29 : vector<96x1xf32> to vector<96x256xf32>
    %31 = arith.mulf %30, %27 : vector<96x256xf32>
    %c17_i32 = arith.constant 17 : i32
    %32 = tpu.dynamic_rotate %27 by %c17_i32 dim 1 : vector<96x256xf32>, i32 -> vector<96x256xf32>
    %33 = vector.extract_strided_slice %28 {offsets = [0, 0], sizes = [96, 1], strides = [1, 1]} : vector<96x9xf32> to vector<96x1xf32>
    %34 = vector.extract_strided_slice %3 {offsets = [0, 0], sizes = [1, 256], strides = [1, 1]} : vector<9x256xf32> to vector<1x256xf32>
    %35 = vector.broadcast %34 : vector<1x256xf32> to vector<96x256xf32>
    %36 = arith.mulf %35, %32 : vector<96x256xf32>
    %37 = vector.broadcast %33 : vector<96x1xf32> to vector<96x256xf32>
    %38 = arith.mulf %37, %36 : vector<96x256xf32>
    %39 = arith.addf %31, %38 : vector<96x256xf32>
    %c16_i32 = arith.constant 16 : i32
    %40 = tpu.dynamic_rotate %27 by %c16_i32 dim 1 : vector<96x256xf32>, i32 -> vector<96x256xf32>
    %41 = vector.extract_strided_slice %28 {offsets = [0, 1], sizes = [96, 1], strides = [1, 1]} : vector<96x9xf32> to vector<96x1xf32>
    %42 = vector.extract_strided_slice %3 {offsets = [1, 0], sizes = [1, 256], strides = [1, 1]} : vector<9x256xf32> to vector<1x256xf32>
    %43 = vector.broadcast %42 : vector<1x256xf32> to vector<96x256xf32>
    %44 = arith.mulf %43, %40 : vector<96x256xf32>
    %45 = vector.broadcast %41 : vector<96x1xf32> to vector<96x256xf32>
    %46 = arith.mulf %45, %44 : vector<96x256xf32>
    %47 = arith.addf %39, %46 : vector<96x256xf32>
    %c15_i32 = arith.constant 15 : i32
    %48 = tpu.dynamic_rotate %27 by %c15_i32 dim 1 : vector<96x256xf32>, i32 -> vector<96x256xf32>
    %49 = vector.extract_strided_slice %28 {offsets = [0, 2], sizes = [96, 1], strides = [1, 1]} : vector<96x9xf32> to vector<96x1xf32>
    %50 = vector.extract_strided_slice %3 {offsets = [2, 0], sizes = [1, 256], strides = [1, 1]} : vector<9x256xf32> to vector<1x256xf32>
    %51 = vector.broadcast %50 : vector<1x256xf32> to vector<96x256xf32>
    %52 = arith.mulf %51, %48 : vector<96x256xf32>
    %53 = vector.broadcast %49 : vector<96x1xf32> to vector<96x256xf32>
    %54 = arith.mulf %53, %52 : vector<96x256xf32>
    %55 = arith.addf %47, %54 : vector<96x256xf32>
    %c1_i32 = arith.constant 1 : i32
    %56 = tpu.dynamic_rotate %27 by %c1_i32 dim 1 : vector<96x256xf32>, i32 -> vector<96x256xf32>
    %57 = vector.extract_strided_slice %28 {offsets = [0, 3], sizes = [96, 1], strides = [1, 1]} : vector<96x9xf32> to vector<96x1xf32>
    %58 = vector.extract_strided_slice %3 {offsets = [3, 0], sizes = [1, 256], strides = [1, 1]} : vector<9x256xf32> to vector<1x256xf32>
    %59 = vector.broadcast %58 : vector<1x256xf32> to vector<96x256xf32>
    %60 = arith.mulf %59, %56 : vector<96x256xf32>
    %61 = vector.broadcast %57 : vector<96x1xf32> to vector<96x256xf32>
    %62 = arith.mulf %61, %60 : vector<96x256xf32>
    %63 = arith.addf %55, %62 : vector<96x256xf32>
    %c255_i32 = arith.constant 255 : i32
    %64 = tpu.dynamic_rotate %27 by %c255_i32 dim 1 : vector<96x256xf32>, i32 -> vector<96x256xf32>
    %65 = vector.extract_strided_slice %28 {offsets = [0, 5], sizes = [96, 1], strides = [1, 1]} : vector<96x9xf32> to vector<96x1xf32>
    %66 = vector.extract_strided_slice %3 {offsets = [5, 0], sizes = [1, 256], strides = [1, 1]} : vector<9x256xf32> to vector<1x256xf32>
    %67 = vector.broadcast %66 : vector<1x256xf32> to vector<96x256xf32>
    %68 = arith.mulf %67, %64 : vector<96x256xf32>
    %69 = vector.broadcast %65 : vector<96x1xf32> to vector<96x256xf32>
    %70 = arith.mulf %69, %68 : vector<96x256xf32>
    %71 = arith.addf %63, %70 : vector<96x256xf32>
    %c241_i32 = arith.constant 241 : i32
    %72 = tpu.dynamic_rotate %27 by %c241_i32 dim 1 : vector<96x256xf32>, i32 -> vector<96x256xf32>
    %73 = vector.extract_strided_slice %28 {offsets = [0, 6], sizes = [96, 1], strides = [1, 1]} : vector<96x9xf32> to vector<96x1xf32>
    %74 = vector.extract_strided_slice %3 {offsets = [6, 0], sizes = [1, 256], strides = [1, 1]} : vector<9x256xf32> to vector<1x256xf32>
    %75 = vector.broadcast %74 : vector<1x256xf32> to vector<96x256xf32>
    %76 = arith.mulf %75, %72 : vector<96x256xf32>
    %77 = vector.broadcast %73 : vector<96x1xf32> to vector<96x256xf32>
    %78 = arith.mulf %77, %76 : vector<96x256xf32>
    %79 = arith.addf %71, %78 : vector<96x256xf32>
    %c240_i32 = arith.constant 240 : i32
    %80 = tpu.dynamic_rotate %27 by %c240_i32 dim 1 : vector<96x256xf32>, i32 -> vector<96x256xf32>
    %81 = vector.extract_strided_slice %28 {offsets = [0, 7], sizes = [96, 1], strides = [1, 1]} : vector<96x9xf32> to vector<96x1xf32>
    %82 = vector.extract_strided_slice %3 {offsets = [7, 0], sizes = [1, 256], strides = [1, 1]} : vector<9x256xf32> to vector<1x256xf32>
    %83 = vector.broadcast %82 : vector<1x256xf32> to vector<96x256xf32>
    %84 = arith.mulf %83, %80 : vector<96x256xf32>
    %85 = vector.broadcast %81 : vector<96x1xf32> to vector<96x256xf32>
    %86 = arith.mulf %85, %84 : vector<96x256xf32>
    %87 = arith.addf %79, %86 : vector<96x256xf32>
    %c239_i32 = arith.constant 239 : i32
    %88 = tpu.dynamic_rotate %27 by %c239_i32 dim 1 : vector<96x256xf32>, i32 -> vector<96x256xf32>
    %89 = vector.extract_strided_slice %28 {offsets = [0, 8], sizes = [96, 1], strides = [1, 1]} : vector<96x9xf32> to vector<96x1xf32>
    %90 = vector.extract_strided_slice %3 {offsets = [8, 0], sizes = [1, 256], strides = [1, 1]} : vector<9x256xf32> to vector<1x256xf32>
    %91 = vector.broadcast %90 : vector<1x256xf32> to vector<96x256xf32>
    %92 = arith.mulf %91, %88 : vector<96x256xf32>
    %93 = vector.broadcast %89 : vector<96x1xf32> to vector<96x256xf32>
    %94 = arith.mulf %93, %92 : vector<96x256xf32>
    %95 = arith.addf %87, %94 : vector<96x256xf32>
    %96 = vector.extract_strided_slice %95 {offsets = [0, 0], sizes = [32, 256], strides = [1, 1]} : vector<96x256xf32> to vector<32x256xf32>
    %97 = vector.extract_strided_slice %95 {offsets = [32, 0], sizes = [32, 256], strides = [1, 1]} : vector<96x256xf32> to vector<32x256xf32>
    %98 = vector.extract_strided_slice %95 {offsets = [64, 0], sizes = [32, 256], strides = [1, 1]} : vector<96x256xf32> to vector<32x256xf32>
    %99 = arith.mulf %96, %96 : vector<32x256xf32>
    %cst_15 = arith.constant dense<0.000000e+00> : vector<32xf32>
    %100 = vector.multi_reduction <add>, %99, %cst_15 [1] : vector<32x256xf32> to vector<32xf32>
    %101 = vector.shape_cast %100 : vector<32xf32> to vector<32x1xf32>
    %cst_16 = arith.constant 1.000000e-24 : f32
    %102 = vector.broadcast %cst_16 : f32 to vector<32x1xf32>
    %103 = arith.maximumf %101, %102 : vector<32x1xf32>
    %104 = math.rsqrt %103 : vector<32x1xf32>
    %c0_17 = arith.constant 0 : index
    %c0_18 = arith.constant 0 : index
    %105 = vector.load %arg7[%c0_17, %c0_18] : memref<32x1xf32, #tpu.memory_space<vmem>>, vector<32x1xf32>
    %106 = arith.mulf %104, %105 : vector<32x1xf32>
    %107 = arith.mulf %97, %97 : vector<32x256xf32>
    %cst_19 = arith.constant dense<0.000000e+00> : vector<32xf32>
    %108 = vector.multi_reduction <add>, %107, %cst_19 [1] : vector<32x256xf32> to vector<32xf32>
    %109 = vector.shape_cast %108 : vector<32xf32> to vector<32x1xf32>
    %cst_20 = arith.constant 1.000000e-24 : f32
    %110 = vector.broadcast %cst_20 : f32 to vector<32x1xf32>
    %111 = arith.maximumf %109, %110 : vector<32x1xf32>
    %112 = math.rsqrt %111 : vector<32x1xf32>
    %113 = vector.broadcast %106 : vector<32x1xf32> to vector<32x256xf32>
    %114 = arith.mulf %96, %113 : vector<32x256xf32>
    %115 = vector.broadcast %112 : vector<32x1xf32> to vector<32x256xf32>
    %116 = arith.mulf %97, %115 : vector<32x256xf32>
    %cst_21 = arith.constant dense<0.000000e+00> : vector<32x32xf32>
    %117 = tpu.matmul %114, %116, %cst_21 {dimension_numbers = #tpu.dot_dimension_numbers<[1], [1], [0], [0], [0, 0, 1, 0], [], []>} : vector<32x256xf32>, vector<32x256xf32>, vector<32x32xf32> -> vector<32x32xf32>
    %c0_22 = arith.constant 0 : index
    %c0_23 = arith.constant 0 : index
    %118 = vector.load %arg4[%c0_22, %c0_23] : memref<32x32xf32, #tpu.memory_space<vmem>>, vector<32x32xf32>
    %cst_24 = arith.constant 5.000000e-01 : f32
    %119 = vector.broadcast %cst_24 : f32 to vector<32x32xf32>
    %120 = arith.cmpf ogt, %118, %119 : vector<32x32xf32>
    %cst_25 = arith.constant -1.000000e+30 : f32
    %121 = vector.broadcast %cst_25 : f32 to vector<32x32xf32>
    %122 = arith.select %120, %117, %121 : vector<32x32xi1>, vector<32x32xf32>
    %cst_26 = arith.constant dense<0xFF800000> : vector<32xf32>
    %123 = vector.multi_reduction <maximumf>, %122, %cst_26 [1] : vector<32x32xf32> to vector<32xf32>
    %124 = vector.shape_cast %123 : vector<32xf32> to vector<32x1xf32>
    %125 = vector.broadcast %124 : vector<32x1xf32> to vector<32x32xf32>
    %126 = arith.subf %122, %125 : vector<32x32xf32>
    %127 = math.exp %126 : vector<32x32xf32>
    %cst_27 = arith.constant dense<0.000000e+00> : vector<32xf32>
    %128 = vector.multi_reduction <add>, %127, %cst_27 [1] : vector<32x32xf32> to vector<32xf32>
    %129 = vector.shape_cast %128 : vector<32xf32> to vector<32x1xf32>
    %130 = vector.broadcast %129 : vector<32x1xf32> to vector<32x32xf32>
    %131 = arith.divf %127, %130 : vector<32x32xf32>
    %c0_28 = arith.constant 0 : index
    %c0_29 = arith.constant 0 : index
    %132 = vector.load %arg8[%c0_28, %c0_29] : memref<16x32xf32, #tpu.memory_space<vmem>>, vector<16x32xf32>
    %cst_30 = arith.constant dense<0.000000e+00> : vector<16x32xf32>
    %133 = tpu.matmul %132, %131, %cst_30 {dimension_numbers = #tpu.dot_dimension_numbers<[1], [0], [0], [1], [0, 0, 1, 1], [], []>} : vector<16x32xf32>, vector<32x32xf32>, vector<16x32xf32> -> vector<16x32xf32>
    %cst_31 = arith.constant dense<0.000000e+00> : vector<16x256xf32>
    %134 = tpu.matmul %133, %98, %cst_31 {dimension_numbers = #tpu.dot_dimension_numbers<[1], [0], [0], [1], [0, 0, 1, 1], [], []>} : vector<16x32xf32>, vector<32x256xf32>, vector<16x256xf32> -> vector<16x256xf32>
    %135 = arith.addf %1, %134 : vector<16x256xf32>
    %136 = vector.extract_strided_slice %2 {offsets = [0, 2], sizes = [16, 1], strides = [1, 1]} : vector<16x4xf32> to vector<16x1xf32>
    %137 = vector.extract_strided_slice %2 {offsets = [0, 3], sizes = [16, 1], strides = [1, 1]} : vector<16x4xf32> to vector<16x1xf32>
    %cst_32 = arith.constant dense<0.000000e+00> : vector<256xf32>
    %138 = vector.multi_reduction <add>, %135, %cst_32 [0] : vector<16x256xf32> to vector<256xf32>
    %139 = vector.shape_cast %138 : vector<256xf32> to vector<1x256xf32>
    %cst_33 = arith.constant 1.600000e+01 : f32
    %140 = vector.broadcast %cst_33 : f32 to vector<1x256xf32>
    %141 = arith.divf %139, %140 : vector<1x256xf32>
    %142 = vector.broadcast %141 : vector<1x256xf32> to vector<16x256xf32>
    %143 = arith.subf %135, %142 : vector<16x256xf32>
    %144 = arith.mulf %143, %143 : vector<16x256xf32>
    %cst_34 = arith.constant dense<0.000000e+00> : vector<256xf32>
    %145 = vector.multi_reduction <add>, %144, %cst_34 [0] : vector<16x256xf32> to vector<256xf32>
    %146 = vector.shape_cast %145 : vector<256xf32> to vector<1x256xf32>
    %cst_35 = arith.constant 1.600000e+01 : f32
    %147 = vector.broadcast %cst_35 : f32 to vector<1x256xf32>
    %148 = arith.divf %146, %147 : vector<1x256xf32>
    %cst_36 = arith.constant 9.99999974E-6 : f32
    %149 = vector.broadcast %cst_36 : f32 to vector<1x256xf32>
    %150 = arith.addf %148, %149 : vector<1x256xf32>
    %151 = math.rsqrt %150 : vector<1x256xf32>
    %152 = vector.broadcast %151 : vector<1x256xf32> to vector<16x256xf32>
    %153 = arith.mulf %143, %152 : vector<16x256xf32>
    %154 = vector.broadcast %136 : vector<16x1xf32> to vector<16x256xf32>
    %155 = arith.mulf %153, %154 : vector<16x256xf32>
    %156 = vector.broadcast %137 : vector<16x1xf32> to vector<16x256xf32>
    %157 = arith.addf %155, %156 : vector<16x256xf32>
    %c0_37 = arith.constant 0 : index
    %c0_38 = arith.constant 0 : index
    %158 = vector.load %arg9[%c0_37, %c0_38] : memref<96x16xf32, #tpu.memory_space<vmem>>, vector<96x16xf32>
    %cst_39 = arith.constant dense<0.000000e+00> : vector<96x256xf32>
    %159 = tpu.matmul %158, %157, %cst_39 {dimension_numbers = #tpu.dot_dimension_numbers<[1], [0], [0], [1], [0, 0, 1, 1], [], []>} : vector<96x16xf32>, vector<16x256xf32>, vector<96x256xf32> -> vector<96x256xf32>
    %c0_40 = arith.constant 0 : index
    %c0_41 = arith.constant 0 : index
    %160 = vector.load %arg10[%c0_40, %c0_41] : memref<96x9xf32, #tpu.memory_space<vmem>>, vector<96x9xf32>
    %161 = vector.extract_strided_slice %160 {offsets = [0, 4], sizes = [96, 1], strides = [1, 1]} : vector<96x9xf32> to vector<96x1xf32>
    %162 = vector.broadcast %161 : vector<96x1xf32> to vector<96x256xf32>
    %163 = arith.mulf %162, %159 : vector<96x256xf32>
    %c17_i32_42 = arith.constant 17 : i32
    %164 = tpu.dynamic_rotate %159 by %c17_i32_42 dim 1 : vector<96x256xf32>, i32 -> vector<96x256xf32>
    %165 = vector.extract_strided_slice %160 {offsets = [0, 0], sizes = [96, 1], strides = [1, 1]} : vector<96x9xf32> to vector<96x1xf32>
    %166 = vector.extract_strided_slice %3 {offsets = [0, 0], sizes = [1, 256], strides = [1, 1]} : vector<9x256xf32> to vector<1x256xf32>
    %167 = vector.broadcast %166 : vector<1x256xf32> to vector<96x256xf32>
    %168 = arith.mulf %167, %164 : vector<96x256xf32>
    %169 = vector.broadcast %165 : vector<96x1xf32> to vector<96x256xf32>
    %170 = arith.mulf %169, %168 : vector<96x256xf32>
    %171 = arith.addf %163, %170 : vector<96x256xf32>
    %c16_i32_43 = arith.constant 16 : i32
    %172 = tpu.dynamic_rotate %159 by %c16_i32_43 dim 1 : vector<96x256xf32>, i32 -> vector<96x256xf32>
    %173 = vector.extract_strided_slice %160 {offsets = [0, 1], sizes = [96, 1], strides = [1, 1]} : vector<96x9xf32> to vector<96x1xf32>
    %174 = vector.extract_strided_slice %3 {offsets = [1, 0], sizes = [1, 256], strides = [1, 1]} : vector<9x256xf32> to vector<1x256xf32>
    %175 = vector.broadcast %174 : vector<1x256xf32> to vector<96x256xf32>
    %176 = arith.mulf %175, %172 : vector<96x256xf32>
    %177 = vector.broadcast %173 : vector<96x1xf32> to vector<96x256xf32>
    %178 = arith.mulf %177, %176 : vector<96x256xf32>
    %179 = arith.addf %171, %178 : vector<96x256xf32>
    %c15_i32_44 = arith.constant 15 : i32
    %180 = tpu.dynamic_rotate %159 by %c15_i32_44 dim 1 : vector<96x256xf32>, i32 -> vector<96x256xf32>
    %181 = vector.extract_strided_slice %160 {offsets = [0, 2], sizes = [96, 1], strides = [1, 1]} : vector<96x9xf32> to vector<96x1xf32>
    %182 = vector.extract_strided_slice %3 {offsets = [2, 0], sizes = [1, 256], strides = [1, 1]} : vector<9x256xf32> to vector<1x256xf32>
    %183 = vector.broadcast %182 : vector<1x256xf32> to vector<96x256xf32>
    %184 = arith.mulf %183, %180 : vector<96x256xf32>
    %185 = vector.broadcast %181 : vector<96x1xf32> to vector<96x256xf32>
    %186 = arith.mulf %185, %184 : vector<96x256xf32>
    %187 = arith.addf %179, %186 : vector<96x256xf32>
    %c1_i32_45 = arith.constant 1 : i32
    %188 = tpu.dynamic_rotate %159 by %c1_i32_45 dim 1 : vector<96x256xf32>, i32 -> vector<96x256xf32>
    %189 = vector.extract_strided_slice %160 {offsets = [0, 3], sizes = [96, 1], strides = [1, 1]} : vector<96x9xf32> to vector<96x1xf32>
    %190 = vector.extract_strided_slice %3 {offsets = [3, 0], sizes = [1, 256], strides = [1, 1]} : vector<9x256xf32> to vector<1x256xf32>
    %191 = vector.broadcast %190 : vector<1x256xf32> to vector<96x256xf32>
    %192 = arith.mulf %191, %188 : vector<96x256xf32>
    %193 = vector.broadcast %189 : vector<96x1xf32> to vector<96x256xf32>
    %194 = arith.mulf %193, %192 : vector<96x256xf32>
    %195 = arith.addf %187, %194 : vector<96x256xf32>
    %c255_i32_46 = arith.constant 255 : i32
    %196 = tpu.dynamic_rotate %159 by %c255_i32_46 dim 1 : vector<96x256xf32>, i32 -> vector<96x256xf32>
    %197 = vector.extract_strided_slice %160 {offsets = [0, 5], sizes = [96, 1], strides = [1, 1]} : vector<96x9xf32> to vector<96x1xf32>
    %198 = vector.extract_strided_slice %3 {offsets = [5, 0], sizes = [1, 256], strides = [1, 1]} : vector<9x256xf32> to vector<1x256xf32>
    %199 = vector.broadcast %198 : vector<1x256xf32> to vector<96x256xf32>
    %200 = arith.mulf %199, %196 : vector<96x256xf32>
    %201 = vector.broadcast %197 : vector<96x1xf32> to vector<96x256xf32>
    %202 = arith.mulf %201, %200 : vector<96x256xf32>
    %203 = arith.addf %195, %202 : vector<96x256xf32>
    %c241_i32_47 = arith.constant 241 : i32
    %204 = tpu.dynamic_rotate %159 by %c241_i32_47 dim 1 : vector<96x256xf32>, i32 -> vector<96x256xf32>
    %205 = vector.extract_strided_slice %160 {offsets = [0, 6], sizes = [96, 1], strides = [1, 1]} : vector<96x9xf32> to vector<96x1xf32>
    %206 = vector.extract_strided_slice %3 {offsets = [6, 0], sizes = [1, 256], strides = [1, 1]} : vector<9x256xf32> to vector<1x256xf32>
    %207 = vector.broadcast %206 : vector<1x256xf32> to vector<96x256xf32>
    %208 = arith.mulf %207, %204 : vector<96x256xf32>
    %209 = vector.broadcast %205 : vector<96x1xf32> to vector<96x256xf32>
    %210 = arith.mulf %209, %208 : vector<96x256xf32>
    %211 = arith.addf %203, %210 : vector<96x256xf32>
    %c240_i32_48 = arith.constant 240 : i32
    %212 = tpu.dynamic_rotate %159 by %c240_i32_48 dim 1 : vector<96x256xf32>, i32 -> vector<96x256xf32>
    %213 = vector.extract_strided_slice %160 {offsets = [0, 7], sizes = [96, 1], strides = [1, 1]} : vector<96x9xf32> to vector<96x1xf32>
    %214 = vector.extract_strided_slice %3 {offsets = [7, 0], sizes = [1, 256], strides = [1, 1]} : vector<9x256xf32> to vector<1x256xf32>
    %215 = vector.broadcast %214 : vector<1x256xf32> to vector<96x256xf32>
    %216 = arith.mulf %215, %212 : vector<96x256xf32>
    %217 = vector.broadcast %213 : vector<96x1xf32> to vector<96x256xf32>
    %218 = arith.mulf %217, %216 : vector<96x256xf32>
    %219 = arith.addf %211, %218 : vector<96x256xf32>
    %c239_i32_49 = arith.constant 239 : i32
    %220 = tpu.dynamic_rotate %159 by %c239_i32_49 dim 1 : vector<96x256xf32>, i32 -> vector<96x256xf32>
    %221 = vector.extract_strided_slice %160 {offsets = [0, 8], sizes = [96, 1], strides = [1, 1]} : vector<96x9xf32> to vector<96x1xf32>
    %222 = vector.extract_strided_slice %3 {offsets = [8, 0], sizes = [1, 256], strides = [1, 1]} : vector<9x256xf32> to vector<1x256xf32>
    %223 = vector.broadcast %222 : vector<1x256xf32> to vector<96x256xf32>
    %224 = arith.mulf %223, %220 : vector<96x256xf32>
    %225 = vector.broadcast %221 : vector<96x1xf32> to vector<96x256xf32>
    %226 = arith.mulf %225, %224 : vector<96x256xf32>
    %227 = arith.addf %219, %226 : vector<96x256xf32>
    %228 = vector.extract_strided_slice %227 {offsets = [0, 0], sizes = [48, 256], strides = [1, 1]} : vector<96x256xf32> to vector<48x256xf32>
    %229 = vector.extract_strided_slice %227 {offsets = [48, 0], sizes = [48, 256], strides = [1, 1]} : vector<96x256xf32> to vector<48x256xf32>
    %cst_50 = arith.constant 3.000000e+00 : f32
    %230 = vector.broadcast %cst_50 : f32 to vector<48x256xf32>
    %231 = arith.addf %228, %230 : vector<48x256xf32>
    %cst_51 = arith.constant 0.000000e+00 : f32
    %cst_52 = arith.constant 6.000000e+00 : f32
    %232 = vector.broadcast %cst_51 : f32 to vector<48x256xf32>
    %233 = arith.maximumf %232, %231 : vector<48x256xf32>
    %234 = vector.broadcast %cst_52 : f32 to vector<48x256xf32>
    %235 = arith.minimumf %234, %233 : vector<48x256xf32>
    %236 = arith.mulf %228, %235 : vector<48x256xf32>
    %cst_53 = arith.constant 0.166666672 : f32
    %237 = vector.broadcast %cst_53 : f32 to vector<48x256xf32>
    %238 = arith.mulf %236, %237 : vector<48x256xf32>
    %239 = arith.mulf %238, %229 : vector<48x256xf32>
    %c0_54 = arith.constant 0 : index
    %c0_55 = arith.constant 0 : index
    %240 = vector.load %arg11[%c0_54, %c0_55] : memref<16x48xf32, #tpu.memory_space<vmem>>, vector<16x48xf32>
    %cst_56 = arith.constant dense<0.000000e+00> : vector<16x256xf32>
    %241 = tpu.matmul %240, %239, %cst_56 {dimension_numbers = #tpu.dot_dimension_numbers<[1], [0], [0], [1], [0, 0, 1, 1], [], []>} : vector<16x48xf32>, vector<48x256xf32>, vector<16x256xf32> -> vector<16x256xf32>
    %242 = arith.addf %135, %241 : vector<16x256xf32>
    %c0_57 = arith.constant 0 : index
    %c0_58 = arith.constant 0 : index
    %c0_59 = arith.constant 0 : index
    %243 = vector.load %arg12[%c0_57, %c0_58, %c0_59] : memref<1x16x256xf32, #tpu.memory_space<vmem>>, vector<1x16x256xf32>
    %244 = vector.shape_cast %243 : vector<1x16x256xf32> to vector<16x256xf32>
    %245 = vector.shape_cast %242 : vector<16x256xf32> to vector<1x16x256xf32>
    tpu.vector_store %arg12[%c0_57, %c0_58, %c0_59], %245 {strides = array<i32>} : memref<1x16x256xf32, #tpu.memory_space<vmem>>, vector<1x16x256xf32>,
    return
  }
  func.func @transform_0(%arg0: i32) -> (i32, i32, i32) {
    %c0_i32 = arith.constant 0 : i32
    %c0_i32_0 = arith.constant 0 : i32
    %c0_i32_1 = arith.constant 0 : i32
    return %arg0, %c0_i32, %c0_i32_0 : i32, i32, i32
  }
  func.func @transform_1(%arg0: i32) -> (i32, i32) {
    %c0_i32 = arith.constant 0 : i32
    %c0_i32_0 = arith.constant 0 : i32
    %c0_i32_1 = arith.constant 0 : i32
    return %c0_i32, %c0_i32_0 : i32, i32
  }
  func.func @transform_2(%arg0: i32) -> (i32, i32) {
    %c0_i32 = arith.constant 0 : i32
    %c0_i32_0 = arith.constant 0 : i32
    %c0_i32_1 = arith.constant 0 : i32
    return %c0_i32, %c0_i32_0 : i32, i32
  }
  func.func @transform_3(%arg0: i32) -> (i32, i32) {
    %c0_i32 = arith.constant 0 : i32
    %c0_i32_0 = arith.constant 0 : i32
    %c0_i32_1 = arith.constant 0 : i32
    return %c0_i32, %c0_i32_0 : i32, i32
  }
  func.func @transform_4(%arg0: i32) -> (i32, i32) {
    %c0_i32 = arith.constant 0 : i32
    %c0_i32_0 = arith.constant 0 : i32
    %c0_i32_1 = arith.constant 0 : i32
    return %c0_i32, %c0_i32_0 : i32, i32
  }
  func.func @transform_5(%arg0: i32) -> (i32, i32) {
    %c0_i32 = arith.constant 0 : i32
    %c0_i32_0 = arith.constant 0 : i32
    %c0_i32_1 = arith.constant 0 : i32
    return %c0_i32, %c0_i32_0 : i32, i32
  }
  func.func @transform_6(%arg0: i32) -> (i32, i32) {
    %c0_i32 = arith.constant 0 : i32
    %c0_i32_0 = arith.constant 0 : i32
    %c0_i32_1 = arith.constant 0 : i32
    return %c0_i32, %c0_i32_0 : i32, i32
  }
  func.func @transform_7(%arg0: i32) -> (i32, i32) {
    %c0_i32 = arith.constant 0 : i32
    %c0_i32_0 = arith.constant 0 : i32
    %c0_i32_1 = arith.constant 0 : i32
    return %c0_i32, %c0_i32_0 : i32, i32
  }
  func.func @transform_8(%arg0: i32) -> (i32, i32) {
    %c0_i32 = arith.constant 0 : i32
    %c0_i32_0 = arith.constant 0 : i32
    %c0_i32_1 = arith.constant 0 : i32
    return %c0_i32, %c0_i32_0 : i32, i32
  }
  func.func @transform_9(%arg0: i32) -> (i32, i32) {
    %c0_i32 = arith.constant 0 : i32
    %c0_i32_0 = arith.constant 0 : i32
    %c0_i32_1 = arith.constant 0 : i32
    return %c0_i32, %c0_i32_0 : i32, i32
  }
  func.func @transform_10(%arg0: i32) -> (i32, i32) {
    %c0_i32 = arith.constant 0 : i32
    %c0_i32_0 = arith.constant 0 : i32
    %c0_i32_1 = arith.constant 0 : i32
    return %c0_i32, %c0_i32_0 : i32, i32
  }
  func.func @transform_11(%arg0: i32) -> (i32, i32, i32) {
    %c0_i32 = arith.constant 0 : i32
    %c0_i32_0 = arith.constant 0 : i32
    %c0_i32_1 = arith.constant 0 : i32
    return %arg0, %c0_i32, %c0_i32_0 : i32, i32, i32
  }
}

</mosaic_0001>

<llo_original>
// kernel: tpu_custom_call.1
$region0: #{tpu_custom_call.1}
  #allocation0 [shape = 'u32[]', space=smem, size = 0x4, offset = 0x4, fixed_abs, tag = 'smem constant byte address 0x4 - core index']
  #allocation1 [shape = 'u32[144,128]{1,0:T(1,128)}', space=vmem, size = 0x12000, scoped, tag = 'internal scratch']
  %s0 = inlined_call_operand.vmem [shape: f32[2,16,256], index: 0, kind: input, shape index: {}]
  %s1 = inlined_call_operand.vmem [shape: f32[16,4], index: 1, kind: input, shape index: {}]
  %s2 = inlined_call_operand.vmem [shape: f32[9,256], index: 2, kind: input, shape index: {}]
  %s3 = inlined_call_operand.vmem [shape: f32[32,32], index: 3, kind: input, shape index: {}]
  %s4 = inlined_call_operand.vmem [shape: f32[96,16], index: 4, kind: input, shape index: {}]
  %s5 = inlined_call_operand.vmem [shape: f32[96,9], index: 5, kind: input, shape index: {}]
  %s6 = inlined_call_operand.vmem [shape: f32[32,1], index: 6, kind: input, shape index: {}]
  %s7 = inlined_call_operand.vmem [shape: f32[16,32], index: 7, kind: input, shape index: {}]
  %s8 = inlined_call_operand.vmem [shape: f32[96,16], index: 8, kind: input, shape index: {}]
  %s9 = inlined_call_operand.vmem [shape: f32[96,9], index: 9, kind: input, shape index: {}]
  %s10 = inlined_call_operand.vmem [shape: f32[16,48], index: 10, kind: input, shape index: {}]
  %s11 = inlined_call_operand.hbm [shape: f32[2,16,256], index: 11, kind: output, shape index: {}]
  %s12 = sld [smem:[#allocation0]]
  $region77: #{tpu_custom_call.1} parent=0
    _
  %s14 = ssub.s32 1, %s12
  %s15 = scalar_select 0, %s14, %s12
  $region1: #{tpu_custom_call.1} parent=0
    #allocation2 [shape = 'u8[32768]{0}', space=vmem, size = 0x8000, scoped, tag = 'output window, operand 0']
    #allocation3 [shape = 's32[2]{0}', space=sflag, size = 0x8, scoped, tag = 'scoped memory for tpu_custom_call.1']
    %16 = vsyncpa [#allocation3], 0
    %s17 = scalar_lea.sflag [#allocation3], 1
    %18 = vsyncpa %s17, 0
    loop: start=0, step=1, limit=4
    $region2: #{tpu_custom_call.1} parent=1 // loop_pre_header
      _
    $region3: #{tpu_custom_call.1} parent=1 // loop_header
      %s20 = sphi 0, %s24
      %p21 = scmp.ge.s32.totalorder %s20, 4
      %s30 = sphi 0, %s32
      %s33 = sphi 0, %s30
      %s34 = sphi 0, %s33
      %s50 = sphi 0, %s34
      %s54 = sphi 0, %s54
      %s56 = sphi 0, %s54
      %s57 = sphi 0, %s56
      %s71 = sphi 0, %s57
      %s75 = sphi 0, %s75
      %s77 = sphi 0, %s75
      %s78 = sphi 0, %s77
      %s92 = sphi 0, %s78
      %s96 = sphi 0, %s96
      %s98 = sphi 0, %s96
      %s99 = sphi 0, %s98
      %s113 = sphi 0, %s99
      %s117 = sphi 0, %s117
      %s119 = sphi 0, %s117
      %s120 = sphi 0, %s119
      %s134 = sphi 0, %s120
      %s138 = sphi 0, %s138
      %s140 = sphi 0, %s138
      %s141 = sphi 0, %s140
      %s155 = sphi 0, %s141
      %s159 = sphi 0, %s159
      %s161 = sphi 0, %s159
      %s162 = sphi 0, %s161
      %s176 = sphi 0, %s162
      %s180 = sphi 0, %s180
      %s182 = sphi 0, %s180
      %s183 = sphi 0, %s182
      %s197 = sphi 0, %s183
      %s201 = sphi 0, %s201
      %s203 = sphi 0, %s201
      %s204 = sphi 0, %s203
      %s218 = sphi 0, %s204
      %s222 = sphi 0, %s222
      %s224 = sphi 0, %s222
      %s225 = sphi 0, %s224
      %s239 = sphi 0, %s225
      %s243 = sphi 0, %s243
      %s245 = sphi 0, %s243
      %s246 = sphi 0, %s245
      %s260 = sphi 0, %s246
      %s266 = sphi 0, %s268
      %s269 = sphi 0, %s266
      %s270 = sphi 0, %s269
      %s286 = sphi 0, %s270
    $region4: #{tpu_custom_call.1} parent=1 // loop_header_branch
      %23 = sbr.rel (%p21) target = $region8
    $region5: #{tpu_custom_call.1} parent=1 // loop_body
      %s25 = ssub.s32 %s20, 1
      %s26 = ssub.s32 %s20, 2
      %s27 = sadd.s32 %s20, 1
      %s28 = ssub.s32 %s20, %s27
      %p29 = scmp.eq.s32.totalorder %s28, 0
      %s31 = sadd.s32 %s30, 1
      %s32 = scalar_select %p29, %s30, %s31
      %p35 = pneg %p29
      %p36 = scmp.eq.s32.totalorder %s20, 1
      %p37 = por %p35, %p36
      %p38 = scmp.ne.s32.totalorder %s30, %s33
      %p39 = scmp.eq.s32.totalorder %s20, 0
      %p40 = por %p38, %p39
      %p41 = scmp.ne.s32.totalorder %s30, %s33
      %p42 = scmp.eq.s32.totalorder %s25, 1
      %p43 = por %p41, %p42
      %p44 = scmp.ne.s32.totalorder %s33, %s34
      %p45 = scmp.eq.s32.totalorder %s25, 0
      %p46 = por %p44, %p45
      %p47 = scmp.ne.s32.totalorder %s33, %s34
      %p48 = scmp.eq.s32.totalorder %s26, 1
      %p49 = por %p47, %p48
      %p51 = scmp.ne.s32.totalorder %s34, %s50
      %p52 = scmp.eq.s32.totalorder %s26, 0
      %p53 = por %p51, %p52
      %s55 = sadd.s32 %s54, 1
      %p58 = scmp.eq.s32.totalorder %s20, 1
      %p59 = scmp.ne.s32.totalorder %s54, %s56
      %p60 = scmp.eq.s32.totalorder %s20, 0
      %p61 = por %p59, %p60
      %p62 = scmp.ne.s32.totalorder %s54, %s56
      %p63 = scmp.eq.s32.totalorder %s25, 1
      %p64 = por %p62, %p63
      %p65 = scmp.ne.s32.totalorder %s56, %s57
      %p66 = scmp.eq.s32.totalorder %s25, 0
      %p67 = por %p65, %p66
      %p68 = scmp.ne.s32.totalorder %s56, %s57
      %p69 = scmp.eq.s32.totalorder %s26, 1
      %p70 = por %p68, %p69
      %p72 = scmp.ne.s32.totalorder %s57, %s71
      %p73 = scmp.eq.s32.totalorder %s26, 0
      %p74 = por %p72, %p73
      %s76 = sadd.s32 %s75, 1
      %p79 = scmp.eq.s32.totalorder %s20, 1
      %p80 = scmp.ne.s32.totalorder %s75, %s77
      %p81 = scmp.eq.s32.totalorder %s20, 0
      %p82 = por %p80, %p81
      %p83 = scmp.ne.s32.totalorder %s75, %s77
      %p84 = scmp.eq.s32.totalorder %s25, 1
      %p85 = por %p83, %p84
      %p86 = scmp.ne.s32.totalorder %s77, %s78
      %p87 = scmp.eq.s32.totalorder %s25, 0
      %p88 = por %p86, %p87
      %p89 = scmp.ne.s32.totalorder %s77, %s78
      %p90 = scmp.eq.s32.totalorder %s26, 1
      %p91 = por %p89, %p90
      %p93 = scmp.ne.s32.totalorder %s78, %s92
      %p94 = scmp.eq.s32.totalorder %s26, 0
      %p95 = por %p93, %p94
      %s97 = sadd.s32 %s96, 1
      %p100 = scmp.eq.s32.totalorder %s20, 1
      %p101 = scmp.ne.s32.totalorder %s96, %s98
      %p102 = scmp.eq.s32.totalorder %s20, 0
      %p103 = por %p101, %p102
      %p104 = scmp.ne.s32.totalorder %s96, %s98
      %p105 = scmp.eq.s32.totalorder %s25, 1
      %p106 = por %p104, %p105
      %p107 = scmp.ne.s32.totalorder %s98, %s99
      %p108 = scmp.eq.s32.totalorder %s25, 0
      %p109 = por %p107, %p108
      %p110 = scmp.ne.s32.totalorder %s98, %s99
      %p111 = scmp.eq.s32.totalorder %s26, 1
      %p112 = por %p110, %p111
      %p114 = scmp.ne.s32.totalorder %s99, %s113
      %p115 = scmp.eq.s32.totalorder %s26, 0
      %p116 = por %p114, %p115
      %s118 = sadd.s32 %s117, 1
      %p121 = scmp.eq.s32.totalorder %s20, 1
      %p122 = scmp.ne.s32.totalorder %s117, %s119
      %p123 = scmp.eq.s32.totalorder %s20, 0
      %p124 = por %p122, %p123
      %p125 = scmp.ne.s32.totalorder %s117, %s119
      %p126 = scmp.eq.s32.totalorder %s25, 1
      %p127 = por %p125, %p126
      %p128 = scmp.ne.s32.totalorder %s119, %s120
      %p129 = scmp.eq.s32.totalorder %s25, 0
      %p130 = por %p128, %p129
      %p131 = scmp.ne.s32.totalorder %s119, %s120
      %p132 = scmp.eq.s32.totalorder %s26, 1
      %p133 = por %p131, %p132
      %p135 = scmp.ne.s32.totalorder %s120, %s134
      %p136 = scmp.eq.s32.totalorder %s26, 0
      %p137 = por %p135, %p136
      %s139 = sadd.s32 %s138, 1
      %p142 = scmp.eq.s32.totalorder %s20, 1
      %p143 = scmp.ne.s32.totalorder %s138, %s140
      %p144 = scmp.eq.s32.totalorder %s20, 0
      %p145 = por %p143, %p144
      %p146 = scmp.ne.s32.totalorder %s138, %s140
      %p147 = scmp.eq.s32.totalorder %s25, 1
      %p148 = por %p146, %p147
      %p149 = scmp.ne.s32.totalorder %s140, %s141
      %p150 = scmp.eq.s32.totalorder %s25, 0
      %p151 = por %p149, %p150
      %p152 = scmp.ne.s32.totalorder %s140, %s141
      %p153 = scmp.eq.s32.totalorder %s26, 1
      %p154 = por %p152, %p153
      %p156 = scmp.ne.s32.totalorder %s141, %s155
      %p157 = scmp.eq.s32.totalorder %s26, 0
      %p158 = por %p156, %p157
      %s160 = sadd.s32 %s159, 1
      %p163 = scmp.eq.s32.totalorder %s20, 1
      %p164 = scmp.ne.s32.totalorder %s159, %s161
      %p165 = scmp.eq.s32.totalorder %s20, 0
      %p166 = por %p164, %p165
      %p167 = scmp.ne.s32.totalorder %s159, %s161
      %p168 = scmp.eq.s32.totalorder %s25, 1
      %p169 = por %p167, %p168
      %p170 = scmp.ne.s32.totalorder %s161, %s162
      %p171 = scmp.eq.s32.totalorder %s25, 0
      %p172 = por %p170, %p171
      %p173 = scmp.ne.s32.totalorder %s161, %s162
      %p174 = scmp.eq.s32.totalorder %s26, 1
      %p175 = por %p173, %p174
      %p177 = scmp.ne.s32.totalorder %s162, %s176
      %p178 = scmp.eq.s32.totalorder %s26, 0
      %p179 = por %p177, %p178
      %s181 = sadd.s32 %s180, 1
      %p184 = scmp.eq.s32.totalorder %s20, 1
      %p185 = scmp.ne.s32.totalorder %s180, %s182
      %p186 = scmp.eq.s32.totalorder %s20, 0
      %p187 = por %p185, %p186
      %p188 = scmp.ne.s32.totalorder %s180, %s182
      %p189 = scmp.eq.s32.totalorder %s25, 1
      %p190 = por %p188, %p189
      %p191 = scmp.ne.s32.totalorder %s182, %s183
      %p192 = scmp.eq.s32.totalorder %s25, 0
      %p193 = por %p191, %p192
      %p194 = scmp.ne.s32.totalorder %s182, %s183
      %p195 = scmp.eq.s32.totalorder %s26, 1
      %p196 = por %p194, %p195
      %p198 = scmp.ne.s32.totalorder %s183, %s197
      %p199 = scmp.eq.s32.totalorder %s26, 0
      %p200 = por %p198, %p199
      %s202 = sadd.s32 %s201, 1
      %p205 = scmp.eq.s32.totalorder %s20, 1
      %p206 = scmp.ne.s32.totalorder %s201, %s203
      %p207 = scmp.eq.s32.totalorder %s20, 0
      %p208 = por %p206, %p207
      %p209 = scmp.ne.s32.totalorder %s201, %s203
      %p210 = scmp.eq.s32.totalorder %s25, 1
      %p211 = por %p209, %p210
      %p212 = scmp.ne.s32.totalorder %s203, %s204
      %p213 = scmp.eq.s32.totalorder %s25, 0
      %p214 = por %p212, %p213
      %p215 = scmp.ne.s32.totalorder %s203, %s204
      %p216 = scmp.eq.s32.totalorder %s26, 1
      %p217 = por %p215, %p216
      %p219 = scmp.ne.s32.totalorder %s204, %s218
      %p220 = scmp.eq.s32.totalorder %s26, 0
      %p221 = por %p219, %p220
      %s223 = sadd.s32 %s222, 1
      %p226 = scmp.eq.s32.totalorder %s20, 1
      %p227 = scmp.ne.s32.totalorder %s222, %s224
      %p228 = scmp.eq.s32.totalorder %s20, 0
      %p229 = por %p227, %p228
      %p230 = scmp.ne.s32.totalorder %s222, %s224
      %p231 = scmp.eq.s32.totalorder %s25, 1
      %p232 = por %p230, %p231
      %p233 = scmp.ne.s32.totalorder %s224, %s225
      %p234 = scmp.eq.s32.totalorder %s25, 0
      %p235 = por %p233, %p234
      %p236 = scmp.ne.s32.totalorder %s224, %s225
      %p237 = scmp.eq.s32.totalorder %s26, 1
      %p238 = por %p236, %p237
      %p240 = scmp.ne.s32.totalorder %s225, %s239
      %p241 = scmp.eq.s32.totalorder %s26, 0
      %p242 = por %p240, %p241
      %s244 = sadd.s32 %s243, 1
      %p247 = scmp.eq.s32.totalorder %s20, 1
      %p248 = scmp.ne.s32.totalorder %s243, %s245
      %p249 = scmp.eq.s32.totalorder %s20, 0
      %p250 = por %p248, %p249
      %p251 = scmp.ne.s32.totalorder %s243, %s245
      %p252 = scmp.eq.s32.totalorder %s25, 1
      %p253 = por %p251, %p252
      %p254 = scmp.ne.s32.totalorder %s245, %s246
      %p255 = scmp.eq.s32.totalorder %s25, 0
      %p256 = por %p254, %p255
      %p257 = scmp.ne.s32.totalorder %s245, %s246
      %p258 = scmp.eq.s32.totalorder %s26, 1
      %p259 = por %p257, %p258
      %p261 = scmp.ne.s32.totalorder %s246, %s260
      %p262 = scmp.eq.s32.totalorder %s26, 0
      %p263 = por %p261, %p262
      %s264 = ssub.s32 %s20, %s27
      %p265 = scmp.eq.s32.totalorder %s264, 0
      %s267 = sadd.s32 %s266, 1
      %s268 = scalar_select %p265, %s266, %s267
      %p271 = pneg %p265
      %p272 = scmp.eq.s32.totalorder %s20, 1
      %p273 = por %p271, %p272
      %p274 = scmp.ne.s32.totalorder %s266, %s269
      %p275 = scmp.eq.s32.totalorder %s20, 0
      %p276 = por %p274, %p275
      %p277 = scmp.ne.s32.totalorder %s266, %s269
      %p278 = scmp.eq.s32.totalorder %s25, 1
      %p279 = por %p277, %p278
      %p280 = scmp.ne.s32.totalorder %s269, %s270
      %p281 = scmp.eq.s32.totalorder %s25, 0
      %p282 = por %p280, %p281
      %p283 = scmp.ne.s32.totalorder %s269, %s270
      %p284 = scmp.eq.s32.totalorder %s26, 1
      %p285 = por %p283, %p284
      %p287 = scmp.ne.s32.totalorder %s270, %s286
      %p288 = scmp.eq.s32.totalorder %s26, 0
      %p289 = por %p287, %p288
      %p290 = scmp.le.s32.totalorder 1, %s20
      %p291 = scmp.lt.s32.totalorder %s20, 3
      %p292 = pnand %p290, %p291
      %p293 = pneg %p292
      // Predicated region
      $region9: #{tpu_custom_call.1} parent=5 // pred_check
        _
      $region10: #{tpu_custom_call.1} parent=5 // pred_check_branch
        %295 = sbr.rel (%p292) target = $region12
      $region11: #{tpu_custom_call.1} parent=5 // pred_region
        %s296 = ssub.s32 %s20, 1
        // Predicated region
        $region13: #{tpu_custom_call.1} parent=11 // pred_check
          %p297 = pneg %p67
        $region14: #{tpu_custom_call.1} parent=11 // pred_check_branch
          %299 = sbr.rel (%p297) target = $region16
        $region15: #{tpu_custom_call.1} parent=11 // pred_region
          _
        $region16: #{tpu_custom_call.1} parent=11 // pred_fallthru
          _
        // Predicated region
        $region17: #{tpu_custom_call.1} parent=11 // pred_check
          %p300 = pneg %p88
        $region18: #{tpu_custom_call.1} parent=11 // pred_check_branch
          %302 = sbr.rel (%p300) target = $region20
        $region19: #{tpu_custom_call.1} parent=11 // pred_region
          _
        $region20: #{tpu_custom_call.1} parent=11 // pred_fallthru
          _
        // Predicated region
        $region21: #{tpu_custom_call.1} parent=11 // pred_check
          %p303 = pneg %p109
        $region22: #{tpu_custom_call.1} parent=11 // pred_check_branch
          %305 = sbr.rel (%p303) target = $region24
        $region23: #{tpu_custom_call.1} parent=11 // pred_region
          _
        $region24: #{tpu_custom_call.1} parent=11 // pred_fallthru
          _
        // Predicated region
        $region25: #{tpu_custom_call.1} parent=11 // pred_check
          %p306 = pneg %p130
        $region26: #{tpu_custom_call.1} parent=11 // pred_check_branch
          %308 = sbr.rel (%p306) target = $region28
        $region27: #{tpu_custom_call.1} parent=11 // pred_region
          _
        $region28: #{tpu_custom_call.1} parent=11 // pred_fallthru
          _
        // Predicated region
        $region29: #{tpu_custom_call.1} parent=11 // pred_check
          %p309 = pneg %p151
        $region30: #{tpu_custom_call.1} parent=11 // pred_check_branch
          %311 = sbr.rel (%p309) target = $region32
        $region31: #{tpu_custom_call.1} parent=11 // pred_region
          _
        $region32: #{tpu_custom_call.1} parent=11 // pred_fallthru
          _
        // Predicated region
        $region33: #{tpu_custom_call.1} parent=11 // pred_check
          %p312 = pneg %p172
        $region34: #{tpu_custom_call.1} parent=11 // pred_check_branch
          %314 = sbr.rel (%p312) target = $region36
        $region35: #{tpu_custom_call.1} parent=11 // pred_region
          _
        $region36: #{tpu_custom_call.1} parent=11 // pred_fallthru
          _
        // Predicated region
        $region37: #{tpu_custom_call.1} parent=11 // pred_check
          %p315 = pneg %p193
        $region38: #{tpu_custom_call.1} parent=11 // pred_check_branch
          %317 = sbr.rel (%p315) target = $region40
        $region39: #{tpu_custom_call.1} parent=11 // pred_region
          _
        $region40: #{tpu_custom_call.1} parent=11 // pred_fallthru
          _
        // Predicated region
        $region41: #{tpu_custom_call.1} parent=11 // pred_check
          %p318 = pneg %p214
        $region42: #{tpu_custom_call.1} parent=11 // pred_check_branch
          %320 = sbr.rel (%p318) target = $region44
        $region43: #{tpu_custom_call.1} parent=11 // pred_region
          _
        $region44: #{tpu_custom_call.1} parent=11 // pred_fallthru
          _
        // Predicated region
        $region45: #{tpu_custom_call.1} parent=11 // pred_check
          %p321 = pneg %p235
        $region46: #{tpu_custom_call.1} parent=11 // pred_check_branch
          %323 = sbr.rel (%p321) target = $region48
        $region47: #{tpu_custom_call.1} parent=11 // pred_region
          _
        $region48: #{tpu_custom_call.1} parent=11 // pred_fallthru
          _
        // Predicated region
        $region49: #{tpu_custom_call.1} parent=11 // pred_check
          %p324 = pneg %p256
        $region50: #{tpu_custom_call.1} parent=11 // pred_check_branch
          %326 = sbr.rel (%p324) target = $region52
        $region51: #{tpu_custom_call.1} parent=11 // pred_region
          _
        $region52: #{tpu_custom_call.1} parent=11 // pred_fallthru
          _
      $region12: #{tpu_custom_call.1} parent=5 // pred_fallthru
        _
      %p327 = scmp.lt.s32.totalorder %s20, 2
      // Predicated region
      $region53: #{tpu_custom_call.1} parent=5 // pred_check
        %p328 = pneg %p327
      $region54: #{tpu_custom_call.1} parent=5 // pred_check_branch
        %330 = sbr.rel (%p328) target = $region56
      $region55: #{tpu_custom_call.1} parent=5 // pred_region
        // Predicated region
        $region57: #{tpu_custom_call.1} parent=55 // pred_check
          %p331 = pneg %p40
        $region58: #{tpu_custom_call.1} parent=55 // pred_check_branch
          %333 = sbr.rel (%p331) target = $region60
        $region59: #{tpu_custom_call.1} parent=55 // pred_region
          %p334 = scmp.lt.s32.totalorder %s20, 1
          %s335 = scalar_select %p334, %s20, 1
          %s336 = smul.addr %s335, 4
          %s337 = smul.addr %s336, 8
          %s338 = scalar_lea.vmem %s0, %s337
        $region60: #{tpu_custom_call.1} parent=55 // pred_fallthru
          _
      $region56: #{tpu_custom_call.1} parent=5 // pred_fallthru
        _
      %p339 = scmp.le.s32.totalorder 1, %s20
      %p340 = scmp.lt.s32.totalorder %s20, 3
      %p341 = pnand %p339, %p340
      %p342 = pneg %p341
      // Predicated region
      $region61: #{tpu_custom_call.1} parent=5 // pred_check
        _
      $region62: #{tpu_custom_call.1} parent=5 // pred_check_branch
        %344 = sbr.rel (%p341) target = $region64
      $region63: #{tpu_custom_call.1} parent=5 // pred_region
        %s345 = ssub.s32 %s20, 1
        %p346 = scmp.lt.s32.totalorder %s25, 1
        %s347 = scalar_select %p346, %s25, 1
        %s348 = smul.addr %s347, 4
        %s349 = smul.addr %s348, 8
        %s350 = scalar_lea.vmem %s0, %s349
        %p351 = pneg %p46
        %p352 = pneg %p43
        %p353 = pneg %p67
        %p354 = pneg %p64
        %p355 = pneg %p88
        %p356 = pneg %p85
        %p357 = pneg %p109
        %p358 = pneg %p106
        %p359 = pneg %p130
        %p360 = pneg %p127
        %p361 = pneg %p151
        %p362 = pneg %p148
        %p363 = pneg %p172
        %p364 = pneg %p169
        %p365 = pneg %p193
        %p366 = pneg %p190
        %p367 = pneg %p214
        %p368 = pneg %p211
        %p369 = pneg %p235
        %p370 = pneg %p232
        %p371 = pneg %p256
        %p372 = pneg %p253
        %p373 = pneg %p282
        %p374 = pneg %p279
        %s375 = sand.u32 %s269, 1
        %s376 = scalar_lea.sflag [#allocation3], %s375
        %s377 = sand.u32 %s269, 1
        %s378 = smul.addr %s377, 32
        %s379 = scalar_lea.vmem [#allocation2], %s378
        %p380 = scmp.lt.s32.totalorder %s25, 1
        %s381 = scalar_select %p380, %s25, 1
        %s382 = smul.addr %s381, 4
        %s383 = smul.addr %s382, 8
        %s384 = scalar_lea.vmem %s0, %s383
        %v385 = vld [vmem:[%s384] sm:$0xff]
        %v386 = vld [vmem:[%s384 + $0x8] sm:$0xff]
        %v387 = vld [vmem:[%s384 + $0x10] sm:$0xff]
        %v388 = vld [vmem:[%s384 + $0x18] sm:$0xff]
        %v389 = vld [vmem:[%s1] sm:$0xff]
        %v390 = vld [vmem:[%s1 + $0x8] sm:$0xff]
        %v391 = vld [vmem:[%s2] sm:$0xff]
        %v392 = vld [vmem:[%s2 + $0x8] sm:$0xff]
        %v393 = vld [vmem:[%s2 + $0x10] sm:$0x1]
        %v394 = vld [vmem:[%s2 + $0x18] sm:$0x1]
        %v395 = vadd.f32 %v385, %v387
        %v396 = vrot.slane %v395, 4
        %v397 = vadd.f32 %v395, %v396
        %v398 = vrot.slane %v397, 2
        %v399 = vadd.f32 %v397, %v398
        %v400 = vrot.slane %v399, 1
        %v401 = vadd.f32 %v399, %v400
        %v402 = vadd.f32 %v386, %v388
        %v403 = vrot.slane %v402, 4
        %v404 = vadd.f32 %v402, %v403
        %v405 = vrot.slane %v404, 2
        %v406 = vadd.f32 %v404, %v405
        %v407 = vrot.slane %v406, 1
        %v408 = vadd.f32 %v406, %v407
        %v409 = vrcp.pop 16.0
        %v410 = vmul.f32 %v401, %v409
        %v411 = vmul.f32 %v408, %v409
        %v412 = vsub.f32 %v385, %v410
        %v413 = vsub.f32 %v386, %v411
        %v414 = vsub.f32 %v387, %v410
        %v415 = vsub.f32 %v388, %v411
        %v416 = vmul.f32 %v412, %v412
        %v417 = vmul.f32 %v413, %v413
        %v418 = vmul.f32 %v414, %v414
        %v419 = vmul.f32 %v415, %v415
        %v420 = vadd.f32 %v416, %v418
        %v421 = vrot.slane %v420, 4
        %v422 = vadd.f32 %v420, %v421
        %v423 = vrot.slane %v422, 2
        %v424 = vadd.f32 %v422, %v423
        %v425 = vrot.slane %v424, 1
        %v426 = vadd.f32 %v424, %v425
        %v427 = vadd.f32 %v417, %v419
        %v428 = vrot.slane %v427, 4
        %v429 = vadd.f32 %v427, %v428
        %v430 = vrot.slane %v429, 2
        %v431 = vadd.f32 %v429, %v430
        %v432 = vrot.slane %v431, 1
        %v433 = vadd.f32 %v431, %v432
        %v434 = vmul.f32 %v426, %v409
        %v435 = vmul.f32 %v433, %v409
        %v436 = vadd.f32 %v434, 1e-05
        %v437 = vadd.f32 %v435, 1e-05
        %v438 = vrsqrt.pop %v436
        %v439 = vrsqrt.pop %v437
        %v440 = vmul.f32 %v412, %v438
        %v441 = vmul.f32 %v413, %v439
        %v442 = vmul.f32 %v414, %v438
        %v443 = vmul.f32 %v415, %v439
        %445 = vset.pattern.permute.xlu0 0
        %446 = vperm.xlu0 %445, %v389
        %v447 = vpop.permute.xlu0 %446
        %450 = vset.pattern.permute.xlu0 0
        %451 = vperm.xlu0 %450, %v390
        %v452 = vpop.permute.xlu0 %451
        %v454 = vmul.f32 %v440, %v447
        %v455 = vmul.f32 %v441, %v447
        %v456 = vmul.f32 %v442, %v452
        %v457 = vmul.f32 %v443, %v452
        %458 = vset.pattern.permute.xlu0 1
        %459 = vperm.xlu0 %458, %v389
        %v460 = vpop.permute.xlu0 %459
        %462 = vset.pattern.permute.xlu0 1
        %463 = vperm.xlu0 %462, %v390
        %v464 = vpop.permute.xlu0 %463
        %v466 = vadd.f32 %v454, %v460
        %v467 = vadd.f32 %v455, %v460
        %v468 = vadd.f32 %v456, %v464
        %v469 = vadd.f32 %v457, %v464
        %v470 = vld [vmem:[%s4] sm:$0xff]
        %v471 = vld [vmem:[%s4 + $0x8] sm:$0xff]
        %v472 = vld [vmem:[%s4 + $0x10] sm:$0xff]
        %v473 = vld [vmem:[%s4 + $0x18] sm:$0xff]
        %v474 = vld [vmem:[%s4 + $0x20] sm:$0xff]
        %v475 = vld [vmem:[%s4 + $0x28] sm:$0xff]
        %v476 = vld [vmem:[%s4 + $0x30] sm:$0xff]
        %v477 = vld [vmem:[%s4 + $0x38] sm:$0xff]
        %v478 = vld [vmem:[%s4 + $0x40] sm:$0xff]
        %v479 = vld [vmem:[%s4 + $0x48] sm:$0xff]
        %v480 = vld [vmem:[%s4 + $0x50] sm:$0xff]
        %v481 = vld [vmem:[%s4 + $0x58] sm:$0xff]
        %vm482 = vcmask 130048
        %v484 = vsel %vm482, %v470, 0
        %v487 = vsel %vm482, %v471, 0
        %v490 = vsel %vm482, %v472, 0
        %v493 = vsel %vm482, %v473, 0
        %v496 = vsel %vm482, %v474, 0
        %v499 = vsel %vm482, %v475, 0
        %v502 = vsel %vm482, %v476, 0
        %v505 = vsel %vm482, %v477, 0
        %v508 = vsel %vm482, %v478, 0
        %v511 = vsel %vm482, %v479, 0
        %v514 = vsel %vm482, %v480, 0
        %v517 = vsel %vm482, %v481, 0
        %519 = vmatprep.subr.mxu0 %v467
        %520 = vmatpush1.msra.mxu0 %v466
        %521 = vmatprep.subr.mxu0 %v469
        %522 = vmatpush1.msra.mxu0 %v468
        %523 = vmatprep.subr.mxu0 0.0
        %524 = vmatpush1.msra.mxu0 0.0
        %525 = vmatprep.subr.mxu0 0.0
        %526 = vmatpush1.msra.mxu0 0.0
        %527 = vmatprep.subr.mxu0 0.0
        %528 = vmatpush1.msra.mxu0 0.0
        %529 = vmatprep.subr.mxu0 0.0
        %530 = vmatpush1.msra.mxu0 0.0
        %531 = vmatprep.subr.mxu0 0.0
        %532 = vmatpush1.msra.mxu0 0.0
        %533 = vmatprep.subr.mxu0 0.0
        %534 = vmatpush1.msra.mxu0 0.0
        %535 = vmatprep.subr.mxu0 0.0
        %536 = vmatpush1.msra.mxu0 0.0
        %537 = vmatprep.subr.mxu0 0.0
        %538 = vmatpush1.msra.mxu0 0.0
        %539 = vmatprep.subr.mxu0 0.0
        %540 = vmatpush1.msra.mxu0 0.0
        %541 = vmatprep.subr.mxu0 0.0
        %542 = vmatpush1.msra.mxu0 0.0
        %543 = vmatprep.subr.mxu0 0.0
        %544 = vmatpush1.msra.mxu0 0.0
        %545 = vmatprep.subr.mxu0 0.0
        %546 = vmatpush1.msra.mxu0 0.0
        %547 = vmatprep.subr.mxu0 0.0
        %548 = vmatpush1.msra.mxu0 0.0
        %549 = vmatprep.subr.mxu0 0.0
        %550 = vmatpush1.msra.mxu0 0.0
        %551 = vmatprep.subr.mxu0 0.0
        %552 = vmatpush1.msra.mxu0 0.0
        %553 = vmatprep.subr.mxu0 0.0
        %554 = vmatpush1.msra.mxu0 0.0
        %555 = vmatprep.subr.mxu0 0.0
        %556 = vmatpush1.msra.mxu0 0.0
        %557 = vmatprep.subr.mxu0 0.0
        %558 = vmatpush1.msra.mxu0 0.0
        %559 = vmatprep.subr.mxu0 0.0
        %560 = vmatpush1.msra.mxu0 0.0
        %561 = vmatprep.subr.mxu0 0.0
        %562 = vmatpush1.msra.mxu0 0.0
        %563 = vmatprep.subr.mxu0 0.0
        %564 = vmatpush1.msra.mxu0 0.0
        %565 = vmatprep.subr.mxu0 0.0
        %566 = vmatpush1.msra.mxu0 0.0
        %567 = vmatprep.subr.mxu0 0.0
        %568 = vmatpush1.msra.mxu0 0.0
        %569 = vmatprep.subr.mxu0 0.0
        %570 = vmatpush1.msra.mxu0 0.0
        %571 = vmatprep.subr.mxu0 0.0
        %572 = vmatpush1.msra.mxu0 0.0
        %573 = vmatprep.subr.mxu0 0.0
        %574 = vmatpush1.msra.mxu0 0.0
        %575 = vmatprep.subr.mxu0 0.0
        %576 = vmatpush1.msra.mxu0 0.0
        %577 = vmatprep.subr.mxu0 0.0
        %578 = vmatpush1.msra.mxu0 0.0
        %579 = vmatprep.subr.mxu0 0.0
        %580 = vmatpush1.msra.mxu0 0.0
        %581 = vmatprep.subr.mxu0 0.0
        %582 = vmatpush1.msra.mxu0 0.0
        %583 = vmatprep.mubr.f32.mxu0 0.0
        %584 = vmatmul.mubr.f32.gmra.mrb[0].mxu0 %v484
        %v585 = vpop.f32.mrb[0].mxu0
        %v586 = vadd.f32 0.0, %v585
        %v587 = vpop.f32.mrb[0].mxu0
        %v588 = vadd.f32 0.0, %v587
        %589 = vmatprep.mubr.f32.mxu0 0.0
        %590 = vmatmul.mubr.f32.gmra.mrb[0].mxu0 %v487
        %v591 = vpop.f32.mrb[0].mxu0
        %v592 = vadd.f32 0.0, %v591
        %v593 = vpop.f32.mrb[0].mxu0
        %v594 = vadd.f32 0.0, %v593
        %595 = vmatprep.mubr.f32.mxu0 0.0
        %596 = vmatmul.mubr.f32.gmra.mrb[0].mxu0 %v490
        %v597 = vpop.f32.mrb[0].mxu0
        %v598 = vadd.f32 0.0, %v597
        %v599 = vpop.f32.mrb[0].mxu0
        %v600 = vadd.f32 0.0, %v599
        %601 = vmatprep.mubr.f32.mxu0 0.0
        %602 = vmatmul.mubr.f32.gmra.mrb[0].mxu0 %v493
        %v603 = vpop.f32.mrb[0].mxu0
        %v604 = vadd.f32 0.0, %v603
        %v605 = vpop.f32.mrb[0].mxu0
        %v606 = vadd.f32 0.0, %v605
        %607 = vmatprep.mubr.f32.mxu0 0.0
        %608 = vmatmul.mubr.f32.gmra.mrb[0].mxu0 %v496
        %v609 = vpop.f32.mrb[0].mxu0
        %v610 = vadd.f32 0.0, %v609
        %v611 = vpop.f32.mrb[0].mxu0
        %v612 = vadd.f32 0.0, %v611
        %613 = vmatprep.mubr.f32.mxu0 0.0
        %614 = vmatmul.mubr.f32.gmra.mrb[0].mxu0 %v499
        %v615 = vpop.f32.mrb[0].mxu0
        %v616 = vadd.f32 0.0, %v615
        %v617 = vpop.f32.mrb[0].mxu0
        %v618 = vadd.f32 0.0, %v617
        %619 = vmatprep.mubr.f32.mxu0 0.0
        %620 = vmatmul.mubr.f32.gmra.mrb[0].mxu0 %v502
        %v621 = vpop.f32.mrb[0].mxu0
        %v622 = vadd.f32 0.0, %v621
        %v623 = vpop.f32.mrb[0].mxu0
        %v624 = vadd.f32 0.0, %v623
        %625 = vmatprep.mubr.f32.mxu0 0.0
        %626 = vmatmul.mubr.f32.gmra.mrb[0].mxu0 %v505
        %v627 = vpop.f32.mrb[0].mxu0
        %v628 = vadd.f32 0.0, %v627
        %v629 = vpop.f32.mrb[0].mxu0
        %v630 = vadd.f32 0.0, %v629
        %631 = vmatprep.mubr.f32.mxu0 0.0
        %632 = vmatmul.mubr.f32.gmra.mrb[0].mxu0 %v508
        %v633 = vpop.f32.mrb[0].mxu0
        %v634 = vadd.f32 0.0, %v633
        %v635 = vpop.f32.mrb[0].mxu0
        %v636 = vadd.f32 0.0, %v635
        %637 = vmatprep.mubr.f32.mxu0 0.0
        %638 = vmatmul.mubr.f32.gmra.mrb[0].mxu0 %v511
        %v639 = vpop.f32.mrb[0].mxu0
        %v640 = vadd.f32 0.0, %v639
        %v641 = vpop.f32.mrb[0].mxu0
        %v642 = vadd.f32 0.0, %v641
        %643 = vmatprep.mubr.f32.mxu0 0.0
        %644 = vmatmul.mubr.f32.gmra.mrb[0].mxu0 %v514
        %v645 = vpop.f32.mrb[0].mxu0
        %v646 = vadd.f32 0.0, %v645
        %v647 = vpop.f32.mrb[0].mxu0
        %v648 = vadd.f32 0.0, %v647
        %649 = vmatprep.mubr.f32.mxu0 0.0
        %650 = vmatmul.mubr.f32.gmra.mrb[0].mxu0 %v517
        %v651 = vpop.f32.mrb[0].mxu0
        %v652 = vadd.f32 0.0, %v651
        %v653 = vpop.f32.mrb[0].mxu0
        %v654 = vadd.f32 0.0, %v653
        %655 = vdwg.mxu0
        %v656 = vld [vmem:[%s5] sm:$0xff]
        %v657 = vld [vmem:[%s5 + $0x8] sm:$0xff]
        %v658 = vld [vmem:[%s5 + $0x10] sm:$0xff]
        %v659 = vld [vmem:[%s5 + $0x18] sm:$0xff]
        %v660 = vld [vmem:[%s5 + $0x20] sm:$0xff]
        %v661 = vld [vmem:[%s5 + $0x28] sm:$0xff]
        %v662 = vld [vmem:[%s5 + $0x30] sm:$0xff]
        %v663 = vld [vmem:[%s5 + $0x38] sm:$0xff]
        %v664 = vld [vmem:[%s5 + $0x40] sm:$0xff]
        %v665 = vld [vmem:[%s5 + $0x48] sm:$0xff]
        %v666 = vld [vmem:[%s5 + $0x50] sm:$0xff]
        %v667 = vld [vmem:[%s5 + $0x58] sm:$0xff]
        %669 = vset.pattern.permute.xlu0 4
        %670 = vperm.xlu0 %669, %v656
        %v671 = vpop.permute.xlu0 %670
        %674 = vset.pattern.permute.xlu0 4
        %675 = vperm.xlu0 %674, %v657
        %v676 = vpop.permute.xlu0 %675
        %679 = vset.pattern.permute.xlu0 4
        %680 = vperm.xlu0 %679, %v658
        %v681 = vpop.permute.xlu0 %680
        %684 = vset.pattern.permute.xlu0 4
        %685 = vperm.xlu0 %684, %v659
        %v686 = vpop.permute.xlu0 %685
        %689 = vset.pattern.permute.xlu0 4
        %690 = vperm.xlu0 %689, %v660
        %v691 = vpop.permute.xlu0 %690
        %694 = vset.pattern.permute.xlu0 4
        %695 = vperm.xlu0 %694, %v661
        %v696 = vpop.permute.xlu0 %695
        %699 = vset.pattern.permute.xlu0 4
        %700 = vperm.xlu0 %699, %v662
        %v701 = vpop.permute.xlu0 %700
        %704 = vset.pattern.permute.xlu0 4
        %705 = vperm.xlu0 %704, %v663
        %v706 = vpop.permute.xlu0 %705
        %709 = vset.pattern.permute.xlu0 4
        %710 = vperm.xlu0 %709, %v664
        %v711 = vpop.permute.xlu0 %710
        %714 = vset.pattern.permute.xlu0 4
        %715 = vperm.xlu0 %714, %v665
        %v716 = vpop.permute.xlu0 %715
        %719 = vset.pattern.permute.xlu0 4
        %720 = vperm.xlu0 %719, %v666
        %v721 = vpop.permute.xlu0 %720
        %724 = vset.pattern.permute.xlu0 4
        %725 = vperm.xlu0 %724, %v667
        %v726 = vpop.permute.xlu0 %725
        %v728 = vmul.f32 %v671, %v586
        %v729 = vmul.f32 %v671, %v588
        %v730 = vmul.f32 %v676, %v592
        %v731 = vmul.f32 %v676, %v594
        %v732 = vmul.f32 %v681, %v598
        %v733 = vmul.f32 %v681, %v600
        %v734 = vmul.f32 %v686, %v604
        %v735 = vmul.f32 %v686, %v606
        %v736 = vmul.f32 %v691, %v610
        %v737 = vmul.f32 %v691, %v612
        %v738 = vmul.f32 %v696, %v616
        %v739 = vmul.f32 %v696, %v618
        %v740 = vmul.f32 %v701, %v622
        %v741 = vmul.f32 %v701, %v624
        %v742 = vmul.f32 %v706, %v628
        %v743 = vmul.f32 %v706, %v630
        %v744 = vmul.f32 %v711, %v634
        %v745 = vmul.f32 %v711, %v636
        %v746 = vmul.f32 %v716, %v640
        %v747 = vmul.f32 %v716, %v642
        %v748 = vmul.f32 %v721, %v646
        %v749 = vmul.f32 %v721, %v648
        %v750 = vmul.f32 %v726, %v652
        %v751 = vmul.f32 %v726, %v654
        %752 = vrot.lane.b32.xlu0 %v586, 17
        %v753 = vpop.permute.xlu0 %752
        %754 = vrot.lane.b32.xlu0 %v592, 17
        %v755 = vpop.permute.xlu0 %754
        %756 = vrot.lane.b32.xlu0 %v598, 17
        %v757 = vpop.permute.xlu0 %756
        %758 = vrot.lane.b32.xlu0 %v604, 17
        %v759 = vpop.permute.xlu0 %758
        %760 = vrot.lane.b32.xlu0 %v610, 17
        %v761 = vpop.permute.xlu0 %760
        %762 = vrot.lane.b32.xlu0 %v616, 17
        %v763 = vpop.permute.xlu0 %762
        %764 = vrot.lane.b32.xlu0 %v622, 17
        %v765 = vpop.permute.xlu0 %764
        %766 = vrot.lane.b32.xlu0 %v628, 17
        %v767 = vpop.permute.xlu0 %766
        %768 = vrot.lane.b32.xlu0 %v634, 17
        %v769 = vpop.permute.xlu0 %768
        %770 = vrot.lane.b32.xlu0 %v640, 17
        %v771 = vpop.permute.xlu0 %770
        %772 = vrot.lane.b32.xlu0 %v646, 17
        %v773 = vpop.permute.xlu0 %772
        %774 = vrot.lane.b32.xlu0 %v652, 17
        %v775 = vpop.permute.xlu0 %774
        %776 = vrot.lane.b32.xlu0 %v588, 17
        %v777 = vpop.permute.xlu0 %776
        %778 = vrot.lane.b32.xlu0 %v594, 17
        %v779 = vpop.permute.xlu0 %778
        %780 = vrot.lane.b32.xlu0 %v600, 17
        %v781 = vpop.permute.xlu0 %780
        %782 = vrot.lane.b32.xlu0 %v606, 17
        %v783 = vpop.permute.xlu0 %782
        %784 = vrot.lane.b32.xlu0 %v612, 17
        %v785 = vpop.permute.xlu0 %784
        %786 = vrot.lane.b32.xlu0 %v618, 17
        %v787 = vpop.permute.xlu0 %786
        %788 = vrot.lane.b32.xlu0 %v624, 17
        %v789 = vpop.permute.xlu0 %788
        %790 = vrot.lane.b32.xlu0 %v630, 17
        %v791 = vpop.permute.xlu0 %790
        %792 = vrot.lane.b32.xlu0 %v636, 17
        %v793 = vpop.permute.xlu0 %792
        %794 = vrot.lane.b32.xlu0 %v642, 17
        %v795 = vpop.permute.xlu0 %794
        %796 = vrot.lane.b32.xlu0 %v648, 17
        %v797 = vpop.permute.xlu0 %796
        %798 = vrot.lane.b32.xlu0 %v654, 17
        %v799 = vpop.permute.xlu0 %798
        %v800 = vlaneseq
        %v801 = vand.u32 %v800, 127
        %vm802 = vcmp.lt.s32.totalorder %v801, 17
        %v803 = vsel %vm802, %v753, %v777
        %v804 = vsel %vm802, %v755, %v779
        %v805 = vsel %vm802, %v757, %v781
        %v806 = vsel %vm802, %v759, %v783
        %v807 = vsel %vm802, %v761, %v785
        %v808 = vsel %vm802, %v763, %v787
        %v809 = vsel %vm802, %v765, %v789
        %v810 = vsel %vm802, %v767, %v791
        %v811 = vsel %vm802, %v769, %v793
        %v812 = vsel %vm802, %v771, %v795
        %v813 = vsel %vm802, %v773, %v797
        %v814 = vsel %vm802, %v775, %v799
        %v815 = vsel %vm802, %v777, %v753
        %v816 = vsel %vm802, %v779, %v755
        %v817 = vsel %vm802, %v781, %v757
        %v818 = vsel %vm802, %v783, %v759
        %v819 = vsel %vm802, %v785, %v761
        %v820 = vsel %vm802, %v787, %v763
        %v821 = vsel %vm802, %v789, %v765
        %v822 = vsel %vm802, %v791, %v767
        %v823 = vsel %vm802, %v793, %v769
        %v824 = vsel %vm802, %v795, %v771
        %v825 = vsel %vm802, %v797, %v773
        %v826 = vsel %vm802, %v799, %v775
        %v827 = vlaneseq
        %v828 = vshrl.u32 %v827, 7
        %v829 = vsub.s32 0, %v828
        %v830 = vrot.slane %v391, %v829
        %v831 = vlaneseq
        %v832 = vshrl.u32 %v831, 7
        %v833 = vsub.s32 0, %v832
        %v834 = vrot.slane %v392, %v833
        %v835 = vmul.f32 %v830, %v815
        %v836 = vmul.f32 %v834, %v803
        %v837 = vmul.f32 %v830, %v816
        %v838 = vmul.f32 %v834, %v804
        %v839 = vmul.f32 %v830, %v817
        %v840 = vmul.f32 %v834, %v805
        %v841 = vmul.f32 %v830, %v818
        %v842 = vmul.f32 %v834, %v806
        %v843 = vmul.f32 %v830, %v819
        %v844 = vmul.f32 %v834, %v807
        %v845 = vmul.f32 %v830, %v820
        %v846 = vmul.f32 %v834, %v808
        %v847 = vmul.f32 %v830, %v821
        %v848 = vmul.f32 %v834, %v809
        %v849 = vmul.f32 %v830, %v822
        %v850 = vmul.f32 %v834, %v810
        %v851 = vmul.f32 %v830, %v823
        %v852 = vmul.f32 %v834, %v811
        %v853 = vmul.f32 %v830, %v824
        %v854 = vmul.f32 %v834, %v812
        %v855 = vmul.f32 %v830, %v825
        %v856 = vmul.f32 %v834, %v813
        %v857 = vmul.f32 %v830, %v826
        %v858 = vmul.f32 %v834, %v814
        %859 = vset.pattern.permute.xlu0 0
        %860 = vperm.xlu0 %859, %v656
        %v861 = vpop.permute.xlu0 %860
        %863 = vset.pattern.permute.xlu0 0
        %864 = vperm.xlu0 %863, %v657
        %v865 = vpop.permute.xlu0 %864
        %867 = vset.pattern.permute.xlu0 0
        %868 = vperm.xlu0 %867, %v658
        %v869 = vpop.permute.xlu0 %868
        %871 = vset.pattern.permute.xlu0 0
        %872 = vperm.xlu0 %871, %v659
        %v873 = vpop.permute.xlu0 %872
        %875 = vset.pattern.permute.xlu0 0
        %876 = vperm.xlu0 %875, %v660
        %v877 = vpop.permute.xlu0 %876
        %879 = vset.pattern.permute.xlu0 0
        %880 = vperm.xlu0 %879, %v661
        %v881 = vpop.permute.xlu0 %880
        %883 = vset.pattern.permute.xlu0 0
        %884 = vperm.xlu0 %883, %v662
        %v885 = vpop.permute.xlu0 %884
        %887 = vset.pattern.permute.xlu0 0
        %888 = vperm.xlu0 %887, %v663
        %v889 = vpop.permute.xlu0 %888
        %891 = vset.pattern.permute.xlu0 0
        %892 = vperm.xlu0 %891, %v664
        %v893 = vpop.permute.xlu0 %892
        %895 = vset.pattern.permute.xlu0 0
        %896 = vperm.xlu0 %895, %v665
        %v897 = vpop.permute.xlu0 %896
        %899 = vset.pattern.permute.xlu0 0
        %900 = vperm.xlu0 %899, %v666
        %v901 = vpop.permute.xlu0 %900
        %903 = vset.pattern.permute.xlu0 0
        %904 = vperm.xlu0 %903, %v667
        %v905 = vpop.permute.xlu0 %904
        %v907 = vmul.f32 %v861, %v835
        %v908 = vmul.f32 %v861, %v836
        %v909 = vmul.f32 %v865, %v837
        %v910 = vmul.f32 %v865, %v838
        %v911 = vmul.f32 %v869, %v839
        %v912 = vmul.f32 %v869, %v840
        %v913 = vmul.f32 %v873, %v841
        %v914 = vmul.f32 %v873, %v842
        %v915 = vmul.f32 %v877, %v843
        %v916 = vmul.f32 %v877, %v844
        %v917 = vmul.f32 %v881, %v845
        %v918 = vmul.f32 %v881, %v846
        %v919 = vmul.f32 %v885, %v847
        %v920 = vmul.f32 %v885, %v848
        %v921 = vmul.f32 %v889, %v849
        %v922 = vmul.f32 %v889, %v850
        %v923 = vmul.f32 %v893, %v851
        %v924 = vmul.f32 %v893, %v852
        %v925 = vmul.f32 %v897, %v853
        %v926 = vmul.f32 %v897, %v854
        %v927 = vmul.f32 %v901, %v855
        %v928 = vmul.f32 %v901, %v856
        %v929 = vmul.f32 %v905, %v857
        %v930 = vmul.f32 %v905, %v858
        %v931 = vadd.f32 %v728, %v907
        %v932 = vadd.f32 %v729, %v908
        %v933 = vadd.f32 %v730, %v909
        %v934 = vadd.f32 %v731, %v910
        %v935 = vadd.f32 %v732, %v911
        %v936 = vadd.f32 %v733, %v912
        %v937 = vadd.f32 %v734, %v913
        %v938 = vadd.f32 %v735, %v914
        %v939 = vadd.f32 %v736, %v915
        %v940 = vadd.f32 %v737, %v916
        %v941 = vadd.f32 %v738, %v917
        %v942 = vadd.f32 %v739, %v918
        %v943 = vadd.f32 %v740, %v919
        %v944 = vadd.f32 %v741, %v920
        %v945 = vadd.f32 %v742, %v921
        %v946 = vadd.f32 %v743, %v922
        %v947 = vadd.f32 %v744, %v923
        %v948 = vadd.f32 %v745, %v924
        %v949 = vadd.f32 %v746, %v925
        %v950 = vadd.f32 %v747, %v926
        %v951 = vadd.f32 %v748, %v927
        %v952 = vadd.f32 %v749, %v928
        %v953 = vadd.f32 %v750, %v929
        %v954 = vadd.f32 %v751, %v930
        %955 = vrot.lane.b32.xlu0 %v586, 16
        %v956 = vpop.permute.xlu0 %955
        %957 = vrot.lane.b32.xlu0 %v592, 16
        %v958 = vpop.permute.xlu0 %957
        %959 = vrot.lane.b32.xlu0 %v598, 16
        %v960 = vpop.permute.xlu0 %959
        %961 = vrot.lane.b32.xlu0 %v604, 16
        %v962 = vpop.permute.xlu0 %961
        %963 = vrot.lane.b32.xlu0 %v610, 16
        %v964 = vpop.permute.xlu0 %963
        %965 = vrot.lane.b32.xlu0 %v616, 16
        %v966 = vpop.permute.xlu0 %965
        %967 = vrot.lane.b32.xlu0 %v622, 16
        %v968 = vpop.permute.xlu0 %967
        %969 = vrot.lane.b32.xlu0 %v628, 16
        %v970 = vpop.permute.xlu0 %969
        %971 = vrot.lane.b32.xlu0 %v634, 16
        %v972 = vpop.permute.xlu0 %971
        %973 = vrot.lane.b32.xlu0 %v640, 16
        %v974 = vpop.permute.xlu0 %973
        %975 = vrot.lane.b32.xlu0 %v646, 16
        %v976 = vpop.permute.xlu0 %975
        %977 = vrot.lane.b32.xlu0 %v652, 16
        %v978 = vpop.permute.xlu0 %977
        %979 = vrot.lane.b32.xlu0 %v588, 16
        %v980 = vpop.permute.xlu0 %979
        %981 = vrot.lane.b32.xlu0 %v594, 16
        %v982 = vpop.permute.xlu0 %981
        %983 = vrot.lane.b32.xlu0 %v600, 16
        %v984 = vpop.permute.xlu0 %983
        %985 = vrot.lane.b32.xlu0 %v606, 16
        %v986 = vpop.permute.xlu0 %985
        %987 = vrot.lane.b32.xlu0 %v612, 16
        %v988 = vpop.permute.xlu0 %987
        %989 = vrot.lane.b32.xlu0 %v618, 16
        %v990 = vpop.permute.xlu0 %989
        %991 = vrot.lane.b32.xlu0 %v624, 16
        %v992 = vpop.permute.xlu0 %991
        %993 = vrot.lane.b32.xlu0 %v630, 16
        %v994 = vpop.permute.xlu0 %993
        %995 = vrot.lane.b32.xlu0 %v636, 16
        %v996 = vpop.permute.xlu0 %995
        %997 = vrot.lane.b32.xlu0 %v642, 16
        %v998 = vpop.permute.xlu0 %997
        %999 = vrot.lane.b32.xlu0 %v648, 16
        %v1000 = vpop.permute.xlu0 %999
        %1001 = vrot.lane.b32.xlu0 %v654, 16
        %v1002 = vpop.permute.xlu0 %1001
        %vm1003 = vcmp.lt.s32.totalorder %v801, 16
        %v1004 = vsel %vm1003, %v956, %v980
        %v1005 = vsel %vm1003, %v958, %v982
        %v1006 = vsel %vm1003, %v960, %v984
        %v1007 = vsel %vm1003, %v962, %v986
        %v1008 = vsel %vm1003, %v964, %v988
        %v1009 = vsel %vm1003, %v966, %v990
        %v1010 = vsel %vm1003, %v968, %v992
        %v1011 = vsel %vm1003, %v970, %v994
        %v1012 = vsel %vm1003, %v972, %v996
        %v1013 = vsel %vm1003, %v974, %v998
        %v1014 = vsel %vm1003, %v976, %v1000
        %v1015 = vsel %vm1003, %v978, %v1002
        %v1016 = vsel %vm1003, %v980, %v956
        %v1017 = vsel %vm1003, %v982, %v958
        %v1018 = vsel %vm1003, %v984, %v960
        %v1019 = vsel %vm1003, %v986, %v962
        %v1020 = vsel %vm1003, %v988, %v964
        %v1021 = vsel %vm1003, %v990, %v966
        %v1022 = vsel %vm1003, %v992, %v968
        %v1023 = vsel %vm1003, %v994, %v970
        %v1024 = vsel %vm1003, %v996, %v972
        %v1025 = vsel %vm1003, %v998, %v974
        %v1026 = vsel %vm1003, %v1000, %v976
        %v1027 = vsel %vm1003, %v1002, %v978
        %v1028 = vlaneseq
        %v1029 = vshrl.u32 %v1028, 7
        %v1030 = vsub.s32 1, %v1029
        %v1031 = vrot.slane %v391, %v1030
        %v1032 = vlaneseq
        %v1033 = vshrl.u32 %v1032, 7
        %v1034 = vsub.s32 1, %v1033
        %v1035 = vrot.slane %v392, %v1034
        %v1036 = vmul.f32 %v1031, %v1016
        %v1037 = vmul.f32 %v1035, %v1004
        %v1038 = vmul.f32 %v1031, %v1017
        %v1039 = vmul.f32 %v1035, %v1005
        %v1040 = vmul.f32 %v1031, %v1018
        %v1041 = vmul.f32 %v1035, %v1006
        %v1042 = vmul.f32 %v1031, %v1019
        %v1043 = vmul.f32 %v1035, %v1007
        %v1044 = vmul.f32 %v1031, %v1020
        %v1045 = vmul.f32 %v1035, %v1008
        %v1046 = vmul.f32 %v1031, %v1021
        %v1047 = vmul.f32 %v1035, %v1009
        %v1048 = vmul.f32 %v1031, %v1022
        %v1049 = vmul.f32 %v1035, %v1010
        %v1050 = vmul.f32 %v1031, %v1023
        %v1051 = vmul.f32 %v1035, %v1011
        %v1052 = vmul.f32 %v1031, %v1024
        %v1053 = vmul.f32 %v1035, %v1012
        %v1054 = vmul.f32 %v1031, %v1025
        %v1055 = vmul.f32 %v1035, %v1013
        %v1056 = vmul.f32 %v1031, %v1026
        %v1057 = vmul.f32 %v1035, %v1014
        %v1058 = vmul.f32 %v1031, %v1027
        %v1059 = vmul.f32 %v1035, %v1015
        %1060 = vset.pattern.permute.xlu0 1
        %1061 = vperm.xlu0 %1060, %v656
        %v1062 = vpop.permute.xlu0 %1061
        %1064 = vset.pattern.permute.xlu0 1
        %1065 = vperm.xlu0 %1064, %v657
        %v1066 = vpop.permute.xlu0 %1065
        %1068 = vset.pattern.permute.xlu0 1
        %1069 = vperm.xlu0 %1068, %v658
        %v1070 = vpop.permute.xlu0 %1069
        %1072 = vset.pattern.permute.xlu0 1
        %1073 = vperm.xlu0 %1072, %v659
        %v1074 = vpop.permute.xlu0 %1073
        %1076 = vset.pattern.permute.xlu0 1
        %1077 = vperm.xlu0 %1076, %v660
        %v1078 = vpop.permute.xlu0 %1077
        %1080 = vset.pattern.permute.xlu0 1
        %1081 = vperm.xlu0 %1080, %v661
        %v1082 = vpop.permute.xlu0 %1081
        %1084 = vset.pattern.permute.xlu0 1
        %1085 = vperm.xlu0 %1084, %v662
        %v1086 = vpop.permute.xlu0 %1085
        %1088 = vset.pattern.permute.xlu0 1
        %1089 = vperm.xlu0 %1088, %v663
        %v1090 = vpop.permute.xlu0 %1089
        %1092 = vset.pattern.permute.xlu0 1
        %1093 = vperm.xlu0 %1092, %v664
        %v1094 = vpop.permute.xlu0 %1093
        %1096 = vset.pattern.permute.xlu0 1
        %1097 = vperm.xlu0 %1096, %v665
        %v1098 = vpop.permute.xlu0 %1097
        %1100 = vset.pattern.permute.xlu0 1
        %1101 = vperm.xlu0 %1100, %v666
        %v1102 = vpop.permute.xlu0 %1101
        %1104 = vset.pattern.permute.xlu0 1
        %1105 = vperm.xlu0 %1104, %v667
        %v1106 = vpop.permute.xlu0 %1105
        %v1108 = vmul.f32 %v1062, %v1036
        %v1109 = vmul.f32 %v1062, %v1037
        %v1110 = vmul.f32 %v1066, %v1038
        %v1111 = vmul.f32 %v1066, %v1039
        %v1112 = vmul.f32 %v1070, %v1040
        %v1113 = vmul.f32 %v1070, %v1041
        %v1114 = vmul.f32 %v1074, %v1042
        %v1115 = vmul.f32 %v1074, %v1043
        %v1116 = vmul.f32 %v1078, %v1044
        %v1117 = vmul.f32 %v1078, %v1045
        %v1118 = vmul.f32 %v1082, %v1046
        %v1119 = vmul.f32 %v1082, %v1047
        %v1120 = vmul.f32 %v1086, %v1048
        %v1121 = vmul.f32 %v1086, %v1049
        %v1122 = vmul.f32 %v1090, %v1050
        %v1123 = vmul.f32 %v1090, %v1051
        %v1124 = vmul.f32 %v1094, %v1052
        %v1125 = vmul.f32 %v1094, %v1053
        %v1126 = vmul.f32 %v1098, %v1054
        %v1127 = vmul.f32 %v1098, %v1055
        %v1128 = vmul.f32 %v1102, %v1056
        %v1129 = vmul.f32 %v1102, %v1057
        %v1130 = vmul.f32 %v1106, %v1058
        %v1131 = vmul.f32 %v1106, %v1059
        %v1132 = vadd.f32 %v931, %v1108
        %v1133 = vadd.f32 %v932, %v1109
        %v1134 = vadd.f32 %v933, %v1110
        %v1135 = vadd.f32 %v934, %v1111
        %v1136 = vadd.f32 %v935, %v1112
        %v1137 = vadd.f32 %v936, %v1113
        %v1138 = vadd.f32 %v937, %v1114
        %v1139 = vadd.f32 %v938, %v1115
        %v1140 = vadd.f32 %v939, %v1116
        %v1141 = vadd.f32 %v940, %v1117
        %v1142 = vadd.f32 %v941, %v1118
        %v1143 = vadd.f32 %v942, %v1119
        %v1144 = vadd.f32 %v943, %v1120
        %v1145 = vadd.f32 %v944, %v1121
        %v1146 = vadd.f32 %v945, %v1122
        %v1147 = vadd.f32 %v946, %v1123
        %v1148 = vadd.f32 %v947, %v1124
        %v1149 = vadd.f32 %v948, %v1125
        %v1150 = vadd.f32 %v949, %v1126
        %v1151 = vadd.f32 %v950, %v1127
        %v1152 = vadd.f32 %v951, %v1128
        %v1153 = vadd.f32 %v952, %v1129
        %v1154 = vadd.f32 %v953, %v1130
        %v1155 = vadd.f32 %v954, %v1131
        %1156 = vrot.lane.b32.xlu0 %v586, 15
        %v1157 = vpop.permute.xlu0 %1156
        %1158 = vrot.lane.b32.xlu0 %v592, 15
        %v1159 = vpop.permute.xlu0 %1158
        %1160 = vrot.lane.b32.xlu0 %v598, 15
        %v1161 = vpop.permute.xlu0 %1160
        %1162 = vrot.lane.b32.xlu0 %v604, 15
        %v1163 = vpop.permute.xlu0 %1162
        %1164 = vrot.lane.b32.xlu0 %v610, 15
        %v1165 = vpop.permute.xlu0 %1164
        %1166 = vrot.lane.b32.xlu0 %v616, 15
        %v1167 = vpop.permute.xlu0 %1166
        %1168 = vrot.lane.b32.xlu0 %v622, 15
        %v1169 = vpop.permute.xlu0 %1168
        %1170 = vrot.lane.b32.xlu0 %v628, 15
        %v1171 = vpop.permute.xlu0 %1170
        %1172 = vrot.lane.b32.xlu0 %v634, 15
        %v1173 = vpop.permute.xlu0 %1172
        %1174 = vrot.lane.b32.xlu0 %v640, 15
        %v1175 = vpop.permute.xlu0 %1174
        %1176 = vrot.lane.b32.xlu0 %v646, 15
        %v1177 = vpop.permute.xlu0 %1176
        %1178 = vrot.lane.b32.xlu0 %v652, 15
        %v1179 = vpop.permute.xlu0 %1178
        %1180 = vrot.lane.b32.xlu0 %v588, 15
        %v1181 = vpop.permute.xlu0 %1180
        %1182 = vrot.lane.b32.xlu0 %v594, 15
        %v1183 = vpop.permute.xlu0 %1182
        %1184 = vrot.lane.b32.xlu0 %v600, 15
        %v1185 = vpop.permute.xlu0 %1184
        %1186 = vrot.lane.b32.xlu0 %v606, 15
        %v1187 = vpop.permute.xlu0 %1186
        %1188 = vrot.lane.b32.xlu0 %v612, 15
        %v1189 = vpop.permute.xlu0 %1188
        %1190 = vrot.lane.b32.xlu0 %v618, 15
        %v1191 = vpop.permute.xlu0 %1190
        %1192 = vrot.lane.b32.xlu0 %v624, 15
        %v1193 = vpop.permute.xlu0 %1192
        %1194 = vrot.lane.b32.xlu0 %v630, 15
        %v1195 = vpop.permute.xlu0 %1194
        %1196 = vrot.lane.b32.xlu0 %v636, 15
        %v1197 = vpop.permute.xlu0 %1196
        %1198 = vrot.lane.b32.xlu0 %v642, 15
        %v1199 = vpop.permute.xlu0 %1198
        %1200 = vrot.lane.b32.xlu0 %v648, 15
        %v1201 = vpop.permute.xlu0 %1200
        %1202 = vrot.lane.b32.xlu0 %v654, 15
        %v1203 = vpop.permute.xlu0 %1202
        %vm1204 = vcmp.lt.s32.totalorder %v801, 15
        %v1205 = vsel %vm1204, %v1157, %v1181
        %v1206 = vsel %vm1204, %v1159, %v1183
        %v1207 = vsel %vm1204, %v1161, %v1185
        %v1208 = vsel %vm1204, %v1163, %v1187
        %v1209 = vsel %vm1204, %v1165, %v1189
        %v1210 = vsel %vm1204, %v1167, %v1191
        %v1211 = vsel %vm1204, %v1169, %v1193
        %v1212 = vsel %vm1204, %v1171, %v1195
        %v1213 = vsel %vm1204, %v1173, %v1197
        %v1214 = vsel %vm1204, %v1175, %v1199
        %v1215 = vsel %vm1204, %v1177, %v1201
        %v1216 = vsel %vm1204, %v1179, %v1203
        %v1217 = vsel %vm1204, %v1181, %v1157
        %v1218 = vsel %vm1204, %v1183, %v1159
        %v1219 = vsel %vm1204, %v1185, %v1161
        %v1220 = vsel %vm1204, %v1187, %v1163
        %v1221 = vsel %vm1204, %v1189, %v1165
        %v1222 = vsel %vm1204, %v1191, %v1167
        %v1223 = vsel %vm1204, %v1193, %v1169
        %v1224 = vsel %vm1204, %v1195, %v1171
        %v1225 = vsel %vm1204, %v1197, %v1173
        %v1226 = vsel %vm1204, %v1199, %v1175
        %v1227 = vsel %vm1204, %v1201, %v1177
        %v1228 = vsel %vm1204, %v1203, %v1179
        %v1229 = vlaneseq
        %v1230 = vshrl.u32 %v1229, 7
        %v1231 = vsub.s32 2, %v1230
        %v1232 = vrot.slane %v391, %v1231
        %v1233 = vlaneseq
        %v1234 = vshrl.u32 %v1233, 7
        %v1235 = vsub.s32 2, %v1234
        %v1236 = vrot.slane %v392, %v1235
        %v1237 = vmul.f32 %v1232, %v1217
        %v1238 = vmul.f32 %v1236, %v1205
        %v1239 = vmul.f32 %v1232, %v1218
        %v1240 = vmul.f32 %v1236, %v1206
        %v1241 = vmul.f32 %v1232, %v1219
        %v1242 = vmul.f32 %v1236, %v1207
        %v1243 = vmul.f32 %v1232, %v1220
        %v1244 = vmul.f32 %v1236, %v1208
        %v1245 = vmul.f32 %v1232, %v1221
        %v1246 = vmul.f32 %v1236, %v1209
        %v1247 = vmul.f32 %v1232, %v1222
        %v1248 = vmul.f32 %v1236, %v1210
        %v1249 = vmul.f32 %v1232, %v1223
        %v1250 = vmul.f32 %v1236, %v1211
        %v1251 = vmul.f32 %v1232, %v1224
        %v1252 = vmul.f32 %v1236, %v1212
        %v1253 = vmul.f32 %v1232, %v1225
        %v1254 = vmul.f32 %v1236, %v1213
        %v1255 = vmul.f32 %v1232, %v1226
        %v1256 = vmul.f32 %v1236, %v1214
        %v1257 = vmul.f32 %v1232, %v1227
        %v1258 = vmul.f32 %v1236, %v1215
        %v1259 = vmul.f32 %v1232, %v1228
        %v1260 = vmul.f32 %v1236, %v1216
        %1261 = vset.pattern.permute.xlu0 2
        %1262 = vperm.xlu0 %1261, %v656
        %v1263 = vpop.permute.xlu0 %1262
        %1265 = vset.pattern.permute.xlu0 2
        %1266 = vperm.xlu0 %1265, %v657
        %v1267 = vpop.permute.xlu0 %1266
        %1269 = vset.pattern.permute.xlu0 2
        %1270 = vperm.xlu0 %1269, %v658
        %v1271 = vpop.permute.xlu0 %1270
        %1273 = vset.pattern.permute.xlu0 2
        %1274 = vperm.xlu0 %1273, %v659
        %v1275 = vpop.permute.xlu0 %1274
        %1277 = vset.pattern.permute.xlu0 2
        %1278 = vperm.xlu0 %1277, %v660
        %v1279 = vpop.permute.xlu0 %1278
        %1281 = vset.pattern.permute.xlu0 2
        %1282 = vperm.xlu0 %1281, %v661
        %v1283 = vpop.permute.xlu0 %1282
        %1285 = vset.pattern.permute.xlu0 2
        %1286 = vperm.xlu0 %1285, %v662
        %v1287 = vpop.permute.xlu0 %1286
        %1289 = vset.pattern.permute.xlu0 2
        %1290 = vperm.xlu0 %1289, %v663
        %v1291 = vpop.permute.xlu0 %1290
        %1293 = vset.pattern.permute.xlu0 2
        %1294 = vperm.xlu0 %1293, %v664
        %v1295 = vpop.permute.xlu0 %1294
        %1297 = vset.pattern.permute.xlu0 2
        %1298 = vperm.xlu0 %1297, %v665
        %v1299 = vpop.permute.xlu0 %1298
        %1301 = vset.pattern.permute.xlu0 2
        %1302 = vperm.xlu0 %1301, %v666
        %v1303 = vpop.permute.xlu0 %1302
        %1305 = vset.pattern.permute.xlu0 2
        %1306 = vperm.xlu0 %1305, %v667
        %v1307 = vpop.permute.xlu0 %1306
        %v1309 = vmul.f32 %v1263, %v1237
        %v1310 = vmul.f32 %v1263, %v1238
        %v1311 = vmul.f32 %v1267, %v1239
        %v1312 = vmul.f32 %v1267, %v1240
        %v1313 = vmul.f32 %v1271, %v1241
        %v1314 = vmul.f32 %v1271, %v1242
        %v1315 = vmul.f32 %v1275, %v1243
        %v1316 = vmul.f32 %v1275, %v1244
        %v1317 = vmul.f32 %v1279, %v1245
        %v1318 = vmul.f32 %v1279, %v1246
        %v1319 = vmul.f32 %v1283, %v1247
        %v1320 = vmul.f32 %v1283, %v1248
        %v1321 = vmul.f32 %v1287, %v1249
        %v1322 = vmul.f32 %v1287, %v1250
        %v1323 = vmul.f32 %v1291, %v1251
        %v1324 = vmul.f32 %v1291, %v1252
        %v1325 = vmul.f32 %v1295, %v1253
        %v1326 = vmul.f32 %v1295, %v1254
        %v1327 = vmul.f32 %v1299, %v1255
        %v1328 = vmul.f32 %v1299, %v1256
        %v1329 = vmul.f32 %v1303, %v1257
        %v1330 = vmul.f32 %v1303, %v1258
        %v1331 = vmul.f32 %v1307, %v1259
        %v1332 = vmul.f32 %v1307, %v1260
        %v1333 = vadd.f32 %v1132, %v1309
        %v1334 = vadd.f32 %v1133, %v1310
        %v1335 = vadd.f32 %v1134, %v1311
        %v1336 = vadd.f32 %v1135, %v1312
        %v1337 = vadd.f32 %v1136, %v1313
        %v1338 = vadd.f32 %v1137, %v1314
        %v1339 = vadd.f32 %v1138, %v1315
        %v1340 = vadd.f32 %v1139, %v1316
        %v1341 = vadd.f32 %v1140, %v1317
        %v1342 = vadd.f32 %v1141, %v1318
        %v1343 = vadd.f32 %v1142, %v1319
        %v1344 = vadd.f32 %v1143, %v1320
        %v1345 = vadd.f32 %v1144, %v1321
        %v1346 = vadd.f32 %v1145, %v1322
        %v1347 = vadd.f32 %v1146, %v1323
        %v1348 = vadd.f32 %v1147, %v1324
        %v1349 = vadd.f32 %v1148, %v1325
        %v1350 = vadd.f32 %v1149, %v1326
        %v1351 = vadd.f32 %v1150, %v1327
        %v1352 = vadd.f32 %v1151, %v1328
        %v1353 = vadd.f32 %v1152, %v1329
        %v1354 = vadd.f32 %v1153, %v1330
        %v1355 = vadd.f32 %v1154, %v1331
        %v1356 = vadd.f32 %v1155, %v1332
        %1357 = vrot.lane.b32.xlu0 %v586, 1
        %v1358 = vpop.permute.xlu0 %1357
        %1359 = vrot.lane.b32.xlu0 %v592, 1
        %v1360 = vpop.permute.xlu0 %1359
        %1361 = vrot.lane.b32.xlu0 %v598, 1
        %v1362 = vpop.permute.xlu0 %1361
        %1363 = vrot.lane.b32.xlu0 %v604, 1
        %v1364 = vpop.permute.xlu0 %1363
        %1365 = vrot.lane.b32.xlu0 %v610, 1
        %v1366 = vpop.permute.xlu0 %1365
        %1367 = vrot.lane.b32.xlu0 %v616, 1
        %v1368 = vpop.permute.xlu0 %1367
        %1369 = vrot.lane.b32.xlu0 %v622, 1
        %v1370 = vpop.permute.xlu0 %1369
        %1371 = vrot.lane.b32.xlu0 %v628, 1
        %v1372 = vpop.permute.xlu0 %1371
        %1373 = vrot.lane.b32.xlu0 %v634, 1
        %v1374 = vpop.permute.xlu0 %1373
        %1375 = vrot.lane.b32.xlu0 %v640, 1
        %v1376 = vpop.permute.xlu0 %1375
        %1377 = vrot.lane.b32.xlu0 %v646, 1
        %v1378 = vpop.permute.xlu0 %1377
        %1379 = vrot.lane.b32.xlu0 %v652, 1
        %v1380 = vpop.permute.xlu0 %1379
        %1381 = vrot.lane.b32.xlu0 %v588, 1
        %v1382 = vpop.permute.xlu0 %1381
        %1383 = vrot.lane.b32.xlu0 %v594, 1
        %v1384 = vpop.permute.xlu0 %1383
        %1385 = vrot.lane.b32.xlu0 %v600, 1
        %v1386 = vpop.permute.xlu0 %1385
        %1387 = vrot.lane.b32.xlu0 %v606, 1
        %v1388 = vpop.permute.xlu0 %1387
        %1389 = vrot.lane.b32.xlu0 %v612, 1
        %v1390 = vpop.permute.xlu0 %1389
        %1391 = vrot.lane.b32.xlu0 %v618, 1
        %v1392 = vpop.permute.xlu0 %1391
        %1393 = vrot.lane.b32.xlu0 %v624, 1
        %v1394 = vpop.permute.xlu0 %1393
        %1395 = vrot.lane.b32.xlu0 %v630, 1
        %v1396 = vpop.permute.xlu0 %1395
        %1397 = vrot.lane.b32.xlu0 %v636, 1
        %v1398 = vpop.permute.xlu0 %1397
        %1399 = vrot.lane.b32.xlu0 %v642, 1
        %v1400 = vpop.permute.xlu0 %1399
        %1401 = vrot.lane.b32.xlu0 %v648, 1
        %v1402 = vpop.permute.xlu0 %1401
        %1403 = vrot.lane.b32.xlu0 %v654, 1
        %v1404 = vpop.permute.xlu0 %1403
        %vm1405 = vcmp.lt.s32.totalorder %v801, 1
        %v1406 = vsel %vm1405, %v1358, %v1382
        %v1407 = vsel %vm1405, %v1360, %v1384
        %v1408 = vsel %vm1405, %v1362, %v1386
        %v1409 = vsel %vm1405, %v1364, %v1388
        %v1410 = vsel %vm1405, %v1366, %v1390
        %v1411 = vsel %vm1405, %v1368, %v1392
        %v1412 = vsel %vm1405, %v1370, %v1394
        %v1413 = vsel %vm1405, %v1372, %v1396
        %v1414 = vsel %vm1405, %v1374, %v1398
        %v1415 = vsel %vm1405, %v1376, %v1400
        %v1416 = vsel %vm1405, %v1378, %v1402
        %v1417 = vsel %vm1405, %v1380, %v1404
        %v1418 = vsel %vm1405, %v1382, %v1358
        %v1419 = vsel %vm1405, %v1384, %v1360
        %v1420 = vsel %vm1405, %v1386, %v1362
        %v1421 = vsel %vm1405, %v1388, %v1364
        %v1422 = vsel %vm1405, %v1390, %v1366
        %v1423 = vsel %vm1405, %v1392, %v1368
        %v1424 = vsel %vm1405, %v1394, %v1370
        %v1425 = vsel %vm1405, %v1396, %v1372
        %v1426 = vsel %vm1405, %v1398, %v1374
        %v1427 = vsel %vm1405, %v1400, %v1376
        %v1428 = vsel %vm1405, %v1402, %v1378
        %v1429 = vsel %vm1405, %v1404, %v1380
        %v1430 = vlaneseq
        %v1431 = vshrl.u32 %v1430, 7
        %v1432 = vsub.s32 3, %v1431
        %v1433 = vrot.slane %v391, %v1432
        %v1434 = vlaneseq
        %v1435 = vshrl.u32 %v1434, 7
        %v1436 = vsub.s32 3, %v1435
        %v1437 = vrot.slane %v392, %v1436
        %v1438 = vmul.f32 %v1433, %v1418
        %v1439 = vmul.f32 %v1437, %v1406
        %v1440 = vmul.f32 %v1433, %v1419
        %v1441 = vmul.f32 %v1437, %v1407
        %v1442 = vmul.f32 %v1433, %v1420
        %v1443 = vmul.f32 %v1437, %v1408
        %v1444 = vmul.f32 %v1433, %v1421
        %v1445 = vmul.f32 %v1437, %v1409
        %v1446 = vmul.f32 %v1433, %v1422
        %v1447 = vmul.f32 %v1437, %v1410
        %v1448 = vmul.f32 %v1433, %v1423
        %v1449 = vmul.f32 %v1437, %v1411
        %v1450 = vmul.f32 %v1433, %v1424
        %v1451 = vmul.f32 %v1437, %v1412
        %v1452 = vmul.f32 %v1433, %v1425
        %v1453 = vmul.f32 %v1437, %v1413
        %v1454 = vmul.f32 %v1433, %v1426
        %v1455 = vmul.f32 %v1437, %v1414
        %v1456 = vmul.f32 %v1433, %v1427
        %v1457 = vmul.f32 %v1437, %v1415
        %v1458 = vmul.f32 %v1433, %v1428
        %v1459 = vmul.f32 %v1437, %v1416
        %v1460 = vmul.f32 %v1433, %v1429
        %v1461 = vmul.f32 %v1437, %v1417
        %1462 = vset.pattern.permute.xlu0 3
        %1463 = vperm.xlu0 %1462, %v656
        %v1464 = vpop.permute.xlu0 %1463
        %1466 = vset.pattern.permute.xlu0 3
        %1467 = vperm.xlu0 %1466, %v657
        %v1468 = vpop.permute.xlu0 %1467
        %1470 = vset.pattern.permute.xlu0 3
        %1471 = vperm.xlu0 %1470, %v658
        %v1472 = vpop.permute.xlu0 %1471
        %1474 = vset.pattern.permute.xlu0 3
        %1475 = vperm.xlu0 %1474, %v659
        %v1476 = vpop.permute.xlu0 %1475
        %1478 = vset.pattern.permute.xlu0 3
        %1479 = vperm.xlu0 %1478, %v660
        %v1480 = vpop.permute.xlu0 %1479
        %1482 = vset.pattern.permute.xlu0 3
        %1483 = vperm.xlu0 %1482, %v661
        %v1484 = vpop.permute.xlu0 %1483
        %1486 = vset.pattern.permute.xlu0 3
        %1487 = vperm.xlu0 %1486, %v662
        %v1488 = vpop.permute.xlu0 %1487
        %1490 = vset.pattern.permute.xlu0 3
        %1491 = vperm.xlu0 %1490, %v663
        %v1492 = vpop.permute.xlu0 %1491
        %1494 = vset.pattern.permute.xlu0 3
        %1495 = vperm.xlu0 %1494, %v664
        %v1496 = vpop.permute.xlu0 %1495
        %1498 = vset.pattern.permute.xlu0 3
        %1499 = vperm.xlu0 %1498, %v665
        %v1500 = vpop.permute.xlu0 %1499
        %1502 = vset.pattern.permute.xlu0 3
        %1503 = vperm.xlu0 %1502, %v666
        %v1504 = vpop.permute.xlu0 %1503
        %1506 = vset.pattern.permute.xlu0 3
        %1507 = vperm.xlu0 %1506, %v667
        %v1508 = vpop.permute.xlu0 %1507
        %v1510 = vmul.f32 %v1464, %v1438
        %v1511 = vmul.f32 %v1464, %v1439
        %v1512 = vmul.f32 %v1468, %v1440
        %v1513 = vmul.f32 %v1468, %v1441
        %v1514 = vmul.f32 %v1472, %v1442
        %v1515 = vmul.f32 %v1472, %v1443
        %v1516 = vmul.f32 %v1476, %v1444
        %v1517 = vmul.f32 %v1476, %v1445
        %v1518 = vmul.f32 %v1480, %v1446
        %v1519 = vmul.f32 %v1480, %v1447
        %v1520 = vmul.f32 %v1484, %v1448
        %v1521 = vmul.f32 %v1484, %v1449
        %v1522 = vmul.f32 %v1488, %v1450
        %v1523 = vmul.f32 %v1488, %v1451
        %v1524 = vmul.f32 %v1492, %v1452
        %v1525 = vmul.f32 %v1492, %v1453
        %v1526 = vmul.f32 %v1496, %v1454
        %v1527 = vmul.f32 %v1496, %v1455
        %v1528 = vmul.f32 %v1500, %v1456
        %v1529 = vmul.f32 %v1500, %v1457
        %v1530 = vmul.f32 %v1504, %v1458
        %v1531 = vmul.f32 %v1504, %v1459
        %v1532 = vmul.f32 %v1508, %v1460
        %v1533 = vmul.f32 %v1508, %v1461
        %v1534 = vadd.f32 %v1333, %v1510
        %v1535 = vadd.f32 %v1334, %v1511
        %v1536 = vadd.f32 %v1335, %v1512
        %v1537 = vadd.f32 %v1336, %v1513
        %v1538 = vadd.f32 %v1337, %v1514
        %v1539 = vadd.f32 %v1338, %v1515
        %v1540 = vadd.f32 %v1339, %v1516
        %v1541 = vadd.f32 %v1340, %v1517
        %v1542 = vadd.f32 %v1341, %v1518
        %v1543 = vadd.f32 %v1342, %v1519
        %v1544 = vadd.f32 %v1343, %v1520
        %v1545 = vadd.f32 %v1344, %v1521
        %v1546 = vadd.f32 %v1345, %v1522
        %v1547 = vadd.f32 %v1346, %v1523
        %v1548 = vadd.f32 %v1347, %v1524
        %v1549 = vadd.f32 %v1348, %v1525
        %v1550 = vadd.f32 %v1349, %v1526
        %v1551 = vadd.f32 %v1350, %v1527
        %v1552 = vadd.f32 %v1351, %v1528
        %v1553 = vadd.f32 %v1352, %v1529
        %v1554 = vadd.f32 %v1353, %v1530
        %v1555 = vadd.f32 %v1354, %v1531
        %v1556 = vadd.f32 %v1355, %v1532
        %v1557 = vadd.f32 %v1356, %v1533
        %1558 = vrot.lane.b32.xlu0 %v586, 127
        %v1559 = vpop.permute.xlu0 %1558
        %1560 = vrot.lane.b32.xlu0 %v592, 127
        %v1561 = vpop.permute.xlu0 %1560
        %1562 = vrot.lane.b32.xlu0 %v598, 127
        %v1563 = vpop.permute.xlu0 %1562
        %1564 = vrot.lane.b32.xlu0 %v604, 127
        %v1565 = vpop.permute.xlu0 %1564
        %1566 = vrot.lane.b32.xlu0 %v610, 127
        %v1567 = vpop.permute.xlu0 %1566
        %1568 = vrot.lane.b32.xlu0 %v616, 127
        %v1569 = vpop.permute.xlu0 %1568
        %1570 = vrot.lane.b32.xlu0 %v622, 127
        %v1571 = vpop.permute.xlu0 %1570
        %1572 = vrot.lane.b32.xlu0 %v628, 127
        %v1573 = vpop.permute.xlu0 %1572
        %1574 = vrot.lane.b32.xlu0 %v634, 127
        %v1575 = vpop.permute.xlu0 %1574
        %1576 = vrot.lane.b32.xlu0 %v640, 127
        %v1577 = vpop.permute.xlu0 %1576
        %1578 = vrot.lane.b32.xlu0 %v646, 127
        %v1579 = vpop.permute.xlu0 %1578
        %1580 = vrot.lane.b32.xlu0 %v652, 127
        %v1581 = vpop.permute.xlu0 %1580
        %1582 = vrot.lane.b32.xlu0 %v588, 127
        %v1583 = vpop.permute.xlu0 %1582
        %1584 = vrot.lane.b32.xlu0 %v594, 127
        %v1585 = vpop.permute.xlu0 %1584
        %1586 = vrot.lane.b32.xlu0 %v600, 127
        %v1587 = vpop.permute.xlu0 %1586
        %1588 = vrot.lane.b32.xlu0 %v606, 127
        %v1589 = vpop.permute.xlu0 %1588
        %1590 = vrot.lane.b32.xlu0 %v612, 127
        %v1591 = vpop.permute.xlu0 %1590
        %1592 = vrot.lane.b32.xlu0 %v618, 127
        %v1593 = vpop.permute.xlu0 %1592
        %1594 = vrot.lane.b32.xlu0 %v624, 127
        %v1595 = vpop.permute.xlu0 %1594
        %1596 = vrot.lane.b32.xlu0 %v630, 127
        %v1597 = vpop.permute.xlu0 %1596
        %1598 = vrot.lane.b32.xlu0 %v636, 127
        %v1599 = vpop.permute.xlu0 %1598
        %1600 = vrot.lane.b32.xlu0 %v642, 127
        %v1601 = vpop.permute.xlu0 %1600
        %1602 = vrot.lane.b32.xlu0 %v648, 127
        %v1603 = vpop.permute.xlu0 %1602
        %1604 = vrot.lane.b32.xlu0 %v654, 127
        %v1605 = vpop.permute.xlu0 %1604
        %vm1606 = vcmp.lt.s32.totalorder %v801, 127
        %v1607 = vsel %vm1606, %v1559, %v1583
        %v1608 = vsel %vm1606, %v1561, %v1585
        %v1609 = vsel %vm1606, %v1563, %v1587
        %v1610 = vsel %vm1606, %v1565, %v1589
        %v1611 = vsel %vm1606, %v1567, %v1591
        %v1612 = vsel %vm1606, %v1569, %v1593
        %v1613 = vsel %vm1606, %v1571, %v1595
        %v1614 = vsel %vm1606, %v1573, %v1597
        %v1615 = vsel %vm1606, %v1575, %v1599
        %v1616 = vsel %vm1606, %v1577, %v1601
        %v1617 = vsel %vm1606, %v1579, %v1603
        %v1618 = vsel %vm1606, %v1581, %v1605
        %v1619 = vsel %vm1606, %v1583, %v1559
        %v1620 = vsel %vm1606, %v1585, %v1561
        %v1621 = vsel %vm1606, %v1587, %v1563
        %v1622 = vsel %vm1606, %v1589, %v1565
        %v1623 = vsel %vm1606, %v1591, %v1567
        %v1624 = vsel %vm1606, %v1593, %v1569
        %v1625 = vsel %vm1606, %v1595, %v1571
        %v1626 = vsel %vm1606, %v1597, %v1573
        %v1627 = vsel %vm1606, %v1599, %v1575
        %v1628 = vsel %vm1606, %v1601, %v1577
        %v1629 = vsel %vm1606, %v1603, %v1579
        %v1630 = vsel %vm1606, %v1605, %v1581
        %v1631 = vlaneseq
        %v1632 = vshrl.u32 %v1631, 7
        %v1633 = vsub.s32 5, %v1632
        %v1634 = vrot.slane %v391, %v1633
        %v1635 = vlaneseq
        %v1636 = vshrl.u32 %v1635, 7
        %v1637 = vsub.s32 5, %v1636
        %v1638 = vrot.slane %v392, %v1637
        %v1639 = vmul.f32 %v1634, %v1607
        %v1640 = vmul.f32 %v1638, %v1619
        %v1641 = vmul.f32 %v1634, %v1608
        %v1642 = vmul.f32 %v1638, %v1620
        %v1643 = vmul.f32 %v1634, %v1609
        %v1644 = vmul.f32 %v1638, %v1621
        %v1645 = vmul.f32 %v1634, %v1610
        %v1646 = vmul.f32 %v1638, %v1622
        %v1647 = vmul.f32 %v1634, %v1611
        %v1648 = vmul.f32 %v1638, %v1623
        %v1649 = vmul.f32 %v1634, %v1612
        %v1650 = vmul.f32 %v1638, %v1624
        %v1651 = vmul.f32 %v1634, %v1613
        %v1652 = vmul.f32 %v1638, %v1625
        %v1653 = vmul.f32 %v1634, %v1614
        %v1654 = vmul.f32 %v1638, %v1626
        %v1655 = vmul.f32 %v1634, %v1615
        %v1656 = vmul.f32 %v1638, %v1627
        %v1657 = vmul.f32 %v1634, %v1616
        %v1658 = vmul.f32 %v1638, %v1628
        %v1659 = vmul.f32 %v1634, %v1617
        %v1660 = vmul.f32 %v1638, %v1629
        %v1661 = vmul.f32 %v1634, %v1618
        %v1662 = vmul.f32 %v1638, %v1630
        %1663 = vset.pattern.permute.xlu0 5
        %1664 = vperm.xlu0 %1663, %v656
        %v1665 = vpop.permute.xlu0 %1664
        %1667 = vset.pattern.permute.xlu0 5
        %1668 = vperm.xlu0 %1667, %v657
        %v1669 = vpop.permute.xlu0 %1668
        %1671 = vset.pattern.permute.xlu0 5
        %1672 = vperm.xlu0 %1671, %v658
        %v1673 = vpop.permute.xlu0 %1672
        %1675 = vset.pattern.permute.xlu0 5
        %1676 = vperm.xlu0 %1675, %v659
        %v1677 = vpop.permute.xlu0 %1676
        %1679 = vset.pattern.permute.xlu0 5
        %1680 = vperm.xlu0 %1679, %v660
        %v1681 = vpop.permute.xlu0 %1680
        %1683 = vset.pattern.permute.xlu0 5
        %1684 = vperm.xlu0 %1683, %v661
        %v1685 = vpop.permute.xlu0 %1684
        %1687 = vset.pattern.permute.xlu0 5
        %1688 = vperm.xlu0 %1687, %v662
        %v1689 = vpop.permute.xlu0 %1688
        %1691 = vset.pattern.permute.xlu0 5
        %1692 = vperm.xlu0 %1691, %v663
        %v1693 = vpop.permute.xlu0 %1692
        %1695 = vset.pattern.permute.xlu0 5
        %1696 = vperm.xlu0 %1695, %v664
        %v1697 = vpop.permute.xlu0 %1696
        %1699 = vset.pattern.permute.xlu0 5
        %1700 = vperm.xlu0 %1699, %v665
        %v1701 = vpop.permute.xlu0 %1700
        %1703 = vset.pattern.permute.xlu0 5
        %1704 = vperm.xlu0 %1703, %v666
        %v1705 = vpop.permute.xlu0 %1704
        %1707 = vset.pattern.permute.xlu0 5
        %1708 = vperm.xlu0 %1707, %v667
        %v1709 = vpop.permute.xlu0 %1708
        %v1711 = vmul.f32 %v1665, %v1639
        %v1712 = vmul.f32 %v1665, %v1640
        %v1713 = vmul.f32 %v1669, %v1641
        %v1714 = vmul.f32 %v1669, %v1642
        %v1715 = vmul.f32 %v1673, %v1643
        %v1716 = vmul.f32 %v1673, %v1644
        %v1717 = vmul.f32 %v1677, %v1645
        %v1718 = vmul.f32 %v1677, %v1646
        %v1719 = vmul.f32 %v1681, %v1647
        %v1720 = vmul.f32 %v1681, %v1648
        %v1721 = vmul.f32 %v1685, %v1649
        %v1722 = vmul.f32 %v1685, %v1650
        %v1723 = vmul.f32 %v1689, %v1651
        %v1724 = vmul.f32 %v1689, %v1652
        %v1725 = vmul.f32 %v1693, %v1653
        %v1726 = vmul.f32 %v1693, %v1654
        %v1727 = vmul.f32 %v1697, %v1655
        %v1728 = vmul.f32 %v1697, %v1656
        %v1729 = vmul.f32 %v1701, %v1657
        %v1730 = vmul.f32 %v1701, %v1658
        %v1731 = vmul.f32 %v1705, %v1659
        %v1732 = vmul.f32 %v1705, %v1660
        %v1733 = vmul.f32 %v1709, %v1661
        %v1734 = vmul.f32 %v1709, %v1662
        %v1735 = vadd.f32 %v1534, %v1711
        %v1736 = vadd.f32 %v1535, %v1712
        %v1737 = vadd.f32 %v1536, %v1713
        %v1738 = vadd.f32 %v1537, %v1714
        %v1739 = vadd.f32 %v1538, %v1715
        %v1740 = vadd.f32 %v1539, %v1716
        %v1741 = vadd.f32 %v1540, %v1717
        %v1742 = vadd.f32 %v1541, %v1718
        %v1743 = vadd.f32 %v1542, %v1719
        %v1744 = vadd.f32 %v1543, %v1720
        %v1745 = vadd.f32 %v1544, %v1721
        %v1746 = vadd.f32 %v1545, %v1722
        %v1747 = vadd.f32 %v1546, %v1723
        %v1748 = vadd.f32 %v1547, %v1724
        %v1749 = vadd.f32 %v1548, %v1725
        %v1750 = vadd.f32 %v1549, %v1726
        %v1751 = vadd.f32 %v1550, %v1727
        %v1752 = vadd.f32 %v1551, %v1728
        %v1753 = vadd.f32 %v1552, %v1729
        %v1754 = vadd.f32 %v1553, %v1730
        %v1755 = vadd.f32 %v1554, %v1731
        %v1756 = vadd.f32 %v1555, %v1732
        %v1757 = vadd.f32 %v1556, %v1733
        %v1758 = vadd.f32 %v1557, %v1734
        %1759 = vrot.lane.b32.xlu0 %v586, 113
        %v1760 = vpop.permute.xlu0 %1759
        %1761 = vrot.lane.b32.xlu0 %v592, 113
        %v1762 = vpop.permute.xlu0 %1761
        %1763 = vrot.lane.b32.xlu0 %v598, 113
        %v1764 = vpop.permute.xlu0 %1763
        %1765 = vrot.lane.b32.xlu0 %v604, 113
        %v1766 = vpop.permute.xlu0 %1765
        %1767 = vrot.lane.b32.xlu0 %v610, 113
        %v1768 = vpop.permute.xlu0 %1767
        %1769 = vrot.lane.b32.xlu0 %v616, 113
        %v1770 = vpop.permute.xlu0 %1769
        %1771 = vrot.lane.b32.xlu0 %v622, 113
        %v1772 = vpop.permute.xlu0 %1771
        %1773 = vrot.lane.b32.xlu0 %v628, 113
        %v1774 = vpop.permute.xlu0 %1773
        %1775 = vrot.lane.b32.xlu0 %v634, 113
        %v1776 = vpop.permute.xlu0 %1775
        %1777 = vrot.lane.b32.xlu0 %v640, 113
        %v1778 = vpop.permute.xlu0 %1777
        %1779 = vrot.lane.b32.xlu0 %v646, 113
        %v1780 = vpop.permute.xlu0 %1779
        %1781 = vrot.lane.b32.xlu0 %v652, 113
        %v1782 = vpop.permute.xlu0 %1781
        %1783 = vrot.lane.b32.xlu0 %v588, 113
        %v1784 = vpop.permute.xlu0 %1783
        %1785 = vrot.lane.b32.xlu0 %v594, 113
        %v1786 = vpop.permute.xlu0 %1785
        %1787 = vrot.lane.b32.xlu0 %v600, 113
        %v1788 = vpop.permute.xlu0 %1787
        %1789 = vrot.lane.b32.xlu0 %v606, 113
        %v1790 = vpop.permute.xlu0 %1789
        %1791 = vrot.lane.b32.xlu0 %v612, 113
        %v1792 = vpop.permute.xlu0 %1791
        %1793 = vrot.lane.b32.xlu0 %v618, 113
        %v1794 = vpop.permute.xlu0 %1793
        %1795 = vrot.lane.b32.xlu0 %v624, 113
        %v1796 = vpop.permute.xlu0 %1795
        %1797 = vrot.lane.b32.xlu0 %v630, 113
        %v1798 = vpop.permute.xlu0 %1797
        %1799 = vrot.lane.b32.xlu0 %v636, 113
        %v1800 = vpop.permute.xlu0 %1799
        %1801 = vrot.lane.b32.xlu0 %v642, 113
        %v1802 = vpop.permute.xlu0 %1801
        %1803 = vrot.lane.b32.xlu0 %v648, 113
        %v1804 = vpop.permute.xlu0 %1803
        %1805 = vrot.lane.b32.xlu0 %v654, 113
        %v1806 = vpop.permute.xlu0 %1805
        %vm1807 = vcmp.lt.s32.totalorder %v801, 113
        %v1808 = vsel %vm1807, %v1760, %v1784
        %v1809 = vsel %vm1807, %v1762, %v1786
        %v1810 = vsel %vm1807, %v1764, %v1788
        %v1811 = vsel %vm1807, %v1766, %v1790
        %v1812 = vsel %vm1807, %v1768, %v1792
        %v1813 = vsel %vm1807, %v1770, %v1794
        %v1814 = vsel %vm1807, %v1772, %v1796
        %v1815 = vsel %vm1807, %v1774, %v1798
        %v1816 = vsel %vm1807, %v1776, %v1800
        %v1817 = vsel %vm1807, %v1778, %v1802
        %v1818 = vsel %vm1807, %v1780, %v1804
        %v1819 = vsel %vm1807, %v1782, %v1806
        %v1820 = vsel %vm1807, %v1784, %v1760
        %v1821 = vsel %vm1807, %v1786, %v1762
        %v1822 = vsel %vm1807, %v1788, %v1764
        %v1823 = vsel %vm1807, %v1790, %v1766
        %v1824 = vsel %vm1807, %v1792, %v1768
        %v1825 = vsel %vm1807, %v1794, %v1770
        %v1826 = vsel %vm1807, %v1796, %v1772
        %v1827 = vsel %vm1807, %v1798, %v1774
        %v1828 = vsel %vm1807, %v1800, %v1776
        %v1829 = vsel %vm1807, %v1802, %v1778
        %v1830 = vsel %vm1807, %v1804, %v1780
        %v1831 = vsel %vm1807, %v1806, %v1782
        %v1832 = vlaneseq
        %v1833 = vshrl.u32 %v1832, 7
        %v1834 = vsub.s32 6, %v1833
        %v1835 = vrot.slane %v391, %v1834
        %v1836 = vlaneseq
        %v1837 = vshrl.u32 %v1836, 7
        %v1838 = vsub.s32 6, %v1837
        %v1839 = vrot.slane %v392, %v1838
        %v1840 = vmul.f32 %v1835, %v1808
        %v1841 = vmul.f32 %v1839, %v1820
        %v1842 = vmul.f32 %v1835, %v1809
        %v1843 = vmul.f32 %v1839, %v1821
        %v1844 = vmul.f32 %v1835, %v1810
        %v1845 = vmul.f32 %v1839, %v1822
        %v1846 = vmul.f32 %v1835, %v1811
        %v1847 = vmul.f32 %v1839, %v1823
        %v1848 = vmul.f32 %v1835, %v1812
        %v1849 = vmul.f32 %v1839, %v1824
        %v1850 = vmul.f32 %v1835, %v1813
        %v1851 = vmul.f32 %v1839, %v1825
        %v1852 = vmul.f32 %v1835, %v1814
        %v1853 = vmul.f32 %v1839, %v1826
        %v1854 = vmul.f32 %v1835, %v1815
        %v1855 = vmul.f32 %v1839, %v1827
        %v1856 = vmul.f32 %v1835, %v1816
        %v1857 = vmul.f32 %v1839, %v1828
        %v1858 = vmul.f32 %v1835, %v1817
        %v1859 = vmul.f32 %v1839, %v1829
        %v1860 = vmul.f32 %v1835, %v1818
        %v1861 = vmul.f32 %v1839, %v1830
        %v1862 = vmul.f32 %v1835, %v1819
        %v1863 = vmul.f32 %v1839, %v1831
        %1864 = vset.pattern.permute.xlu0 6
        %1865 = vperm.xlu0 %1864, %v656
        %v1866 = vpop.permute.xlu0 %1865
        %1868 = vset.pattern.permute.xlu0 6
        %1869 = vperm.xlu0 %1868, %v657
        %v1870 = vpop.permute.xlu0 %1869
        %1872 = vset.pattern.permute.xlu0 6
        %1873 = vperm.xlu0 %1872, %v658
        %v1874 = vpop.permute.xlu0 %1873
        %1876 = vset.pattern.permute.xlu0 6
        %1877 = vperm.xlu0 %1876, %v659
        %v1878 = vpop.permute.xlu0 %1877
        %1880 = vset.pattern.permute.xlu0 6
        %1881 = vperm.xlu0 %1880, %v660
        %v1882 = vpop.permute.xlu0 %1881
        %1884 = vset.pattern.permute.xlu0 6
        %1885 = vperm.xlu0 %1884, %v661
        %v1886 = vpop.permute.xlu0 %1885
        %1888 = vset.pattern.permute.xlu0 6
        %1889 = vperm.xlu0 %1888, %v662
        %v1890 = vpop.permute.xlu0 %1889
        %1892 = vset.pattern.permute.xlu0 6
        %1893 = vperm.xlu0 %1892, %v663
        %v1894 = vpop.permute.xlu0 %1893
        %1896 = vset.pattern.permute.xlu0 6
        %1897 = vperm.xlu0 %1896, %v664
        %v1898 = vpop.permute.xlu0 %1897
        %1900 = vset.pattern.permute.xlu0 6
        %1901 = vperm.xlu0 %1900, %v665
        %v1902 = vpop.permute.xlu0 %1901
        %1904 = vset.pattern.permute.xlu0 6
        %1905 = vperm.xlu0 %1904, %v666
        %v1906 = vpop.permute.xlu0 %1905
        %1908 = vset.pattern.permute.xlu0 6
        %1909 = vperm.xlu0 %1908, %v667
        %v1910 = vpop.permute.xlu0 %1909
        %v1912 = vmul.f32 %v1866, %v1840
        %v1913 = vmul.f32 %v1866, %v1841
        %v1914 = vmul.f32 %v1870, %v1842
        %v1915 = vmul.f32 %v1870, %v1843
        %v1916 = vmul.f32 %v1874, %v1844
        %v1917 = vmul.f32 %v1874, %v1845
        %v1918 = vmul.f32 %v1878, %v1846
        %v1919 = vmul.f32 %v1878, %v1847
        %v1920 = vmul.f32 %v1882, %v1848
        %v1921 = vmul.f32 %v1882, %v1849
        %v1922 = vmul.f32 %v1886, %v1850
        %v1923 = vmul.f32 %v1886, %v1851
        %v1924 = vmul.f32 %v1890, %v1852
        %v1925 = vmul.f32 %v1890, %v1853
        %v1926 = vmul.f32 %v1894, %v1854
        %v1927 = vmul.f32 %v1894, %v1855
        %v1928 = vmul.f32 %v1898, %v1856
        %v1929 = vmul.f32 %v1898, %v1857
        %v1930 = vmul.f32 %v1902, %v1858
        %v1931 = vmul.f32 %v1902, %v1859
        %v1932 = vmul.f32 %v1906, %v1860
        %v1933 = vmul.f32 %v1906, %v1861
        %v1934 = vmul.f32 %v1910, %v1862
        %v1935 = vmul.f32 %v1910, %v1863
        %v1936 = vadd.f32 %v1735, %v1912
        %v1937 = vadd.f32 %v1736, %v1913
        %v1938 = vadd.f32 %v1737, %v1914
        %v1939 = vadd.f32 %v1738, %v1915
        %v1940 = vadd.f32 %v1739, %v1916
        %v1941 = vadd.f32 %v1740, %v1917
        %v1942 = vadd.f32 %v1741, %v1918
        %v1943 = vadd.f32 %v1742, %v1919
        %v1944 = vadd.f32 %v1743, %v1920
        %v1945 = vadd.f32 %v1744, %v1921
        %v1946 = vadd.f32 %v1745, %v1922
        %v1947 = vadd.f32 %v1746, %v1923
        %v1948 = vadd.f32 %v1747, %v1924
        %v1949 = vadd.f32 %v1748, %v1925
        %v1950 = vadd.f32 %v1749, %v1926
        %v1951 = vadd.f32 %v1750, %v1927
        %v1952 = vadd.f32 %v1751, %v1928
        %v1953 = vadd.f32 %v1752, %v1929
        %v1954 = vadd.f32 %v1753, %v1930
        %v1955 = vadd.f32 %v1754, %v1931
        %v1956 = vadd.f32 %v1755, %v1932
        %v1957 = vadd.f32 %v1756, %v1933
        %v1958 = vadd.f32 %v1757, %v1934
        %v1959 = vadd.f32 %v1758, %v1935
        %1960 = vrot.lane.b32.xlu0 %v586, 112
        %v1961 = vpop.permute.xlu0 %1960
        %1962 = vrot.lane.b32.xlu0 %v592, 112
        %v1963 = vpop.permute.xlu0 %1962
        %1964 = vrot.lane.b32.xlu0 %v598, 112
        %v1965 = vpop.permute.xlu0 %1964
        %1966 = vrot.lane.b32.xlu0 %v604, 112
        %v1967 = vpop.permute.xlu0 %1966
        %1968 = vrot.lane.b32.xlu0 %v610, 112
        %v1969 = vpop.permute.xlu0 %1968
        %1970 = vrot.lane.b32.xlu0 %v616, 112
        %v1971 = vpop.permute.xlu0 %1970
        %1972 = vrot.lane.b32.xlu0 %v622, 112
        %v1973 = vpop.permute.xlu0 %1972
        %1974 = vrot.lane.b32.xlu0 %v628, 112
        %v1975 = vpop.permute.xlu0 %1974
        %1976 = vrot.lane.b32.xlu0 %v634, 112
        %v1977 = vpop.permute.xlu0 %1976
        %1978 = vrot.lane.b32.xlu0 %v640, 112
        %v1979 = vpop.permute.xlu0 %1978
        %1980 = vrot.lane.b32.xlu0 %v646, 112
        %v1981 = vpop.permute.xlu0 %1980
        %1982 = vrot.lane.b32.xlu0 %v652, 112
        %v1983 = vpop.permute.xlu0 %1982
        %1984 = vrot.lane.b32.xlu0 %v588, 112
        %v1985 = vpop.permute.xlu0 %1984
        %1986 = vrot.lane.b32.xlu0 %v594, 112
        %v1987 = vpop.permute.xlu0 %1986
        %1988 = vrot.lane.b32.xlu0 %v600, 112
        %v1989 = vpop.permute.xlu0 %1988
        %1990 = vrot.lane.b32.xlu0 %v606, 112
        %v1991 = vpop.permute.xlu0 %1990
        %1992 = vrot.lane.b32.xlu0 %v612, 112
        %v1993 = vpop.permute.xlu0 %1992
        %1994 = vrot.lane.b32.xlu0 %v618, 112
        %v1995 = vpop.permute.xlu0 %1994
        %1996 = vrot.lane.b32.xlu0 %v624, 112
        %v1997 = vpop.permute.xlu0 %1996
        %1998 = vrot.lane.b32.xlu0 %v630, 112
        %v1999 = vpop.permute.xlu0 %1998
        %2000 = vrot.lane.b32.xlu0 %v636, 112
        %v2001 = vpop.permute.xlu0 %2000
        %2002 = vrot.lane.b32.xlu0 %v642, 112
        %v2003 = vpop.permute.xlu0 %2002
        %2004 = vrot.lane.b32.xlu0 %v648, 112
        %v2005 = vpop.permute.xlu0 %2004
        %2006 = vrot.lane.b32.xlu0 %v654, 112
        %v2007 = vpop.permute.xlu0 %2006
        %vm2008 = vcmp.lt.s32.totalorder %v801, 112
        %v2009 = vsel %vm2008, %v1961, %v1985
        %v2010 = vsel %vm2008, %v1963, %v1987
        %v2011 = vsel %vm2008, %v1965, %v1989
        %v2012 = vsel %vm2008, %v1967, %v1991
        %v2013 = vsel %vm2008, %v1969, %v1993
        %v2014 = vsel %vm2008, %v1971, %v1995
        %v2015 = vsel %vm2008, %v1973, %v1997
        %v2016 = vsel %vm2008, %v1975, %v1999
        %v2017 = vsel %vm2008, %v1977, %v2001
        %v2018 = vsel %vm2008, %v1979, %v2003
        %v2019 = vsel %vm2008, %v1981, %v2005
        %v2020 = vsel %vm2008, %v1983, %v2007
        %v2021 = vsel %vm2008, %v1985, %v1961
        %v2022 = vsel %vm2008, %v1987, %v1963
        %v2023 = vsel %vm2008, %v1989, %v1965
        %v2024 = vsel %vm2008, %v1991, %v1967
        %v2025 = vsel %vm2008, %v1993, %v1969
        %v2026 = vsel %vm2008, %v1995, %v1971
        %v2027 = vsel %vm2008, %v1997, %v1973
        %v2028 = vsel %vm2008, %v1999, %v1975
        %v2029 = vsel %vm2008, %v2001, %v1977
        %v2030 = vsel %vm2008, %v2003, %v1979
        %v2031 = vsel %vm2008, %v2005, %v1981
        %v2032 = vsel %vm2008, %v2007, %v1983
        %v2033 = vlaneseq
        %v2034 = vshrl.u32 %v2033, 7
        %v2035 = vsub.s32 7, %v2034
        %v2036 = vrot.slane %v391, %v2035
        %v2037 = vlaneseq
        %v2038 = vshrl.u32 %v2037, 7
        %v2039 = vsub.s32 7, %v2038
        %v2040 = vrot.slane %v392, %v2039
        %v2041 = vmul.f32 %v2036, %v2009
        %v2042 = vmul.f32 %v2040, %v2021
        %v2043 = vmul.f32 %v2036, %v2010
        %v2044 = vmul.f32 %v2040, %v2022
        %v2045 = vmul.f32 %v2036, %v2011
        %v2046 = vmul.f32 %v2040, %v2023
        %v2047 = vmul.f32 %v2036, %v2012
        %v2048 = vmul.f32 %v2040, %v2024
        %v2049 = vmul.f32 %v2036, %v2013
        %v2050 = vmul.f32 %v2040, %v2025
        %v2051 = vmul.f32 %v2036, %v2014
        %v2052 = vmul.f32 %v2040, %v2026
        %v2053 = vmul.f32 %v2036, %v2015
        %v2054 = vmul.f32 %v2040, %v2027
        %v2055 = vmul.f32 %v2036, %v2016
        %v2056 = vmul.f32 %v2040, %v2028
        %v2057 = vmul.f32 %v2036, %v2017
        %v2058 = vmul.f32 %v2040, %v2029
        %v2059 = vmul.f32 %v2036, %v2018
        %v2060 = vmul.f32 %v2040, %v2030
        %v2061 = vmul.f32 %v2036, %v2019
        %v2062 = vmul.f32 %v2040, %v2031
        %v2063 = vmul.f32 %v2036, %v2020
        %v2064 = vmul.f32 %v2040, %v2032
        %2065 = vset.pattern.permute.xlu0 7
        %2066 = vperm.xlu0 %2065, %v656
        %v2067 = vpop.permute.xlu0 %2066
        %2069 = vset.pattern.permute.xlu0 7
        %2070 = vperm.xlu0 %2069, %v657
        %v2071 = vpop.permute.xlu0 %2070
        %2073 = vset.pattern.permute.xlu0 7
        %2074 = vperm.xlu0 %2073, %v658
        %v2075 = vpop.permute.xlu0 %2074
        %2077 = vset.pattern.permute.xlu0 7
        %2078 = vperm.xlu0 %2077, %v659
        %v2079 = vpop.permute.xlu0 %2078
        %2081 = vset.pattern.permute.xlu0 7
        %2082 = vperm.xlu0 %2081, %v660
        %v2083 = vpop.permute.xlu0 %2082
        %2085 = vset.pattern.permute.xlu0 7
        %2086 = vperm.xlu0 %2085, %v661
        %v2087 = vpop.permute.xlu0 %2086
        %2089 = vset.pattern.permute.xlu0 7
        %2090 = vperm.xlu0 %2089, %v662
        %v2091 = vpop.permute.xlu0 %2090
        %2093 = vset.pattern.permute.xlu0 7
        %2094 = vperm.xlu0 %2093, %v663
        %v2095 = vpop.permute.xlu0 %2094
        %2097 = vset.pattern.permute.xlu0 7
        %2098 = vperm.xlu0 %2097, %v664
        %v2099 = vpop.permute.xlu0 %2098
        %2101 = vset.pattern.permute.xlu0 7
        %2102 = vperm.xlu0 %2101, %v665
        %v2103 = vpop.permute.xlu0 %2102
        %2105 = vset.pattern.permute.xlu0 7
        %2106 = vperm.xlu0 %2105, %v666
        %v2107 = vpop.permute.xlu0 %2106
        %2109 = vset.pattern.permute.xlu0 7
        %2110 = vperm.xlu0 %2109, %v667
        %v2111 = vpop.permute.xlu0 %2110
        %v2113 = vmul.f32 %v2067, %v2041
        %v2114 = vmul.f32 %v2067, %v2042
        %v2115 = vmul.f32 %v2071, %v2043
        %v2116 = vmul.f32 %v2071, %v2044
        %v2117 = vmul.f32 %v2075, %v2045
        %v2118 = vmul.f32 %v2075, %v2046
        %v2119 = vmul.f32 %v2079, %v2047
        %v2120 = vmul.f32 %v2079, %v2048
        %v2121 = vmul.f32 %v2083, %v2049
        %v2122 = vmul.f32 %v2083, %v2050
        %v2123 = vmul.f32 %v2087, %v2051
        %v2124 = vmul.f32 %v2087, %v2052
        %v2125 = vmul.f32 %v2091, %v2053
        %v2126 = vmul.f32 %v2091, %v2054
        %v2127 = vmul.f32 %v2095, %v2055
        %v2128 = vmul.f32 %v2095, %v2056
        %v2129 = vmul.f32 %v2099, %v2057
        %v2130 = vmul.f32 %v2099, %v2058
        %v2131 = vmul.f32 %v2103, %v2059
        %v2132 = vmul.f32 %v2103, %v2060
        %v2133 = vmul.f32 %v2107, %v2061
        %v2134 = vmul.f32 %v2107, %v2062
        %v2135 = vmul.f32 %v2111, %v2063
        %v2136 = vmul.f32 %v2111, %v2064
        %v2137 = vadd.f32 %v1936, %v2113
        %v2138 = vadd.f32 %v1937, %v2114
        %v2139 = vadd.f32 %v1938, %v2115
        %v2140 = vadd.f32 %v1939, %v2116
        %v2141 = vadd.f32 %v1940, %v2117
        %v2142 = vadd.f32 %v1941, %v2118
        %v2143 = vadd.f32 %v1942, %v2119
        %v2144 = vadd.f32 %v1943, %v2120
        %v2145 = vadd.f32 %v1944, %v2121
        %v2146 = vadd.f32 %v1945, %v2122
        %v2147 = vadd.f32 %v1946, %v2123
        %v2148 = vadd.f32 %v1947, %v2124
        %v2149 = vadd.f32 %v1948, %v2125
        %v2150 = vadd.f32 %v1949, %v2126
        %v2151 = vadd.f32 %v1950, %v2127
        %v2152 = vadd.f32 %v1951, %v2128
        %v2153 = vadd.f32 %v1952, %v2129
        %v2154 = vadd.f32 %v1953, %v2130
        %v2155 = vadd.f32 %v1954, %v2131
        %v2156 = vadd.f32 %v1955, %v2132
        %v2157 = vadd.f32 %v1956, %v2133
        %v2158 = vadd.f32 %v1957, %v2134
        %v2159 = vadd.f32 %v1958, %v2135
        %v2160 = vadd.f32 %v1959, %v2136
        %2161 = vrot.lane.b32.xlu0 %v586, 111
        %v2162 = vpop.permute.xlu0 %2161
        %2163 = vrot.lane.b32.xlu0 %v592, 111
        %v2164 = vpop.permute.xlu0 %2163
        %2165 = vrot.lane.b32.xlu0 %v598, 111
        %v2166 = vpop.permute.xlu0 %2165
        %2167 = vrot.lane.b32.xlu0 %v604, 111
        %v2168 = vpop.permute.xlu0 %2167
        %2169 = vrot.lane.b32.xlu0 %v610, 111
        %v2170 = vpop.permute.xlu0 %2169
        %2171 = vrot.lane.b32.xlu0 %v616, 111
        %v2172 = vpop.permute.xlu0 %2171
        %2173 = vrot.lane.b32.xlu0 %v622, 111
        %v2174 = vpop.permute.xlu0 %2173
        %2175 = vrot.lane.b32.xlu0 %v628, 111
        %v2176 = vpop.permute.xlu0 %2175
        %2177 = vrot.lane.b32.xlu0 %v634, 111
        %v2178 = vpop.permute.xlu0 %2177
        %2179 = vrot.lane.b32.xlu0 %v640, 111
        %v2180 = vpop.permute.xlu0 %2179
        %2181 = vrot.lane.b32.xlu0 %v646, 111
        %v2182 = vpop.permute.xlu0 %2181
        %2183 = vrot.lane.b32.xlu0 %v652, 111
        %v2184 = vpop.permute.xlu0 %2183
        %2185 = vrot.lane.b32.xlu0 %v588, 111
        %v2186 = vpop.permute.xlu0 %2185
        %2187 = vrot.lane.b32.xlu0 %v594, 111
        %v2188 = vpop.permute.xlu0 %2187
        %2189 = vrot.lane.b32.xlu0 %v600, 111
        %v2190 = vpop.permute.xlu0 %2189
        %2191 = vrot.lane.b32.xlu0 %v606, 111
        %v2192 = vpop.permute.xlu0 %2191
        %2193 = vrot.lane.b32.xlu0 %v612, 111
        %v2194 = vpop.permute.xlu0 %2193
        %2195 = vrot.lane.b32.xlu0 %v618, 111
        %v2196 = vpop.permute.xlu0 %2195
        %2197 = vrot.lane.b32.xlu0 %v624, 111
        %v2198 = vpop.permute.xlu0 %2197
        %2199 = vrot.lane.b32.xlu0 %v630, 111
        %v2200 = vpop.permute.xlu0 %2199
        %2201 = vrot.lane.b32.xlu0 %v636, 111
        %v2202 = vpop.permute.xlu0 %2201
        %2203 = vrot.lane.b32.xlu0 %v642, 111
        %v2204 = vpop.permute.xlu0 %2203
        %2205 = vrot.lane.b32.xlu0 %v648, 111
        %v2206 = vpop.permute.xlu0 %2205
        %2207 = vrot.lane.b32.xlu0 %v654, 111
        %v2208 = vpop.permute.xlu0 %2207
        %vm2209 = vcmp.lt.s32.totalorder %v801, 111
        %v2210 = vsel %vm2209, %v2162, %v2186
        %v2211 = vsel %vm2209, %v2164, %v2188
        %v2212 = vsel %vm2209, %v2166, %v2190
        %v2213 = vsel %vm2209, %v2168, %v2192
        %v2214 = vsel %vm2209, %v2170, %v2194
        %v2215 = vsel %vm2209, %v2172, %v2196
        %v2216 = vsel %vm2209, %v2174, %v2198
        %v2217 = vsel %vm2209, %v2176, %v2200
        %v2218 = vsel %vm2209, %v2178, %v2202
        %v2219 = vsel %vm2209, %v2180, %v2204
        %v2220 = vsel %vm2209, %v2182, %v2206
        %v2221 = vsel %vm2209, %v2184, %v2208
        %v2222 = vsel %vm2209, %v2186, %v2162
        %v2223 = vsel %vm2209, %v2188, %v2164
        %v2224 = vsel %vm2209, %v2190, %v2166
        %v2225 = vsel %vm2209, %v2192, %v2168
        %v2226 = vsel %vm2209, %v2194, %v2170
        %v2227 = vsel %vm2209, %v2196, %v2172
        %v2228 = vsel %vm2209, %v2198, %v2174
        %v2229 = vsel %vm2209, %v2200, %v2176
        %v2230 = vsel %vm2209, %v2202, %v2178
        %v2231 = vsel %vm2209, %v2204, %v2180
        %v2232 = vsel %vm2209, %v2206, %v2182
        %v2233 = vsel %vm2209, %v2208, %v2184
        %v2234 = vlaneseq
        %v2235 = vshrl.u32 %v2234, 7
        %v2236 = vsub.s32 0, %v2235
        %v2237 = vrot.slane %v393, %v2236
        %v2238 = vlaneseq
        %v2239 = vshrl.u32 %v2238, 7
        %v2240 = vsub.s32 0, %v2239
        %v2241 = vrot.slane %v394, %v2240
        %v2242 = vmul.f32 %v2237, %v2210
        %v2243 = vmul.f32 %v2241, %v2222
        %v2244 = vmul.f32 %v2237, %v2211
        %v2245 = vmul.f32 %v2241, %v2223
        %v2246 = vmul.f32 %v2237, %v2212
        %v2247 = vmul.f32 %v2241, %v2224
        %v2248 = vmul.f32 %v2237, %v2213
        %v2249 = vmul.f32 %v2241, %v2225
        %v2250 = vmul.f32 %v2237, %v2214
        %v2251 = vmul.f32 %v2241, %v2226
        %v2252 = vmul.f32 %v2237, %v2215
        %v2253 = vmul.f32 %v2241, %v2227
        %v2254 = vmul.f32 %v2237, %v2216
        %v2255 = vmul.f32 %v2241, %v2228
        %v2256 = vmul.f32 %v2237, %v2217
        %v2257 = vmul.f32 %v2241, %v2229
        %v2258 = vmul.f32 %v2237, %v2218
        %v2259 = vmul.f32 %v2241, %v2230
        %v2260 = vmul.f32 %v2237, %v2219
        %v2261 = vmul.f32 %v2241, %v2231
        %v2262 = vmul.f32 %v2237, %v2220
        %v2263 = vmul.f32 %v2241, %v2232
        %v2264 = vmul.f32 %v2237, %v2221
        %v2265 = vmul.f32 %v2241, %v2233
        %2266 = vset.pattern.permute.xlu0 8
        %2267 = vperm.xlu0 %2266, %v656
        %v2268 = vpop.permute.xlu0 %2267
        %2270 = vset.pattern.permute.xlu0 8
        %2271 = vperm.xlu0 %2270, %v657
        %v2272 = vpop.permute.xlu0 %2271
        %2274 = vset.pattern.permute.xlu0 8
        %2275 = vperm.xlu0 %2274, %v658
        %v2276 = vpop.permute.xlu0 %2275
        %2278 = vset.pattern.permute.xlu0 8
        %2279 = vperm.xlu0 %2278, %v659
        %v2280 = vpop.permute.xlu0 %2279
        %2282 = vset.pattern.permute.xlu0 8
        %2283 = vperm.xlu0 %2282, %v660
        %v2284 = vpop.permute.xlu0 %2283
        %2286 = vset.pattern.permute.xlu0 8
        %2287 = vperm.xlu0 %2286, %v661
        %v2288 = vpop.permute.xlu0 %2287
        %2290 = vset.pattern.permute.xlu0 8
        %2291 = vperm.xlu0 %2290, %v662
        %v2292 = vpop.permute.xlu0 %2291
        %2294 = vset.pattern.permute.xlu0 8
        %2295 = vperm.xlu0 %2294, %v663
        %v2296 = vpop.permute.xlu0 %2295
        %2298 = vset.pattern.permute.xlu0 8
        %2299 = vperm.xlu0 %2298, %v664
        %v2300 = vpop.permute.xlu0 %2299
        %2302 = vset.pattern.permute.xlu0 8
        %2303 = vperm.xlu0 %2302, %v665
        %v2304 = vpop.permute.xlu0 %2303
        %2306 = vset.pattern.permute.xlu0 8
        %2307 = vperm.xlu0 %2306, %v666
        %v2308 = vpop.permute.xlu0 %2307
        %2310 = vset.pattern.permute.xlu0 8
        %2311 = vperm.xlu0 %2310, %v667
        %v2312 = vpop.permute.xlu0 %2311
        %v2314 = vmul.f32 %v2268, %v2242
        %v2315 = vmul.f32 %v2268, %v2243
        %v2316 = vmul.f32 %v2272, %v2244
        %v2317 = vmul.f32 %v2272, %v2245
        %v2318 = vmul.f32 %v2276, %v2246
        %v2319 = vmul.f32 %v2276, %v2247
        %v2320 = vmul.f32 %v2280, %v2248
        %v2321 = vmul.f32 %v2280, %v2249
        %v2322 = vmul.f32 %v2284, %v2250
        %v2323 = vmul.f32 %v2284, %v2251
        %v2324 = vmul.f32 %v2288, %v2252
        %v2325 = vmul.f32 %v2288, %v2253
        %v2326 = vmul.f32 %v2292, %v2254
        %v2327 = vmul.f32 %v2292, %v2255
        %v2328 = vmul.f32 %v2296, %v2256
        %v2329 = vmul.f32 %v2296, %v2257
        %v2330 = vmul.f32 %v2300, %v2258
        %v2331 = vmul.f32 %v2300, %v2259
        %v2332 = vmul.f32 %v2304, %v2260
        %v2333 = vmul.f32 %v2304, %v2261
        %v2334 = vmul.f32 %v2308, %v2262
        %v2335 = vmul.f32 %v2308, %v2263
        %v2336 = vmul.f32 %v2312, %v2264
        %v2337 = vmul.f32 %v2312, %v2265
        %v2338 = vadd.f32 %v2137, %v2314
        %v2339 = vadd.f32 %v2138, %v2315
        %v2340 = vadd.f32 %v2139, %v2316
        %v2341 = vadd.f32 %v2140, %v2317
        %v2342 = vadd.f32 %v2141, %v2318
        %v2343 = vadd.f32 %v2142, %v2319
        %v2344 = vadd.f32 %v2143, %v2320
        %v2345 = vadd.f32 %v2144, %v2321
        %v2346 = vadd.f32 %v2145, %v2322
        %v2347 = vadd.f32 %v2146, %v2323
        %v2348 = vadd.f32 %v2147, %v2324
        %v2349 = vadd.f32 %v2148, %v2325
        %v2350 = vadd.f32 %v2149, %v2326
        %v2351 = vadd.f32 %v2150, %v2327
        %v2352 = vadd.f32 %v2151, %v2328
        %v2353 = vadd.f32 %v2152, %v2329
        %v2354 = vadd.f32 %v2153, %v2330
        %v2355 = vadd.f32 %v2154, %v2331
        %v2356 = vadd.f32 %v2155, %v2332
        %v2357 = vadd.f32 %v2156, %v2333
        %v2358 = vadd.f32 %v2157, %v2334
        %v2359 = vadd.f32 %v2158, %v2335
        %v2360 = vadd.f32 %v2159, %v2336
        %v2361 = vadd.f32 %v2160, %v2337
        %v2362 = vmul.f32 %v2338, %v2338
        %v2363 = vmul.f32 %v2339, %v2339
        %v2364 = vmul.f32 %v2340, %v2340
        %v2365 = vmul.f32 %v2341, %v2341
        %v2366 = vmul.f32 %v2342, %v2342
        %v2367 = vmul.f32 %v2343, %v2343
        %v2368 = vmul.f32 %v2344, %v2344
        %v2369 = vmul.f32 %v2345, %v2345
        %v2370 = vadd.f32 %v2362, %v2363
        %2371 = vadd.xlane.f32.xlu0 %v2370
        %v2372 = vpop.xlane.xlu0 %2371
        %v2373 = vadd.f32 %v2364, %v2365
        %2374 = vadd.xlane.f32.xlu0 %v2373
        %v2375 = vpop.xlane.xlu0 %2374
        %v2376 = vadd.f32 %v2366, %v2367
        %2377 = vadd.xlane.f32.xlu0 %v2376
        %v2378 = vpop.xlane.xlu0 %2377
        %v2379 = vadd.f32 %v2368, %v2369
        %2380 = vadd.xlane.f32.xlu0 %v2379
        %v2381 = vpop.xlane.xlu0 %2380
        %v2382 = vmax.f32 %v2372, 1e-24
        %v2383 = vmax.f32 %v2375, 1e-24
        %v2384 = vmax.f32 %v2378, 1e-24
        %v2385 = vmax.f32 %v2381, 1e-24
        %v2386 = vrsqrt.pop %v2382
        %v2387 = vrsqrt.pop %v2383
        %v2388 = vrsqrt.pop %v2384
        %v2389 = vrsqrt.pop %v2385
        %v2390 = vld [vmem:[%s6] sm:$0xff]
        %v2391 = vld [vmem:[%s6 + $0x8] sm:$0xff]
        %v2392 = vld [vmem:[%s6 + $0x10] sm:$0xff]
        %v2393 = vld [vmem:[%s6 + $0x18] sm:$0xff]
        %v2394 = vmul.f32 %v2386, %v2390
        %v2395 = vmul.f32 %v2387, %v2391
        %v2396 = vmul.f32 %v2388, %v2392
        %v2397 = vmul.f32 %v2389, %v2393
        %v2398 = vmul.f32 %v2346, %v2346
        %v2399 = vmul.f32 %v2347, %v2347
        %v2400 = vmul.f32 %v2348, %v2348
        %v2401 = vmul.f32 %v2349, %v2349
        %v2402 = vmul.f32 %v2350, %v2350
        %v2403 = vmul.f32 %v2351, %v2351
        %v2404 = vmul.f32 %v2352, %v2352
        %v2405 = vmul.f32 %v2353, %v2353
        %v2406 = vadd.f32 %v2398, %v2399
        %2407 = vadd.xlane.f32.xlu0 %v2406
        %v2408 = vpop.xlane.xlu0 %2407
        %v2409 = vadd.f32 %v2400, %v2401
        %2410 = vadd.xlane.f32.xlu0 %v2409
        %v2411 = vpop.xlane.xlu0 %2410
        %v2412 = vadd.f32 %v2402, %v2403
        %2413 = vadd.xlane.f32.xlu0 %v2412
        %v2414 = vpop.xlane.xlu0 %2413
        %v2415 = vadd.f32 %v2404, %v2405
        %2416 = vadd.xlane.f32.xlu0 %v2415
        %v2417 = vpop.xlane.xlu0 %2416
        %v2418 = vmax.f32 %v2408, 1e-24
        %v2419 = vmax.f32 %v2411, 1e-24
        %v2420 = vmax.f32 %v2414, 1e-24
        %v2421 = vmax.f32 %v2417, 1e-24
        %v2422 = vrsqrt.pop %v2418
        %v2423 = vrsqrt.pop %v2419
        %v2424 = vrsqrt.pop %v2420
        %v2425 = vrsqrt.pop %v2421
        %2427 = vset.pattern.permute.xlu0 0
        %2428 = vperm.xlu0 %2427, %v2394
        %v2429 = vpop.permute.xlu0 %2428
        %2432 = vset.pattern.permute.xlu0 0
        %2433 = vperm.xlu0 %2432, %v2395
        %v2434 = vpop.permute.xlu0 %2433
        %2437 = vset.pattern.permute.xlu0 0
        %2438 = vperm.xlu0 %2437, %v2396
        %v2439 = vpop.permute.xlu0 %2438
        %2442 = vset.pattern.permute.xlu0 0
        %2443 = vperm.xlu0 %2442, %v2397
        %v2444 = vpop.permute.xlu0 %2443
        %v2446 = vmul.f32 %v2338, %v2429
        %v2447 = vmul.f32 %v2339, %v2429
        %v2448 = vmul.f32 %v2340, %v2434
        %v2449 = vmul.f32 %v2341, %v2434
        %v2450 = vmul.f32 %v2342, %v2439
        %v2451 = vmul.f32 %v2343, %v2439
        %v2452 = vmul.f32 %v2344, %v2444
        %v2453 = vmul.f32 %v2345, %v2444
        %v2454 = vmul.f32 %v2346, %v2422
        %v2455 = vmul.f32 %v2347, %v2422
        %v2456 = vmul.f32 %v2348, %v2423
        %v2457 = vmul.f32 %v2349, %v2423
        %v2458 = vmul.f32 %v2350, %v2424
        %v2459 = vmul.f32 %v2351, %v2424
        %v2460 = vmul.f32 %v2352, %v2425
        %v2461 = vmul.f32 %v2353, %v2425
        %2462 = vmatprep.subr.mxu0 %v2455
        %2463 = vmatpush1.xpose.msra.mxu0 %v2454
        %2464 = vmatprep.subr.mxu0 %v2457
        %2465 = vmatpush1.xpose.msra.mxu0 %v2456
        %2466 = vmatprep.subr.mxu0 %v2459
        %2467 = vmatpush1.xpose.msra.mxu0 %v2458
        %2468 = vmatprep.subr.mxu0 %v2461
        %2469 = vmatpush1.xpose.msra.mxu0 %v2460
        %2470 = vmatprep.subr.mxu0 0.0
        %2471 = vmatpush1.xpose.msra.mxu0 0.0
        %2472 = vmatprep.subr.mxu0 0.0
        %2473 = vmatpush1.xpose.msra.mxu0 0.0
        %2474 = vmatprep.subr.mxu0 0.0
        %2475 = vmatpush1.xpose.msra.mxu0 0.0
        %2476 = vmatprep.subr.mxu0 0.0
        %2477 = vmatpush1.xpose.msra.mxu0 0.0
        %2478 = vmatprep.subr.mxu0 0.0
        %2479 = vmatpush1.xpose.msra.mxu0 0.0
        %2480 = vmatprep.subr.mxu0 0.0
        %2481 = vmatpush1.xpose.msra.mxu0 0.0
        %2482 = vmatprep.subr.mxu0 0.0
        %2483 = vmatpush1.xpose.msra.mxu0 0.0
        %2484 = vmatprep.subr.mxu0 0.0
        %2485 = vmatpush1.xpose.msra.mxu0 0.0
        %2486 = vmatprep.subr.mxu0 0.0
        %2487 = vmatpush1.xpose.msra.mxu0 0.0
        %2488 = vmatprep.subr.mxu0 0.0
        %2489 = vmatpush1.xpose.msra.mxu0 0.0
        %2490 = vmatprep.subr.mxu0 0.0
        %2491 = vmatpush1.xpose.msra.mxu0 0.0
        %2492 = vmatprep.subr.mxu0 0.0
        %2493 = vmatpush1.xpose.msra.mxu0 0.0
        %2494 = vmatprep.subr.mxu0 0.0
        %2495 = vmatpush1.xpose.msra.mxu0 0.0
        %2496 = vmatprep.subr.mxu0 0.0
        %2497 = vmatpush1.xpose.msra.mxu0 0.0
        %2498 = vmatprep.subr.mxu0 0.0
        %2499 = vmatpush1.xpose.msra.mxu0 0.0
        %2500 = vmatprep.subr.mxu0 0.0
        %2501 = vmatpush1.xpose.msra.mxu0 0.0
        %2502 = vmatprep.subr.mxu0 0.0
        %2503 = vmatpush1.xpose.msra.mxu0 0.0
        %2504 = vmatprep.subr.mxu0 0.0
        %2505 = vmatpush1.xpose.msra.mxu0 0.0
        %2506 = vmatprep.subr.mxu0 0.0
        %2507 = vmatpush1.xpose.msra.mxu0 0.0
        %2508 = vmatprep.subr.mxu0 0.0
        %2509 = vmatpush1.xpose.msra.mxu0 0.0
        %2510 = vmatprep.subr.mxu0 0.0
        %2511 = vmatpush1.xpose.msra.mxu0 0.0
        %2512 = vmatprep.subr.mxu0 0.0
        %2513 = vmatpush1.xpose.msra.mxu0 0.0
        %2514 = vmatprep.subr.mxu0 0.0
        %2515 = vmatpush1.xpose.msra.mxu0 0.0
        %2516 = vmatprep.subr.mxu0 0.0
        %2517 = vmatpush1.xpose.msra.mxu0 0.0
        %2518 = vmatprep.subr.mxu0 0.0
        %2519 = vmatpush1.xpose.msra.mxu0 0.0
        %2520 = vmatprep.subr.mxu0 0.0
        %2521 = vmatpush1.xpose.msra.mxu0 0.0
        %2522 = vmatprep.subr.mxu0 0.0
        %2523 = vmatpush1.xpose.msra.mxu0 0.0
        %2524 = vmatprep.subr.mxu0 0.0
        %2525 = vmatpush1.xpose.msra.mxu0 0.0
        %2526 = vmatprep.mubr.f32.mxu0 %v2447
        %2527 = vmatmul.mubr.f32.gmra.mrb[0].mxu0 %v2446
        %v2528 = vpop.f32.mrb[0].mxu0
        %v2529 = vadd.f32 0.0, %v2528
        %v2530 = vpop.f32.mrb[0].mxu0
        %2531 = vmatprep.mubr.f32.mxu0 %v2449
        %2532 = vmatmul.mubr.f32.gmra.mrb[0].mxu0 %v2448
        %v2533 = vpop.f32.mrb[0].mxu0
        %v2534 = vadd.f32 0.0, %v2533
        %v2535 = vpop.f32.mrb[0].mxu0
        %2536 = vmatprep.mubr.f32.mxu0 %v2451
        %2537 = vmatmul.mubr.f32.gmra.mrb[0].mxu0 %v2450
        %v2538 = vpop.f32.mrb[0].mxu0
        %v2539 = vadd.f32 0.0, %v2538
        %v2540 = vpop.f32.mrb[0].mxu0
        %2541 = vmatprep.mubr.f32.mxu0 %v2453
        %2542 = vmatmul.mubr.f32.gmra.mrb[0].mxu0 %v2452
        %v2543 = vpop.f32.mrb[0].mxu0
        %v2544 = vadd.f32 0.0, %v2543
        %v2545 = vpop.f32.mrb[0].mxu0
        %2546 = vdwg.mxu0
        %v2547 = vld [vmem:[%s3] sm:$0xff]
        %v2548 = vld [vmem:[%s3 + $0x8] sm:$0xff]
        %v2549 = vld [vmem:[%s3 + $0x10] sm:$0xff]
        %v2550 = vld [vmem:[%s3 + $0x18] sm:$0xff]
        %vm2551 = vcmp.gt.f32.partialorder %v2547, 0.5
        %vm2552 = vcmp.gt.f32.partialorder %v2548, 0.5
        %vm2553 = vcmp.gt.f32.partialorder %v2549, 0.5
        %vm2554 = vcmp.gt.f32.partialorder %v2550, 0.5
        %v2555 = vsel %vm2551, %v2529, -1e+30
        %v2556 = vsel %vm2552, %v2534, -1e+30
        %v2557 = vsel %vm2553, %v2539, -1e+30
        %v2558 = vsel %vm2554, %v2544, -1e+30
        %vm2559 = vcmask 261120
        %v2560 = vsel %vm2559, %v2555, -inf
        %2561 = vmax.xlane.f32.xlu0 %v2560
        %v2562 = vpop.xlane.xlu0 %2561
        %v2563 = vsel %vm2559, %v2556, -inf
        %2564 = vmax.xlane.f32.xlu0 %v2563
        %v2565 = vpop.xlane.xlu0 %2564
        %v2566 = vsel %vm2559, %v2557, -inf
        %2567 = vmax.xlane.f32.xlu0 %v2566
        %v2568 = vpop.xlane.xlu0 %2567
        %v2569 = vsel %vm2559, %v2558, -inf
        %2570 = vmax.xlane.f32.xlu0 %v2569
        %v2571 = vpop.xlane.xlu0 %2570
        %v2572 = vsub.f32 %v2555, %v2562
        %v2573 = vsub.f32 %v2556, %v2565
        %v2574 = vsub.f32 %v2557, %v2568
        %v2575 = vsub.f32 %v2558, %v2571
        %v2576 = vmul.f32 %v2572, 1.442695
        %v2577 = vpow.pop %v2576
        %v2578 = vmul.f32 %v2573, 1.442695
        %v2579 = vpow.pop %v2578
        %v2580 = vmul.f32 %v2574, 1.442695
        %v2581 = vpow.pop %v2580
        %v2582 = vmul.f32 %v2575, 1.442695
        %v2583 = vpow.pop %v2582
        %v2584 = vsel %vm2559, %v2577, 0.0
        %2585 = vadd.xlane.f32.xlu0 %v2584
        %v2586 = vpop.xlane.xlu0 %2585
        %v2587 = vsel %vm2559, %v2579, 0.0
        %2588 = vadd.xlane.f32.xlu0 %v2587
        %v2589 = vpop.xlane.xlu0 %2588
        %v2590 = vsel %vm2559, %v2581, 0.0
        %2591 = vadd.xlane.f32.xlu0 %v2590
        %v2592 = vpop.xlane.xlu0 %2591
        %v2593 = vsel %vm2559, %v2583, 0.0
        %2594 = vadd.xlane.f32.xlu0 %v2593
        %v2595 = vpop.xlane.xlu0 %2594
        %v2596 = vrcp.pop %v2586
        %v2597 = vmul.f32 %v2577, %v2596
        %v2598 = vrcp.pop %v2589
        %v2599 = vmul.f32 %v2579, %v2598
        %v2600 = vrcp.pop %v2592
        %v2601 = vmul.f32 %v2581, %v2600
        %v2602 = vrcp.pop %v2595
        %v2603 = vmul.f32 %v2583, %v2602
        %v2604 = vld [vmem:[%s7] sm:$0xff]
        %v2605 = vld [vmem:[%s7 + $0x8] sm:$0xff]
        %v2607 = vsel %vm2559, %v2604, 0
        %v2610 = vsel %vm2559, %v2605, 0
        %2612 = vmatprep.subr.mxu0 0.0
        %2613 = vmatpush1.msra.mxu0 %v2597
        %2614 = vmatprep.subr.mxu0 0.0
        %2615 = vmatpush1.msra.mxu0 %v2599
        %2616 = vmatprep.subr.mxu0 0.0
        %2617 = vmatpush1.msra.mxu0 %v2601
        %2618 = vmatprep.subr.mxu0 0.0
        %2619 = vmatpush1.msra.mxu0 %v2603
        %2620 = vmatprep.subr.mxu0 0.0
        %2621 = vmatpush1.msra.mxu0 0.0
        %2622 = vmatprep.subr.mxu0 0.0
        %2623 = vmatpush1.msra.mxu0 0.0
        %2624 = vmatprep.subr.mxu0 0.0
        %2625 = vmatpush1.msra.mxu0 0.0
        %2626 = vmatprep.subr.mxu0 0.0
        %2627 = vmatpush1.msra.mxu0 0.0
        %2628 = vmatprep.subr.mxu0 0.0
        %2629 = vmatpush1.msra.mxu0 0.0
        %2630 = vmatprep.subr.mxu0 0.0
        %2631 = vmatpush1.msra.mxu0 0.0
        %2632 = vmatprep.subr.mxu0 0.0
        %2633 = vmatpush1.msra.mxu0 0.0
        %2634 = vmatprep.subr.mxu0 0.0
        %2635 = vmatpush1.msra.mxu0 0.0
        %2636 = vmatprep.subr.mxu0 0.0
        %2637 = vmatpush1.msra.mxu0 0.0
        %2638 = vmatprep.subr.mxu0 0.0
        %2639 = vmatpush1.msra.mxu0 0.0
        %2640 = vmatprep.subr.mxu0 0.0
        %2641 = vmatpush1.msra.mxu0 0.0
        %2642 = vmatprep.subr.mxu0 0.0
        %2643 = vmatpush1.msra.mxu0 0.0
        %2644 = vmatprep.subr.mxu0 0.0
        %2645 = vmatpush1.msra.mxu0 0.0
        %2646 = vmatprep.subr.mxu0 0.0
        %2647 = vmatpush1.msra.mxu0 0.0
        %2648 = vmatprep.subr.mxu0 0.0
        %2649 = vmatpush1.msra.mxu0 0.0
        %2650 = vmatprep.subr.mxu0 0.0
        %2651 = vmatpush1.msra.mxu0 0.0
        %2652 = vmatprep.subr.mxu0 0.0
        %2653 = vmatpush1.msra.mxu0 0.0
        %2654 = vmatprep.subr.mxu0 0.0
        %2655 = vmatpush1.msra.mxu0 0.0
        %2656 = vmatprep.subr.mxu0 0.0
        %2657 = vmatpush1.msra.mxu0 0.0
        %2658 = vmatprep.subr.mxu0 0.0
        %2659 = vmatpush1.msra.mxu0 0.0
        %2660 = vmatprep.subr.mxu0 0.0
        %2661 = vmatpush1.msra.mxu0 0.0
        %2662 = vmatprep.subr.mxu0 0.0
        %2663 = vmatpush1.msra.mxu0 0.0
        %2664 = vmatprep.subr.mxu0 0.0
        %2665 = vmatpush1.msra.mxu0 0.0
        %2666 = vmatprep.subr.mxu0 0.0
        %2667 = vmatpush1.msra.mxu0 0.0
        %2668 = vmatprep.subr.mxu0 0.0
        %2669 = vmatpush1.msra.mxu0 0.0
        %2670 = vmatprep.subr.mxu0 0.0
        %2671 = vmatpush1.msra.mxu0 0.0
        %2672 = vmatprep.subr.mxu0 0.0
        %2673 = vmatpush1.msra.mxu0 0.0
        %2674 = vmatprep.subr.mxu0 0.0
        %2675 = vmatpush1.msra.mxu0 0.0
        %2676 = vmatprep.mubr.f32.mxu0 0.0
        %2677 = vmatmul.mubr.f32.gmra.mrb[0].mxu0 %v2607
        %v2678 = vpop.f32.mrb[0].mxu0
        %v2679 = vadd.f32 0.0, %v2678
        %v2680 = vpop.f32.mrb[0].mxu0
        %2681 = vmatprep.mubr.f32.mxu0 0.0
        %2682 = vmatmul.mubr.f32.gmra.mrb[0].mxu0 %v2610
        %v2683 = vpop.f32.mrb[0].mxu0
        %v2684 = vadd.f32 0.0, %v2683
        %v2685 = vpop.f32.mrb[0].mxu0
        %2686 = vdwg.mxu0
        %v2688 = vsel %vm2559, %v2679, 0
        %v2691 = vsel %vm2559, %v2684, 0
        %2693 = vmatprep.subr.mxu0 %v2355
        %2694 = vmatpush1.msra.mxu0 %v2354
        %2695 = vmatprep.subr.mxu0 %v2357
        %2696 = vmatpush1.msra.mxu0 %v2356
        %2697 = vmatprep.subr.mxu0 %v2359
        %2698 = vmatpush1.msra.mxu0 %v2358
        %2699 = vmatprep.subr.mxu0 %v2361
        %2700 = vmatpush1.msra.mxu0 %v2360
        %2701 = vmatprep.subr.mxu0 0.0
        %2702 = vmatpush1.msra.mxu0 0.0
        %2703 = vmatprep.subr.mxu0 0.0
        %2704 = vmatpush1.msra.mxu0 0.0
        %2705 = vmatprep.subr.mxu0 0.0
        %2706 = vmatpush1.msra.mxu0 0.0
        %2707 = vmatprep.subr.mxu0 0.0
        %2708 = vmatpush1.msra.mxu0 0.0
        %2709 = vmatprep.subr.mxu0 0.0
        %2710 = vmatpush1.msra.mxu0 0.0
        %2711 = vmatprep.subr.mxu0 0.0
        %2712 = vmatpush1.msra.mxu0 0.0
        %2713 = vmatprep.subr.mxu0 0.0
        %2714 = vmatpush1.msra.mxu0 0.0
        %2715 = vmatprep.subr.mxu0 0.0
        %2716 = vmatpush1.msra.mxu0 0.0
        %2717 = vmatprep.subr.mxu0 0.0
        %2718 = vmatpush1.msra.mxu0 0.0
        %2719 = vmatprep.subr.mxu0 0.0
        %2720 = vmatpush1.msra.mxu0 0.0
        %2721 = vmatprep.subr.mxu0 0.0
        %2722 = vmatpush1.msra.mxu0 0.0
        %2723 = vmatprep.subr.mxu0 0.0
        %2724 = vmatpush1.msra.mxu0 0.0
        %2725 = vmatprep.subr.mxu0 0.0
        %2726 = vmatpush1.msra.mxu0 0.0
        %2727 = vmatprep.subr.mxu0 0.0
        %2728 = vmatpush1.msra.mxu0 0.0
        %2729 = vmatprep.subr.mxu0 0.0
        %2730 = vmatpush1.msra.mxu0 0.0
        %2731 = vmatprep.subr.mxu0 0.0
        %2732 = vmatpush1.msra.mxu0 0.0
        %2733 = vmatprep.subr.mxu0 0.0
        %2734 = vmatpush1.msra.mxu0 0.0
        %2735 = vmatprep.subr.mxu0 0.0
        %2736 = vmatpush1.msra.mxu0 0.0
        %2737 = vmatprep.subr.mxu0 0.0
        %2738 = vmatpush1.msra.mxu0 0.0
        %2739 = vmatprep.subr.mxu0 0.0
        %2740 = vmatpush1.msra.mxu0 0.0
        %2741 = vmatprep.subr.mxu0 0.0
        %2742 = vmatpush1.msra.mxu0 0.0
        %2743 = vmatprep.subr.mxu0 0.0
        %2744 = vmatpush1.msra.mxu0 0.0
        %2745 = vmatprep.subr.mxu0 0.0
        %2746 = vmatpush1.msra.mxu0 0.0
        %2747 = vmatprep.subr.mxu0 0.0
        %2748 = vmatpush1.msra.mxu0 0.0
        %2749 = vmatprep.subr.mxu0 0.0
        %2750 = vmatpush1.msra.mxu0 0.0
        %2751 = vmatprep.subr.mxu0 0.0
        %2752 = vmatpush1.msra.mxu0 0.0
        %2753 = vmatprep.subr.mxu0 0.0
        %2754 = vmatpush1.msra.mxu0 0.0
        %2755 = vmatprep.subr.mxu0 0.0
        %2756 = vmatpush1.msra.mxu0 0.0
        %2757 = vmatprep.mubr.f32.mxu0 0.0
        %2758 = vmatmul.mubr.f32.gmra.mrb[0].mxu0 %v2688
        %v2759 = vpop.f32.mrb[0].mxu0
        %v2760 = vadd.f32 0.0, %v2759
        %v2761 = vpop.f32.mrb[0].mxu0
        %v2762 = vadd.f32 0.0, %v2761
        %2763 = vmatprep.mubr.f32.mxu0 0.0
        %2764 = vmatmul.mubr.f32.gmra.mrb[0].mxu0 %v2691
        %v2765 = vpop.f32.mrb[0].mxu0
        %v2766 = vadd.f32 0.0, %v2765
        %v2767 = vpop.f32.mrb[0].mxu0
        %v2768 = vadd.f32 0.0, %v2767
        %2769 = vdwg.mxu0
        %v2770 = vadd.f32 %v385, %v2760
        %v2771 = vadd.f32 %v386, %v2762
        %v2772 = vadd.f32 %v387, %v2766
        %v2773 = vadd.f32 %v388, %v2768
        %v2774 = vadd.f32 %v2770, %v2772
        %v2775 = vrot.slane %v2774, 4
        %v2776 = vadd.f32 %v2774, %v2775
        %v2777 = vrot.slane %v2776, 2
        %v2778 = vadd.f32 %v2776, %v2777
        %v2779 = vrot.slane %v2778, 1
        %v2780 = vadd.f32 %v2778, %v2779
        %v2781 = vadd.f32 %v2771, %v2773
        %v2782 = vrot.slane %v2781, 4
        %v2783 = vadd.f32 %v2781, %v2782
        %v2784 = vrot.slane %v2783, 2
        %v2785 = vadd.f32 %v2783, %v2784
        %v2786 = vrot.slane %v2785, 1
        %v2787 = vadd.f32 %v2785, %v2786
        %v2788 = vmul.f32 %v2780, %v409
        %v2789 = vmul.f32 %v2787, %v409
        %v2790 = vsub.f32 %v2770, %v2788
        %v2791 = vsub.f32 %v2771, %v2789
        %v2792 = vsub.f32 %v2772, %v2788
        %v2793 = vsub.f32 %v2773, %v2789
        %v2794 = vmul.f32 %v2790, %v2790
        %v2795 = vmul.f32 %v2791, %v2791
        %v2796 = vmul.f32 %v2792, %v2792
        %v2797 = vmul.f32 %v2793, %v2793
        %v2798 = vadd.f32 %v2794, %v2796
        %v2799 = vrot.slane %v2798, 4
        %v2800 = vadd.f32 %v2798, %v2799
        %v2801 = vrot.slane %v2800, 2
        %v2802 = vadd.f32 %v2800, %v2801
        %v2803 = vrot.slane %v2802, 1
        %v2804 = vadd.f32 %v2802, %v2803
        %v2805 = vadd.f32 %v2795, %v2797
        %v2806 = vrot.slane %v2805, 4
        %v2807 = vadd.f32 %v2805, %v2806
        %v2808 = vrot.slane %v2807, 2
        %v2809 = vadd.f32 %v2807, %v2808
        %v2810 = vrot.slane %v2809, 1
        %v2811 = vadd.f32 %v2809, %v2810
        %v2812 = vmul.f32 %v2804, %v409
        %v2813 = vmul.f32 %v2811, %v409
        %v2814 = vadd.f32 %v2812, 1e-05
        %v2815 = vadd.f32 %v2813, 1e-05
        %v2816 = vrsqrt.pop %v2814
        %v2817 = vrsqrt.pop %v2815
        %v2818 = vmul.f32 %v2790, %v2816
        %v2819 = vmul.f32 %v2791, %v2817
        %v2820 = vmul.f32 %v2792, %v2816
        %v2821 = vmul.f32 %v2793, %v2817
        %2822 = vset.pattern.permute.xlu0 2
        %2823 = vperm.xlu0 %2822, %v389
        %v2824 = vpop.permute.xlu0 %2823
        %2826 = vset.pattern.permute.xlu0 2
        %2827 = vperm.xlu0 %2826, %v390
        %v2828 = vpop.permute.xlu0 %2827
        %v2830 = vmul.f32 %v2818, %v2824
        %v2831 = vmul.f32 %v2819, %v2824
        %v2832 = vmul.f32 %v2820, %v2828
        %v2833 = vmul.f32 %v2821, %v2828
        %2834 = vset.pattern.permute.xlu0 3
        %2835 = vperm.xlu0 %2834, %v389
        %v2836 = vpop.permute.xlu0 %2835
        %2838 = vset.pattern.permute.xlu0 3
        %2839 = vperm.xlu0 %2838, %v390
        %v2840 = vpop.permute.xlu0 %2839
        %v2842 = vadd.f32 %v2830, %v2836
        %v2843 = vadd.f32 %v2831, %v2836
        %v2844 = vadd.f32 %v2832, %v2840
        %v2845 = vadd.f32 %v2833, %v2840
        %v2846 = vld [vmem:[%s8] sm:$0xff]
        %v2847 = vld [vmem:[%s8 + $0x8] sm:$0xff]
        %v2848 = vld [vmem:[%s8 + $0x10] sm:$0xff]
        %v2849 = vld [vmem:[%s8 + $0x18] sm:$0xff]
        %v2850 = vld [vmem:[%s8 + $0x20] sm:$0xff]
        %v2851 = vld [vmem:[%s8 + $0x28] sm:$0xff]
        %v2852 = vld [vmem:[%s8 + $0x30] sm:$0xff]
        %v2853 = vld [vmem:[%s8 + $0x38] sm:$0xff]
        %v2854 = vld [vmem:[%s8 + $0x40] sm:$0xff]
        %v2855 = vld [vmem:[%s8 + $0x48] sm:$0xff]
        %v2856 = vld [vmem:[%s8 + $0x50] sm:$0xff]
        %v2857 = vld [vmem:[%s8 + $0x58] sm:$0xff]
        %v2859 = vsel %vm482, %v2846, 0
        %v2862 = vsel %vm482, %v2847, 0
        %v2865 = vsel %vm482, %v2848, 0
        %v2868 = vsel %vm482, %v2849, 0
        %v2871 = vsel %vm482, %v2850, 0
        %v2874 = vsel %vm482, %v2851, 0
        %v2877 = vsel %vm482, %v2852, 0
        %v2880 = vsel %vm482, %v2853, 0
        %v2883 = vsel %vm482, %v2854, 0
        %v2886 = vsel %vm482, %v2855, 0
        %v2889 = vsel %vm482, %v2856, 0
        %v2892 = vsel %vm482, %v2857, 0
        %2894 = vmatprep.subr.mxu0 %v2843
        %2895 = vmatpush1.msra.mxu0 %v2842
        %2896 = vmatprep.subr.mxu0 %v2845
        %2897 = vmatpush1.msra.mxu0 %v2844
        %2898 = vmatprep.subr.mxu0 0.0
        %2899 = vmatpush1.msra.mxu0 0.0
        %2900 = vmatprep.subr.mxu0 0.0
        %2901 = vmatpush1.msra.mxu0 0.0
        %2902 = vmatprep.subr.mxu0 0.0
        %2903 = vmatpush1.msra.mxu0 0.0
        %2904 = vmatprep.subr.mxu0 0.0
        %2905 = vmatpush1.msra.mxu0 0.0
        %2906 = vmatprep.subr.mxu0 0.0
        %2907 = vmatpush1.msra.mxu0 0.0
        %2908 = vmatprep.subr.mxu0 0.0
        %2909 = vmatpush1.msra.mxu0 0.0
        %2910 = vmatprep.subr.mxu0 0.0
        %2911 = vmatpush1.msra.mxu0 0.0
        %2912 = vmatprep.subr.mxu0 0.0
        %2913 = vmatpush1.msra.mxu0 0.0
        %2914 = vmatprep.subr.mxu0 0.0
        %2915 = vmatpush1.msra.mxu0 0.0
        %2916 = vmatprep.subr.mxu0 0.0
        %2917 = vmatpush1.msra.mxu0 0.0
        %2918 = vmatprep.subr.mxu0 0.0
        %2919 = vmatpush1.msra.mxu0 0.0
        %2920 = vmatprep.subr.mxu0 0.0
        %2921 = vmatpush1.msra.mxu0 0.0
        %2922 = vmatprep.subr.mxu0 0.0
        %2923 = vmatpush1.msra.mxu0 0.0
        %2924 = vmatprep.subr.mxu0 0.0
        %2925 = vmatpush1.msra.mxu0 0.0
        %2926 = vmatprep.subr.mxu0 0.0
        %2927 = vmatpush1.msra.mxu0 0.0
        %2928 = vmatprep.subr.mxu0 0.0
        %2929 = vmatpush1.msra.mxu0 0.0
        %2930 = vmatprep.subr.mxu0 0.0
        %2931 = vmatpush1.msra.mxu0 0.0
        %2932 = vmatprep.subr.mxu0 0.0
        %2933 = vmatpush1.msra.mxu0 0.0
        %2934 = vmatprep.subr.mxu0 0.0
        %2935 = vmatpush1.msra.mxu0 0.0
        %2936 = vmatprep.subr.mxu0 0.0
        %2937 = vmatpush1.msra.mxu0 0.0
        %2938 = vmatprep.subr.mxu0 0.0
        %2939 = vmatpush1.msra.mxu0 0.0
        %2940 = vmatprep.subr.mxu0 0.0
        %2941 = vmatpush1.msra.mxu0 0.0
        %2942 = vmatprep.subr.mxu0 0.0
        %2943 = vmatpush1.msra.mxu0 0.0
        %2944 = vmatprep.subr.mxu0 0.0
        %2945 = vmatpush1.msra.mxu0 0.0
        %2946 = vmatprep.subr.mxu0 0.0
        %2947 = vmatpush1.msra.mxu0 0.0
        %2948 = vmatprep.subr.mxu0 0.0
        %2949 = vmatpush1.msra.mxu0 0.0
        %2950 = vmatprep.subr.mxu0 0.0
        %2951 = vmatpush1.msra.mxu0 0.0
        %2952 = vmatprep.subr.mxu0 0.0
        %2953 = vmatpush1.msra.mxu0 0.0
        %2954 = vmatprep.subr.mxu0 0.0
        %2955 = vmatpush1.msra.mxu0 0.0
        %2956 = vmatprep.subr.mxu0 0.0
        %2957 = vmatpush1.msra.mxu0 0.0
        %2958 = vmatprep.mubr.f32.mxu0 0.0
        %2959 = vmatmul.mubr.f32.gmra.mrb[0].mxu0 %v2859
        %v2960 = vpop.f32.mrb[0].mxu0
        %v2961 = vadd.f32 0.0, %v2960
        %v2962 = vpop.f32.mrb[0].mxu0
        %v2963 = vadd.f32 0.0, %v2962
        %2964 = vmatprep.mubr.f32.mxu0 0.0
        %2965 = vmatmul.mubr.f32.gmra.mrb[0].mxu0 %v2862
        %v2966 = vpop.f32.mrb[0].mxu0
        %v2967 = vadd.f32 0.0, %v2966
        %v2968 = vpop.f32.mrb[0].mxu0
        %v2969 = vadd.f32 0.0, %v2968
        %2970 = vmatprep.mubr.f32.mxu0 0.0
        %2971 = vmatmul.mubr.f32.gmra.mrb[0].mxu0 %v2865
        %v2972 = vpop.f32.mrb[0].mxu0
        %v2973 = vadd.f32 0.0, %v2972
        %v2974 = vpop.f32.mrb[0].mxu0
        %v2975 = vadd.f32 0.0, %v2974
        %2976 = vmatprep.mubr.f32.mxu0 0.0
        %2977 = vmatmul.mubr.f32.gmra.mrb[0].mxu0 %v2868
        %v2978 = vpop.f32.mrb[0].mxu0
        %v2979 = vadd.f32 0.0, %v2978
        %v2980 = vpop.f32.mrb[0].mxu0
        %v2981 = vadd.f32 0.0, %v2980
        %2982 = vmatprep.mubr.f32.mxu0 0.0
        %2983 = vmatmul.mubr.f32.gmra.mrb[0].mxu0 %v2871
        %v2984 = vpop.f32.mrb[0].mxu0
        %v2985 = vadd.f32 0.0, %v2984
        %v2986 = vpop.f32.mrb[0].mxu0
        %v2987 = vadd.f32 0.0, %v2986
        %2988 = vmatprep.mubr.f32.mxu0 0.0
        %2989 = vmatmul.mubr.f32.gmra.mrb[0].mxu0 %v2874
        %v2990 = vpop.f32.mrb[0].mxu0
        %v2991 = vadd.f32 0.0, %v2990
        %v2992 = vpop.f32.mrb[0].mxu0
        %v2993 = vadd.f32 0.0, %v2992
        %2994 = vmatprep.mubr.f32.mxu0 0.0
        %2995 = vmatmul.mubr.f32.gmra.mrb[0].mxu0 %v2877
        %v2996 = vpop.f32.mrb[0].mxu0
        %v2997 = vadd.f32 0.0, %v2996
        %v2998 = vpop.f32.mrb[0].mxu0
        %v2999 = vadd.f32 0.0, %v2998
        %3000 = vmatprep.mubr.f32.mxu0 0.0
        %3001 = vmatmul.mubr.f32.gmra.mrb[0].mxu0 %v2880
        %v3002 = vpop.f32.mrb[0].mxu0
        %v3003 = vadd.f32 0.0, %v3002
        %v3004 = vpop.f32.mrb[0].mxu0
        %v3005 = vadd.f32 0.0, %v3004
        %3006 = vmatprep.mubr.f32.mxu0 0.0
        %3007 = vmatmul.mubr.f32.gmra.mrb[0].mxu0 %v2883
        %v3008 = vpop.f32.mrb[0].mxu0
        %v3009 = vadd.f32 0.0, %v3008
        %v3010 = vpop.f32.mrb[0].mxu0
        %v3011 = vadd.f32 0.0, %v3010
        %3012 = vmatprep.mubr.f32.mxu0 0.0
        %3013 = vmatmul.mubr.f32.gmra.mrb[0].mxu0 %v2886
        %v3014 = vpop.f32.mrb[0].mxu0
        %v3015 = vadd.f32 0.0, %v3014
        %v3016 = vpop.f32.mrb[0].mxu0
        %v3017 = vadd.f32 0.0, %v3016
        %3018 = vmatprep.mubr.f32.mxu0 0.0
        %3019 = vmatmul.mubr.f32.gmra.mrb[0].mxu0 %v2889
        %v3020 = vpop.f32.mrb[0].mxu0
        %v3021 = vadd.f32 0.0, %v3020
        %v3022 = vpop.f32.mrb[0].mxu0
        %v3023 = vadd.f32 0.0, %v3022
        %3024 = vmatprep.mubr.f32.mxu0 0.0
        %3025 = vmatmul.mubr.f32.gmra.mrb[0].mxu0 %v2892
        %v3026 = vpop.f32.mrb[0].mxu0
        %v3027 = vadd.f32 0.0, %v3026
        %v3028 = vpop.f32.mrb[0].mxu0
        %v3029 = vadd.f32 0.0, %v3028
        %3030 = vdwg.mxu0
        %v3031 = vld [vmem:[%s9] sm:$0xff]
        %v3032 = vld [vmem:[%s9 + $0x8] sm:$0xff]
        %v3033 = vld [vmem:[%s9 + $0x10] sm:$0xff]
        %v3034 = vld [vmem:[%s9 + $0x18] sm:$0xff]
        %v3035 = vld [vmem:[%s9 + $0x20] sm:$0xff]
        %v3036 = vld [vmem:[%s9 + $0x28] sm:$0xff]
        %v3037 = vld [vmem:[%s9 + $0x30] sm:$0xff]
        %v3038 = vld [vmem:[%s9 + $0x38] sm:$0xff]
        %v3039 = vld [vmem:[%s9 + $0x40] sm:$0xff]
        %v3040 = vld [vmem:[%s9 + $0x48] sm:$0xff]
        %v3041 = vld [vmem:[%s9 + $0x50] sm:$0xff]
        %v3042 = vld [vmem:[%s9 + $0x58] sm:$0xff]
        %3044 = vset.pattern.permute.xlu0 4
        %3045 = vperm.xlu0 %3044, %v3031
        %v3046 = vpop.permute.xlu0 %3045
        %3049 = vset.pattern.permute.xlu0 4
        %3050 = vperm.xlu0 %3049, %v3032
        %v3051 = vpop.permute.xlu0 %3050
        %3054 = vset.pattern.permute.xlu0 4
        %3055 = vperm.xlu0 %3054, %v3033
        %v3056 = vpop.permute.xlu0 %3055
        %3059 = vset.pattern.permute.xlu0 4
        %3060 = vperm.xlu0 %3059, %v3034
        %v3061 = vpop.permute.xlu0 %3060
        %3064 = vset.pattern.permute.xlu0 4
        %3065 = vperm.xlu0 %3064, %v3035
        %v3066 = vpop.permute.xlu0 %3065
        %3069 = vset.pattern.permute.xlu0 4
        %3070 = vperm.xlu0 %3069, %v3036
        %v3071 = vpop.permute.xlu0 %3070
        %3074 = vset.pattern.permute.xlu0 4
        %3075 = vperm.xlu0 %3074, %v3037
        %v3076 = vpop.permute.xlu0 %3075
        %3079 = vset.pattern.permute.xlu0 4
        %3080 = vperm.xlu0 %3079, %v3038
        %v3081 = vpop.permute.xlu0 %3080
        %3084 = vset.pattern.permute.xlu0 4
        %3085 = vperm.xlu0 %3084, %v3039
        %v3086 = vpop.permute.xlu0 %3085
        %3089 = vset.pattern.permute.xlu0 4
        %3090 = vperm.xlu0 %3089, %v3040
        %v3091 = vpop.permute.xlu0 %3090
        %3094 = vset.pattern.permute.xlu0 4
        %3095 = vperm.xlu0 %3094, %v3041
        %v3096 = vpop.permute.xlu0 %3095
        %3099 = vset.pattern.permute.xlu0 4
        %3100 = vperm.xlu0 %3099, %v3042
        %v3101 = vpop.permute.xlu0 %3100
        %v3103 = vmul.f32 %v3046, %v2961
        %v3104 = vmul.f32 %v3046, %v2963
        %v3105 = vmul.f32 %v3051, %v2967
        %v3106 = vmul.f32 %v3051, %v2969
        %v3107 = vmul.f32 %v3056, %v2973
        %v3108 = vmul.f32 %v3056, %v2975
        %v3109 = vmul.f32 %v3061, %v2979
        %v3110 = vmul.f32 %v3061, %v2981
        %v3111 = vmul.f32 %v3066, %v2985
        %v3112 = vmul.f32 %v3066, %v2987
        %v3113 = vmul.f32 %v3071, %v2991
        %v3114 = vmul.f32 %v3071, %v2993
        %v3115 = vmul.f32 %v3076, %v2997
        %v3116 = vmul.f32 %v3076, %v2999
        %v3117 = vmul.f32 %v3081, %v3003
        %v3118 = vmul.f32 %v3081, %v3005
        %v3119 = vmul.f32 %v3086, %v3009
        %v3120 = vmul.f32 %v3086, %v3011
        %v3121 = vmul.f32 %v3091, %v3015
        %v3122 = vmul.f32 %v3091, %v3017
        %v3123 = vmul.f32 %v3096, %v3021
        %v3124 = vmul.f32 %v3096, %v3023
        %v3125 = vmul.f32 %v3101, %v3027
        %v3126 = vmul.f32 %v3101, %v3029
        %3127 = vrot.lane.b32.xlu0 %v2961, 17
        %v3128 = vpop.permute.xlu0 %3127
        %3129 = vrot.lane.b32.xlu0 %v2967, 17
        %v3130 = vpop.permute.xlu0 %3129
        %3131 = vrot.lane.b32.xlu0 %v2973, 17
        %v3132 = vpop.permute.xlu0 %3131
        %3133 = vrot.lane.b32.xlu0 %v2979, 17
        %v3134 = vpop.permute.xlu0 %3133
        %3135 = vrot.lane.b32.xlu0 %v2985, 17
        %v3136 = vpop.permute.xlu0 %3135
        %3137 = vrot.lane.b32.xlu0 %v2991, 17
        %v3138 = vpop.permute.xlu0 %3137
        %3139 = vrot.lane.b32.xlu0 %v2997, 17
        %v3140 = vpop.permute.xlu0 %3139
        %3141 = vrot.lane.b32.xlu0 %v3003, 17
        %v3142 = vpop.permute.xlu0 %3141
        %3143 = vrot.lane.b32.xlu0 %v3009, 17
        %v3144 = vpop.permute.xlu0 %3143
        %3145 = vrot.lane.b32.xlu0 %v3015, 17
        %v3146 = vpop.permute.xlu0 %3145
        %3147 = vrot.lane.b32.xlu0 %v3021, 17
        %v3148 = vpop.permute.xlu0 %3147
        %3149 = vrot.lane.b32.xlu0 %v3027, 17
        %v3150 = vpop.permute.xlu0 %3149
        %3151 = vrot.lane.b32.xlu0 %v2963, 17
        %v3152 = vpop.permute.xlu0 %3151
        %3153 = vrot.lane.b32.xlu0 %v2969, 17
        %v3154 = vpop.permute.xlu0 %3153
        %3155 = vrot.lane.b32.xlu0 %v2975, 17
        %v3156 = vpop.permute.xlu0 %3155
        %3157 = vrot.lane.b32.xlu0 %v2981, 17
        %v3158 = vpop.permute.xlu0 %3157
        %3159 = vrot.lane.b32.xlu0 %v2987, 17
        %v3160 = vpop.permute.xlu0 %3159
        %3161 = vrot.lane.b32.xlu0 %v2993, 17
        %v3162 = vpop.permute.xlu0 %3161
        %3163 = vrot.lane.b32.xlu0 %v2999, 17
        %v3164 = vpop.permute.xlu0 %3163
        %3165 = vrot.lane.b32.xlu0 %v3005, 17
        %v3166 = vpop.permute.xlu0 %3165
        %3167 = vrot.lane.b32.xlu0 %v3011, 17
        %v3168 = vpop.permute.xlu0 %3167
        %3169 = vrot.lane.b32.xlu0 %v3017, 17
        %v3170 = vpop.permute.xlu0 %3169
        %3171 = vrot.lane.b32.xlu0 %v3023, 17
        %v3172 = vpop.permute.xlu0 %3171
        %3173 = vrot.lane.b32.xlu0 %v3029, 17
        %v3174 = vpop.permute.xlu0 %3173
        %v3175 = vsel %vm802, %v3128, %v3152
        %v3176 = vsel %vm802, %v3130, %v3154
        %v3177 = vsel %vm802, %v3132, %v3156
        %v3178 = vsel %vm802, %v3134, %v3158
        %v3179 = vsel %vm802, %v3136, %v3160
        %v3180 = vsel %vm802, %v3138, %v3162
        %v3181 = vsel %vm802, %v3140, %v3164
        %v3182 = vsel %vm802, %v3142, %v3166
        %v3183 = vsel %vm802, %v3144, %v3168
        %v3184 = vsel %vm802, %v3146, %v3170
        %v3185 = vsel %vm802, %v3148, %v3172
        %v3186 = vsel %vm802, %v3150, %v3174
        %v3187 = vsel %vm802, %v3152, %v3128
        %v3188 = vsel %vm802, %v3154, %v3130
        %v3189 = vsel %vm802, %v3156, %v3132
        %v3190 = vsel %vm802, %v3158, %v3134
        %v3191 = vsel %vm802, %v3160, %v3136
        %v3192 = vsel %vm802, %v3162, %v3138
        %v3193 = vsel %vm802, %v3164, %v3140
        %v3194 = vsel %vm802, %v3166, %v3142
        %v3195 = vsel %vm802, %v3168, %v3144
        %v3196 = vsel %vm802, %v3170, %v3146
        %v3197 = vsel %vm802, %v3172, %v3148
        %v3198 = vsel %vm802, %v3174, %v3150
        %v3199 = vmul.f32 %v830, %v3187
        %v3200 = vmul.f32 %v834, %v3175
        %v3201 = vmul.f32 %v830, %v3188
        %v3202 = vmul.f32 %v834, %v3176
        %v3203 = vmul.f32 %v830, %v3189
        %v3204 = vmul.f32 %v834, %v3177
        %v3205 = vmul.f32 %v830, %v3190
        %v3206 = vmul.f32 %v834, %v3178
        %v3207 = vmul.f32 %v830, %v3191
        %v3208 = vmul.f32 %v834, %v3179
        %v3209 = vmul.f32 %v830, %v3192
        %v3210 = vmul.f32 %v834, %v3180
        %v3211 = vmul.f32 %v830, %v3193
        %v3212 = vmul.f32 %v834, %v3181
        %v3213 = vmul.f32 %v830, %v3194
        %v3214 = vmul.f32 %v834, %v3182
        %v3215 = vmul.f32 %v830, %v3195
        %v3216 = vmul.f32 %v834, %v3183
        %v3217 = vmul.f32 %v830, %v3196
        %v3218 = vmul.f32 %v834, %v3184
        %v3219 = vmul.f32 %v830, %v3197
        %v3220 = vmul.f32 %v834, %v3185
        %v3221 = vmul.f32 %v830, %v3198
        %v3222 = vmul.f32 %v834, %v3186
        %3223 = vset.pattern.permute.xlu0 0
        %3224 = vperm.xlu0 %3223, %v3031
        %v3225 = vpop.permute.xlu0 %3224
        %3227 = vset.pattern.permute.xlu0 0
        %3228 = vperm.xlu0 %3227, %v3032
        %v3229 = vpop.permute.xlu0 %3228
        %3231 = vset.pattern.permute.xlu0 0
        %3232 = vperm.xlu0 %3231, %v3033
        %v3233 = vpop.permute.xlu0 %3232
        %3235 = vset.pattern.permute.xlu0 0
        %3236 = vperm.xlu0 %3235, %v3034
        %v3237 = vpop.permute.xlu0 %3236
        %3239 = vset.pattern.permute.xlu0 0
        %3240 = vperm.xlu0 %3239, %v3035
        %v3241 = vpop.permute.xlu0 %3240
        %3243 = vset.pattern.permute.xlu0 0
        %3244 = vperm.xlu0 %3243, %v3036
        %v3245 = vpop.permute.xlu0 %3244
        %3247 = vset.pattern.permute.xlu0 0
        %3248 = vperm.xlu0 %3247, %v3037
        %v3249 = vpop.permute.xlu0 %3248
        %3251 = vset.pattern.permute.xlu0 0
        %3252 = vperm.xlu0 %3251, %v3038
        %v3253 = vpop.permute.xlu0 %3252
        %3255 = vset.pattern.permute.xlu0 0
        %3256 = vperm.xlu0 %3255, %v3039
        %v3257 = vpop.permute.xlu0 %3256
        %3259 = vset.pattern.permute.xlu0 0
        %3260 = vperm.xlu0 %3259, %v3040
        %v3261 = vpop.permute.xlu0 %3260
        %3263 = vset.pattern.permute.xlu0 0
        %3264 = vperm.xlu0 %3263, %v3041
        %v3265 = vpop.permute.xlu0 %3264
        %3267 = vset.pattern.permute.xlu0 0
        %3268 = vperm.xlu0 %3267, %v3042
        %v3269 = vpop.permute.xlu0 %3268
        %v3271 = vmul.f32 %v3225, %v3199
        %v3272 = vmul.f32 %v3225, %v3200
        %v3273 = vmul.f32 %v3229, %v3201
        %v3274 = vmul.f32 %v3229, %v3202
        %v3275 = vmul.f32 %v3233, %v3203
        %v3276 = vmul.f32 %v3233, %v3204
        %v3277 = vmul.f32 %v3237, %v3205
        %v3278 = vmul.f32 %v3237, %v3206
        %v3279 = vmul.f32 %v3241, %v3207
        %v3280 = vmul.f32 %v3241, %v3208
        %v3281 = vmul.f32 %v3245, %v3209
        %v3282 = vmul.f32 %v3245, %v3210
        %v3283 = vmul.f32 %v3249, %v3211
        %v3284 = vmul.f32 %v3249, %v3212
        %v3285 = vmul.f32 %v3253, %v3213
        %v3286 = vmul.f32 %v3253, %v3214
        %v3287 = vmul.f32 %v3257, %v3215
        %v3288 = vmul.f32 %v3257, %v3216
        %v3289 = vmul.f32 %v3261, %v3217
        %v3290 = vmul.f32 %v3261, %v3218
        %v3291 = vmul.f32 %v3265, %v3219
        %v3292 = vmul.f32 %v3265, %v3220
        %v3293 = vmul.f32 %v3269, %v3221
        %v3294 = vmul.f32 %v3269, %v3222
        %v3295 = vadd.f32 %v3103, %v3271
        %v3296 = vadd.f32 %v3104, %v3272
        %v3297 = vadd.f32 %v3105, %v3273
        %v3298 = vadd.f32 %v3106, %v3274
        %v3299 = vadd.f32 %v3107, %v3275
        %v3300 = vadd.f32 %v3108, %v3276
        %v3301 = vadd.f32 %v3109, %v3277
        %v3302 = vadd.f32 %v3110, %v3278
        %v3303 = vadd.f32 %v3111, %v3279
        %v3304 = vadd.f32 %v3112, %v3280
        %v3305 = vadd.f32 %v3113, %v3281
        %v3306 = vadd.f32 %v3114, %v3282
        %v3307 = vadd.f32 %v3115, %v3283
        %v3308 = vadd.f32 %v3116, %v3284
        %v3309 = vadd.f32 %v3117, %v3285
        %v3310 = vadd.f32 %v3118, %v3286
        %v3311 = vadd.f32 %v3119, %v3287
        %v3312 = vadd.f32 %v3120, %v3288
        %v3313 = vadd.f32 %v3121, %v3289
        %v3314 = vadd.f32 %v3122, %v3290
        %v3315 = vadd.f32 %v3123, %v3291
        %v3316 = vadd.f32 %v3124, %v3292
        %v3317 = vadd.f32 %v3125, %v3293
        %v3318 = vadd.f32 %v3126, %v3294
        %3319 = vrot.lane.b32.xlu0 %v2961, 16
        %v3320 = vpop.permute.xlu0 %3319
        %3321 = vrot.lane.b32.xlu0 %v2967, 16
        %v3322 = vpop.permute.xlu0 %3321
        %3323 = vrot.lane.b32.xlu0 %v2973, 16
        %v3324 = vpop.permute.xlu0 %3323
        %3325 = vrot.lane.b32.xlu0 %v2979, 16
        %v3326 = vpop.permute.xlu0 %3325
        %3327 = vrot.lane.b32.xlu0 %v2985, 16
        %v3328 = vpop.permute.xlu0 %3327
        %3329 = vrot.lane.b32.xlu0 %v2991, 16
        %v3330 = vpop.permute.xlu0 %3329
        %3331 = vrot.lane.b32.xlu0 %v2997, 16
        %v3332 = vpop.permute.xlu0 %3331
        %3333 = vrot.lane.b32.xlu0 %v3003, 16
        %v3334 = vpop.permute.xlu0 %3333
        %3335 = vrot.lane.b32.xlu0 %v3009, 16
        %v3336 = vpop.permute.xlu0 %3335
        %3337 = vrot.lane.b32.xlu0 %v3015, 16
        %v3338 = vpop.permute.xlu0 %3337
        %3339 = vrot.lane.b32.xlu0 %v3021, 16
        %v3340 = vpop.permute.xlu0 %3339
        %3341 = vrot.lane.b32.xlu0 %v3027, 16
        %v3342 = vpop.permute.xlu0 %3341
        %3343 = vrot.lane.b32.xlu0 %v2963, 16
        %v3344 = vpop.permute.xlu0 %3343
        %3345 = vrot.lane.b32.xlu0 %v2969, 16
        %v3346 = vpop.permute.xlu0 %3345
        %3347 = vrot.lane.b32.xlu0 %v2975, 16
        %v3348 = vpop.permute.xlu0 %3347
        %3349 = vrot.lane.b32.xlu0 %v2981, 16
        %v3350 = vpop.permute.xlu0 %3349
        %3351 = vrot.lane.b32.xlu0 %v2987, 16
        %v3352 = vpop.permute.xlu0 %3351
        %3353 = vrot.lane.b32.xlu0 %v2993, 16
        %v3354 = vpop.permute.xlu0 %3353
        %3355 = vrot.lane.b32.xlu0 %v2999, 16
        %v3356 = vpop.permute.xlu0 %3355
        %3357 = vrot.lane.b32.xlu0 %v3005, 16
        %v3358 = vpop.permute.xlu0 %3357
        %3359 = vrot.lane.b32.xlu0 %v3011, 16
        %v3360 = vpop.permute.xlu0 %3359
        %3361 = vrot.lane.b32.xlu0 %v3017, 16
        %v3362 = vpop.permute.xlu0 %3361
        %3363 = vrot.lane.b32.xlu0 %v3023, 16
        %v3364 = vpop.permute.xlu0 %3363
        %3365 = vrot.lane.b32.xlu0 %v3029, 16
        %v3366 = vpop.permute.xlu0 %3365
        %v3367 = vsel %vm1003, %v3320, %v3344
        %v3368 = vsel %vm1003, %v3322, %v3346
        %v3369 = vsel %vm1003, %v3324, %v3348
        %v3370 = vsel %vm1003, %v3326, %v3350
        %v3371 = vsel %vm1003, %v3328, %v3352
        %v3372 = vsel %vm1003, %v3330, %v3354
        %v3373 = vsel %vm1003, %v3332, %v3356
        %v3374 = vsel %vm1003, %v3334, %v3358
        %v3375 = vsel %vm1003, %v3336, %v3360
        %v3376 = vsel %vm1003, %v3338, %v3362
        %v3377 = vsel %vm1003, %v3340, %v3364
        %v3378 = vsel %vm1003, %v3342, %v3366
        %v3379 = vsel %vm1003, %v3344, %v3320
        %v3380 = vsel %vm1003, %v3346, %v3322
        %v3381 = vsel %vm1003, %v3348, %v3324
        %v3382 = vsel %vm1003, %v3350, %v3326
        %v3383 = vsel %vm1003, %v3352, %v3328
        %v3384 = vsel %vm1003, %v3354, %v3330
        %v3385 = vsel %vm1003, %v3356, %v3332
        %v3386 = vsel %vm1003, %v3358, %v3334
        %v3387 = vsel %vm1003, %v3360, %v3336
        %v3388 = vsel %vm1003, %v3362, %v3338
        %v3389 = vsel %vm1003, %v3364, %v3340
        %v3390 = vsel %vm1003, %v3366, %v3342
        %v3391 = vmul.f32 %v1031, %v3379
        %v3392 = vmul.f32 %v1035, %v3367
        %v3393 = vmul.f32 %v1031, %v3380
        %v3394 = vmul.f32 %v1035, %v3368
        %v3395 = vmul.f32 %v1031, %v3381
        %v3396 = vmul.f32 %v1035, %v3369
        %v3397 = vmul.f32 %v1031, %v3382
        %v3398 = vmul.f32 %v1035, %v3370
        %v3399 = vmul.f32 %v1031, %v3383
        %v3400 = vmul.f32 %v1035, %v3371
        %v3401 = vmul.f32 %v1031, %v3384
        %v3402 = vmul.f32 %v1035, %v3372
        %v3403 = vmul.f32 %v1031, %v3385
        %v3404 = vmul.f32 %v1035, %v3373
        %v3405 = vmul.f32 %v1031, %v3386
        %v3406 = vmul.f32 %v1035, %v3374
        %v3407 = vmul.f32 %v1031, %v3387
        %v3408 = vmul.f32 %v1035, %v3375
        %v3409 = vmul.f32 %v1031, %v3388
        %v3410 = vmul.f32 %v1035, %v3376
        %v3411 = vmul.f32 %v1031, %v3389
        %v3412 = vmul.f32 %v1035, %v3377
        %v3413 = vmul.f32 %v1031, %v3390
        %v3414 = vmul.f32 %v1035, %v3378
        %3415 = vset.pattern.permute.xlu0 1
        %3416 = vperm.xlu0 %3415, %v3031
        %v3417 = vpop.permute.xlu0 %3416
        %3419 = vset.pattern.permute.xlu0 1
        %3420 = vperm.xlu0 %3419, %v3032
        %v3421 = vpop.permute.xlu0 %3420
        %3423 = vset.pattern.permute.xlu0 1
        %3424 = vperm.xlu0 %3423, %v3033
        %v3425 = vpop.permute.xlu0 %3424
        %3427 = vset.pattern.permute.xlu0 1
        %3428 = vperm.xlu0 %3427, %v3034
        %v3429 = vpop.permute.xlu0 %3428
        %3431 = vset.pattern.permute.xlu0 1
        %3432 = vperm.xlu0 %3431, %v3035
        %v3433 = vpop.permute.xlu0 %3432
        %3435 = vset.pattern.permute.xlu0 1
        %3436 = vperm.xlu0 %3435, %v3036
        %v3437 = vpop.permute.xlu0 %3436
        %3439 = vset.pattern.permute.xlu0 1
        %3440 = vperm.xlu0 %3439, %v3037
        %v3441 = vpop.permute.xlu0 %3440
        %3443 = vset.pattern.permute.xlu0 1
        %3444 = vperm.xlu0 %3443, %v3038
        %v3445 = vpop.permute.xlu0 %3444
        %3447 = vset.pattern.permute.xlu0 1
        %3448 = vperm.xlu0 %3447, %v3039
        %v3449 = vpop.permute.xlu0 %3448
        %3451 = vset.pattern.permute.xlu0 1
        %3452 = vperm.xlu0 %3451, %v3040
        %v3453 = vpop.permute.xlu0 %3452
        %3455 = vset.pattern.permute.xlu0 1
        %3456 = vperm.xlu0 %3455, %v3041
        %v3457 = vpop.permute.xlu0 %3456
        %3459 = vset.pattern.permute.xlu0 1
        %3460 = vperm.xlu0 %3459, %v3042
        %v3461 = vpop.permute.xlu0 %3460
        %v3463 = vmul.f32 %v3417, %v3391
        %v3464 = vmul.f32 %v3417, %v3392
        %v3465 = vmul.f32 %v3421, %v3393
        %v3466 = vmul.f32 %v3421, %v3394
        %v3467 = vmul.f32 %v3425, %v3395
        %v3468 = vmul.f32 %v3425, %v3396
        %v3469 = vmul.f32 %v3429, %v3397
        %v3470 = vmul.f32 %v3429, %v3398
        %v3471 = vmul.f32 %v3433, %v3399
        %v3472 = vmul.f32 %v3433, %v3400
        %v3473 = vmul.f32 %v3437, %v3401
        %v3474 = vmul.f32 %v3437, %v3402
        %v3475 = vmul.f32 %v3441, %v3403
        %v3476 = vmul.f32 %v3441, %v3404
        %v3477 = vmul.f32 %v3445, %v3405
        %v3478 = vmul.f32 %v3445, %v3406
        %v3479 = vmul.f32 %v3449, %v3407
        %v3480 = vmul.f32 %v3449, %v3408
        %v3481 = vmul.f32 %v3453, %v3409
        %v3482 = vmul.f32 %v3453, %v3410
        %v3483 = vmul.f32 %v3457, %v3411
        %v3484 = vmul.f32 %v3457, %v3412
        %v3485 = vmul.f32 %v3461, %v3413
        %v3486 = vmul.f32 %v3461, %v3414
        %v3487 = vadd.f32 %v3295, %v3463
        %v3488 = vadd.f32 %v3296, %v3464
        %v3489 = vadd.f32 %v3297, %v3465
        %v3490 = vadd.f32 %v3298, %v3466
        %v3491 = vadd.f32 %v3299, %v3467
        %v3492 = vadd.f32 %v3300, %v3468
        %v3493 = vadd.f32 %v3301, %v3469
        %v3494 = vadd.f32 %v3302, %v3470
        %v3495 = vadd.f32 %v3303, %v3471
        %v3496 = vadd.f32 %v3304, %v3472
        %v3497 = vadd.f32 %v3305, %v3473
        %v3498 = vadd.f32 %v3306, %v3474
        %v3499 = vadd.f32 %v3307, %v3475
        %v3500 = vadd.f32 %v3308, %v3476
        %v3501 = vadd.f32 %v3309, %v3477
        %v3502 = vadd.f32 %v3310, %v3478
        %v3503 = vadd.f32 %v3311, %v3479
        %v3504 = vadd.f32 %v3312, %v3480
        %v3505 = vadd.f32 %v3313, %v3481
        %v3506 = vadd.f32 %v3314, %v3482
        %v3507 = vadd.f32 %v3315, %v3483
        %v3508 = vadd.f32 %v3316, %v3484
        %v3509 = vadd.f32 %v3317, %v3485
        %v3510 = vadd.f32 %v3318, %v3486
        %3511 = vrot.lane.b32.xlu0 %v2961, 15
        %v3512 = vpop.permute.xlu0 %3511
        %3513 = vrot.lane.b32.xlu0 %v2967, 15
        %v3514 = vpop.permute.xlu0 %3513
        %3515 = vrot.lane.b32.xlu0 %v2973, 15
        %v3516 = vpop.permute.xlu0 %3515
        %3517 = vrot.lane.b32.xlu0 %v2979, 15
        %v3518 = vpop.permute.xlu0 %3517
        %3519 = vrot.lane.b32.xlu0 %v2985, 15
        %v3520 = vpop.permute.xlu0 %3519
        %3521 = vrot.lane.b32.xlu0 %v2991, 15
        %v3522 = vpop.permute.xlu0 %3521
        %3523 = vrot.lane.b32.xlu0 %v2997, 15
        %v3524 = vpop.permute.xlu0 %3523
        %3525 = vrot.lane.b32.xlu0 %v3003, 15
        %v3526 = vpop.permute.xlu0 %3525
        %3527 = vrot.lane.b32.xlu0 %v3009, 15
        %v3528 = vpop.permute.xlu0 %3527
        %3529 = vrot.lane.b32.xlu0 %v3015, 15
        %v3530 = vpop.permute.xlu0 %3529
        %3531 = vrot.lane.b32.xlu0 %v3021, 15
        %v3532 = vpop.permute.xlu0 %3531
        %3533 = vrot.lane.b32.xlu0 %v3027, 15
        %v3534 = vpop.permute.xlu0 %3533
        %3535 = vrot.lane.b32.xlu0 %v2963, 15
        %v3536 = vpop.permute.xlu0 %3535
        %3537 = vrot.lane.b32.xlu0 %v2969, 15
        %v3538 = vpop.permute.xlu0 %3537
        %3539 = vrot.lane.b32.xlu0 %v2975, 15
        %v3540 = vpop.permute.xlu0 %3539
        %3541 = vrot.lane.b32.xlu0 %v2981, 15
        %v3542 = vpop.permute.xlu0 %3541
        %3543 = vrot.lane.b32.xlu0 %v2987, 15
        %v3544 = vpop.permute.xlu0 %3543
        %3545 = vrot.lane.b32.xlu0 %v2993, 15
        %v3546 = vpop.permute.xlu0 %3545
        %3547 = vrot.lane.b32.xlu0 %v2999, 15
        %v3548 = vpop.permute.xlu0 %3547
        %3549 = vrot.lane.b32.xlu0 %v3005, 15
        %v3550 = vpop.permute.xlu0 %3549
        %3551 = vrot.lane.b32.xlu0 %v3011, 15
        %v3552 = vpop.permute.xlu0 %3551
        %3553 = vrot.lane.b32.xlu0 %v3017, 15
        %v3554 = vpop.permute.xlu0 %3553
        %3555 = vrot.lane.b32.xlu0 %v3023, 15
        %v3556 = vpop.permute.xlu0 %3555
        %3557 = vrot.lane.b32.xlu0 %v3029, 15
        %v3558 = vpop.permute.xlu0 %3557
        %v3559 = vsel %vm1204, %v3512, %v3536
        %v3560 = vsel %vm1204, %v3514, %v3538
        %v3561 = vsel %vm1204, %v3516, %v3540
        %v3562 = vsel %vm1204, %v3518, %v3542
        %v3563 = vsel %vm1204, %v3520, %v3544
        %v3564 = vsel %vm1204, %v3522, %v3546
        %v3565 = vsel %vm1204, %v3524, %v3548
        %v3566 = vsel %vm1204, %v3526, %v3550
        %v3567 = vsel %vm1204, %v3528, %v3552
        %v3568 = vsel %vm1204, %v3530, %v3554
        %v3569 = vsel %vm1204, %v3532, %v3556
        %v3570 = vsel %vm1204, %v3534, %v3558
        %v3571 = vsel %vm1204, %v3536, %v3512
        %v3572 = vsel %vm1204, %v3538, %v3514
        %v3573 = vsel %vm1204, %v3540, %v3516
        %v3574 = vsel %vm1204, %v3542, %v3518
        %v3575 = vsel %vm1204, %v3544, %v3520
        %v3576 = vsel %vm1204, %v3546, %v3522
        %v3577 = vsel %vm1204, %v3548, %v3524
        %v3578 = vsel %vm1204, %v3550, %v3526
        %v3579 = vsel %vm1204, %v3552, %v3528
        %v3580 = vsel %vm1204, %v3554, %v3530
        %v3581 = vsel %vm1204, %v3556, %v3532
        %v3582 = vsel %vm1204, %v3558, %v3534
        %v3583 = vmul.f32 %v1232, %v3571
        %v3584 = vmul.f32 %v1236, %v3559
        %v3585 = vmul.f32 %v1232, %v3572
        %v3586 = vmul.f32 %v1236, %v3560
        %v3587 = vmul.f32 %v1232, %v3573
        %v3588 = vmul.f32 %v1236, %v3561
        %v3589 = vmul.f32 %v1232, %v3574
        %v3590 = vmul.f32 %v1236, %v3562
        %v3591 = vmul.f32 %v1232, %v3575
        %v3592 = vmul.f32 %v1236, %v3563
        %v3593 = vmul.f32 %v1232, %v3576
        %v3594 = vmul.f32 %v1236, %v3564
        %v3595 = vmul.f32 %v1232, %v3577
        %v3596 = vmul.f32 %v1236, %v3565
        %v3597 = vmul.f32 %v1232, %v3578
        %v3598 = vmul.f32 %v1236, %v3566
        %v3599 = vmul.f32 %v1232, %v3579
        %v3600 = vmul.f32 %v1236, %v3567
        %v3601 = vmul.f32 %v1232, %v3580
        %v3602 = vmul.f32 %v1236, %v3568
        %v3603 = vmul.f32 %v1232, %v3581
        %v3604 = vmul.f32 %v1236, %v3569
        %v3605 = vmul.f32 %v1232, %v3582
        %v3606 = vmul.f32 %v1236, %v3570
        %3607 = vset.pattern.permute.xlu0 2
        %3608 = vperm.xlu0 %3607, %v3031
        %v3609 = vpop.permute.xlu0 %3608
        %3611 = vset.pattern.permute.xlu0 2
        %3612 = vperm.xlu0 %3611, %v3032
        %v3613 = vpop.permute.xlu0 %3612
        %3615 = vset.pattern.permute.xlu0 2
        %3616 = vperm.xlu0 %3615, %v3033
        %v3617 = vpop.permute.xlu0 %3616
        %3619 = vset.pattern.permute.xlu0 2
        %3620 = vperm.xlu0 %3619, %v3034
        %v3621 = vpop.permute.xlu0 %3620
        %3623 = vset.pattern.permute.xlu0 2
        %3624 = vperm.xlu0 %3623, %v3035
        %v3625 = vpop.permute.xlu0 %3624
        %3627 = vset.pattern.permute.xlu0 2
        %3628 = vperm.xlu0 %3627, %v3036
        %v3629 = vpop.permute.xlu0 %3628
        %3631 = vset.pattern.permute.xlu0 2
        %3632 = vperm.xlu0 %3631, %v3037
        %v3633 = vpop.permute.xlu0 %3632
        %3635 = vset.pattern.permute.xlu0 2
        %3636 = vperm.xlu0 %3635, %v3038
        %v3637 = vpop.permute.xlu0 %3636
        %3639 = vset.pattern.permute.xlu0 2
        %3640 = vperm.xlu0 %3639, %v3039
        %v3641 = vpop.permute.xlu0 %3640
        %3643 = vset.pattern.permute.xlu0 2
        %3644 = vperm.xlu0 %3643, %v3040
        %v3645 = vpop.permute.xlu0 %3644
        %3647 = vset.pattern.permute.xlu0 2
        %3648 = vperm.xlu0 %3647, %v3041
        %v3649 = vpop.permute.xlu0 %3648
        %3651 = vset.pattern.permute.xlu0 2
        %3652 = vperm.xlu0 %3651, %v3042
        %v3653 = vpop.permute.xlu0 %3652
        %v3655 = vmul.f32 %v3609, %v3583
        %v3656 = vmul.f32 %v3609, %v3584
        %v3657 = vmul.f32 %v3613, %v3585
        %v3658 = vmul.f32 %v3613, %v3586
        %v3659 = vmul.f32 %v3617, %v3587
        %v3660 = vmul.f32 %v3617, %v3588
        %v3661 = vmul.f32 %v3621, %v3589
        %v3662 = vmul.f32 %v3621, %v3590
        %v3663 = vmul.f32 %v3625, %v3591
        %v3664 = vmul.f32 %v3625, %v3592
        %v3665 = vmul.f32 %v3629, %v3593
        %v3666 = vmul.f32 %v3629, %v3594
        %v3667 = vmul.f32 %v3633, %v3595
        %v3668 = vmul.f32 %v3633, %v3596
        %v3669 = vmul.f32 %v3637, %v3597
        %v3670 = vmul.f32 %v3637, %v3598
        %v3671 = vmul.f32 %v3641, %v3599
        %v3672 = vmul.f32 %v3641, %v3600
        %v3673 = vmul.f32 %v3645, %v3601
        %v3674 = vmul.f32 %v3645, %v3602
        %v3675 = vmul.f32 %v3649, %v3603
        %v3676 = vmul.f32 %v3649, %v3604
        %v3677 = vmul.f32 %v3653, %v3605
        %v3678 = vmul.f32 %v3653, %v3606
        %v3679 = vadd.f32 %v3487, %v3655
        %v3680 = vadd.f32 %v3488, %v3656
        %v3681 = vadd.f32 %v3489, %v3657
        %v3682 = vadd.f32 %v3490, %v3658
        %v3683 = vadd.f32 %v3491, %v3659
        %v3684 = vadd.f32 %v3492, %v3660
        %v3685 = vadd.f32 %v3493, %v3661
        %v3686 = vadd.f32 %v3494, %v3662
        %v3687 = vadd.f32 %v3495, %v3663
        %v3688 = vadd.f32 %v3496, %v3664
        %v3689 = vadd.f32 %v3497, %v3665
        %v3690 = vadd.f32 %v3498, %v3666
        %v3691 = vadd.f32 %v3499, %v3667
        %v3692 = vadd.f32 %v3500, %v3668
        %v3693 = vadd.f32 %v3501, %v3669
        %v3694 = vadd.f32 %v3502, %v3670
        %v3695 = vadd.f32 %v3503, %v3671
        %v3696 = vadd.f32 %v3504, %v3672
        %v3697 = vadd.f32 %v3505, %v3673
        %v3698 = vadd.f32 %v3506, %v3674
        %v3699 = vadd.f32 %v3507, %v3675
        %v3700 = vadd.f32 %v3508, %v3676
        %v3701 = vadd.f32 %v3509, %v3677
        %v3702 = vadd.f32 %v3510, %v3678
        %3703 = vrot.lane.b32.xlu0 %v2961, 1
        %v3704 = vpop.permute.xlu0 %3703
        %3705 = vrot.lane.b32.xlu0 %v2967, 1
        %v3706 = vpop.permute.xlu0 %3705
        %3707 = vrot.lane.b32.xlu0 %v2973, 1
        %v3708 = vpop.permute.xlu0 %3707
        %3709 = vrot.lane.b32.xlu0 %v2979, 1
        %v3710 = vpop.permute.xlu0 %3709
        %3711 = vrot.lane.b32.xlu0 %v2985, 1
        %v3712 = vpop.permute.xlu0 %3711
        %3713 = vrot.lane.b32.xlu0 %v2991, 1
        %v3714 = vpop.permute.xlu0 %3713
        %3715 = vrot.lane.b32.xlu0 %v2997, 1
        %v3716 = vpop.permute.xlu0 %3715
        %3717 = vrot.lane.b32.xlu0 %v3003, 1
        %v3718 = vpop.permute.xlu0 %3717
        %3719 = vrot.lane.b32.xlu0 %v3009, 1
        %v3720 = vpop.permute.xlu0 %3719
        %3721 = vrot.lane.b32.xlu0 %v3015, 1
        %v3722 = vpop.permute.xlu0 %3721
        %3723 = vrot.lane.b32.xlu0 %v3021, 1
        %v3724 = vpop.permute.xlu0 %3723
        %3725 = vrot.lane.b32.xlu0 %v3027, 1
        %v3726 = vpop.permute.xlu0 %3725
        %3727 = vrot.lane.b32.xlu0 %v2963, 1
        %v3728 = vpop.permute.xlu0 %3727
        %3729 = vrot.lane.b32.xlu0 %v2969, 1
        %v3730 = vpop.permute.xlu0 %3729
        %3731 = vrot.lane.b32.xlu0 %v2975, 1
        %v3732 = vpop.permute.xlu0 %3731
        %3733 = vrot.lane.b32.xlu0 %v2981, 1
        %v3734 = vpop.permute.xlu0 %3733
        %3735 = vrot.lane.b32.xlu0 %v2987, 1
        %v3736 = vpop.permute.xlu0 %3735
        %3737 = vrot.lane.b32.xlu0 %v2993, 1
        %v3738 = vpop.permute.xlu0 %3737
        %3739 = vrot.lane.b32.xlu0 %v2999, 1
        %v3740 = vpop.permute.xlu0 %3739
        %3741 = vrot.lane.b32.xlu0 %v3005, 1
        %v3742 = vpop.permute.xlu0 %3741
        %3743 = vrot.lane.b32.xlu0 %v3011, 1
        %v3744 = vpop.permute.xlu0 %3743
        %3745 = vrot.lane.b32.xlu0 %v3017, 1
        %v3746 = vpop.permute.xlu0 %3745
        %3747 = vrot.lane.b32.xlu0 %v3023, 1
        %v3748 = vpop.permute.xlu0 %3747
        %3749 = vrot.lane.b32.xlu0 %v3029, 1
        %v3750 = vpop.permute.xlu0 %3749
        %v3751 = vsel %vm1405, %v3704, %v3728
        %v3752 = vsel %vm1405, %v3706, %v3730
        %v3753 = vsel %vm1405, %v3708, %v3732
        %v3754 = vsel %vm1405, %v3710, %v3734
        %v3755 = vsel %vm1405, %v3712, %v3736
        %v3756 = vsel %vm1405, %v3714, %v3738
        %v3757 = vsel %vm1405, %v3716, %v3740
        %v3758 = vsel %vm1405, %v3718, %v3742
        %v3759 = vsel %vm1405, %v3720, %v3744
        %v3760 = vsel %vm1405, %v3722, %v3746
        %v3761 = vsel %vm1405, %v3724, %v3748
        %v3762 = vsel %vm1405, %v3726, %v3750
        %v3763 = vsel %vm1405, %v3728, %v3704
        %v3764 = vsel %vm1405, %v3730, %v3706
        %v3765 = vsel %vm1405, %v3732, %v3708
        %v3766 = vsel %vm1405, %v3734, %v3710
        %v3767 = vsel %vm1405, %v3736, %v3712
        %v3768 = vsel %vm1405, %v3738, %v3714
        %v3769 = vsel %vm1405, %v3740, %v3716
        %v3770 = vsel %vm1405, %v3742, %v3718
        %v3771 = vsel %vm1405, %v3744, %v3720
        %v3772 = vsel %vm1405, %v3746, %v3722
        %v3773 = vsel %vm1405, %v3748, %v3724
        %v3774 = vsel %vm1405, %v3750, %v3726
        %v3775 = vmul.f32 %v1433, %v3763
        %v3776 = vmul.f32 %v1437, %v3751
        %v3777 = vmul.f32 %v1433, %v3764
        %v3778 = vmul.f32 %v1437, %v3752
        %v3779 = vmul.f32 %v1433, %v3765
        %v3780 = vmul.f32 %v1437, %v3753
        %v3781 = vmul.f32 %v1433, %v3766
        %v3782 = vmul.f32 %v1437, %v3754
        %v3783 = vmul.f32 %v1433, %v3767
        %v3784 = vmul.f32 %v1437, %v3755
        %v3785 = vmul.f32 %v1433, %v3768
        %v3786 = vmul.f32 %v1437, %v3756
        %v3787 = vmul.f32 %v1433, %v3769
        %v3788 = vmul.f32 %v1437, %v3757
        %v3789 = vmul.f32 %v1433, %v3770
        %v3790 = vmul.f32 %v1437, %v3758
        %v3791 = vmul.f32 %v1433, %v3771
        %v3792 = vmul.f32 %v1437, %v3759
        %v3793 = vmul.f32 %v1433, %v3772
        %v3794 = vmul.f32 %v1437, %v3760
        %v3795 = vmul.f32 %v1433, %v3773
        %v3796 = vmul.f32 %v1437, %v3761
        %v3797 = vmul.f32 %v1433, %v3774
        %v3798 = vmul.f32 %v1437, %v3762
        %3799 = vset.pattern.permute.xlu0 3
        %3800 = vperm.xlu0 %3799, %v3031
        %v3801 = vpop.permute.xlu0 %3800
        %3803 = vset.pattern.permute.xlu0 3
        %3804 = vperm.xlu0 %3803, %v3032
        %v3805 = vpop.permute.xlu0 %3804
        %3807 = vset.pattern.permute.xlu0 3
        %3808 = vperm.xlu0 %3807, %v3033
        %v3809 = vpop.permute.xlu0 %3808
        %3811 = vset.pattern.permute.xlu0 3
        %3812 = vperm.xlu0 %3811, %v3034
        %v3813 = vpop.permute.xlu0 %3812
        %3815 = vset.pattern.permute.xlu0 3
        %3816 = vperm.xlu0 %3815, %v3035
        %v3817 = vpop.permute.xlu0 %3816
        %3819 = vset.pattern.permute.xlu0 3
        %3820 = vperm.xlu0 %3819, %v3036
        %v3821 = vpop.permute.xlu0 %3820
        %3823 = vset.pattern.permute.xlu0 3
        %3824 = vperm.xlu0 %3823, %v3037
        %v3825 = vpop.permute.xlu0 %3824
        %3827 = vset.pattern.permute.xlu0 3
        %3828 = vperm.xlu0 %3827, %v3038
        %v3829 = vpop.permute.xlu0 %3828
        %3831 = vset.pattern.permute.xlu0 3
        %3832 = vperm.xlu0 %3831, %v3039
        %v3833 = vpop.permute.xlu0 %3832
        %3835 = vset.pattern.permute.xlu0 3
        %3836 = vperm.xlu0 %3835, %v3040
        %v3837 = vpop.permute.xlu0 %3836
        %3839 = vset.pattern.permute.xlu0 3
        %3840 = vperm.xlu0 %3839, %v3041
        %v3841 = vpop.permute.xlu0 %3840
        %3843 = vset.pattern.permute.xlu0 3
        %3844 = vperm.xlu0 %3843, %v3042
        %v3845 = vpop.permute.xlu0 %3844
        %v3847 = vmul.f32 %v3801, %v3775
        %v3848 = vmul.f32 %v3801, %v3776
        %v3849 = vmul.f32 %v3805, %v3777
        %v3850 = vmul.f32 %v3805, %v3778
        %v3851 = vmul.f32 %v3809, %v3779
        %v3852 = vmul.f32 %v3809, %v3780
        %v3853 = vmul.f32 %v3813, %v3781
        %v3854 = vmul.f32 %v3813, %v3782
        %v3855 = vmul.f32 %v3817, %v3783
        %v3856 = vmul.f32 %v3817, %v3784
        %v3857 = vmul.f32 %v3821, %v3785
        %v3858 = vmul.f32 %v3821, %v3786
        %v3859 = vmul.f32 %v3825, %v3787
        %v3860 = vmul.f32 %v3825, %v3788
        %v3861 = vmul.f32 %v3829, %v3789
        %v3862 = vmul.f32 %v3829, %v3790
        %v3863 = vmul.f32 %v3833, %v3791
        %v3864 = vmul.f32 %v3833, %v3792
        %v3865 = vmul.f32 %v3837, %v3793
        %v3866 = vmul.f32 %v3837, %v3794
        %v3867 = vmul.f32 %v3841, %v3795
        %v3868 = vmul.f32 %v3841, %v3796
        %v3869 = vmul.f32 %v3845, %v3797
        %v3870 = vmul.f32 %v3845, %v3798
        %v3871 = vadd.f32 %v3679, %v3847
        %v3872 = vadd.f32 %v3680, %v3848
        %v3873 = vadd.f32 %v3681, %v3849
        %v3874 = vadd.f32 %v3682, %v3850
        %v3875 = vadd.f32 %v3683, %v3851
        %v3876 = vadd.f32 %v3684, %v3852
        %v3877 = vadd.f32 %v3685, %v3853
        %v3878 = vadd.f32 %v3686, %v3854
        %v3879 = vadd.f32 %v3687, %v3855
        %v3880 = vadd.f32 %v3688, %v3856
        %v3881 = vadd.f32 %v3689, %v3857
        %v3882 = vadd.f32 %v3690, %v3858
        %v3883 = vadd.f32 %v3691, %v3859
        %v3884 = vadd.f32 %v3692, %v3860
        %v3885 = vadd.f32 %v3693, %v3861
        %v3886 = vadd.f32 %v3694, %v3862
        %v3887 = vadd.f32 %v3695, %v3863
        %v3888 = vadd.f32 %v3696, %v3864
        %v3889 = vadd.f32 %v3697, %v3865
        %v3890 = vadd.f32 %v3698, %v3866
        %v3891 = vadd.f32 %v3699, %v3867
        %v3892 = vadd.f32 %v3700, %v3868
        %v3893 = vadd.f32 %v3701, %v3869
        %v3894 = vadd.f32 %v3702, %v3870
        %3895 = vrot.lane.b32.xlu0 %v2961, 127
        %v3896 = vpop.permute.xlu0 %3895
        %3897 = vrot.lane.b32.xlu0 %v2967, 127
        %v3898 = vpop.permute.xlu0 %3897
        %3899 = vrot.lane.b32.xlu0 %v2973, 127
        %v3900 = vpop.permute.xlu0 %3899
        %3901 = vrot.lane.b32.xlu0 %v2979, 127
        %v3902 = vpop.permute.xlu0 %3901
        %3903 = vrot.lane.b32.xlu0 %v2985, 127
        %v3904 = vpop.permute.xlu0 %3903
        %3905 = vrot.lane.b32.xlu0 %v2991, 127
        %v3906 = vpop.permute.xlu0 %3905
        %3907 = vrot.lane.b32.xlu0 %v2997, 127
        %v3908 = vpop.permute.xlu0 %3907
        %3909 = vrot.lane.b32.xlu0 %v3003, 127
        %v3910 = vpop.permute.xlu0 %3909
        %3911 = vrot.lane.b32.xlu0 %v3009, 127
        %v3912 = vpop.permute.xlu0 %3911
        %3913 = vrot.lane.b32.xlu0 %v3015, 127
        %v3914 = vpop.permute.xlu0 %3913
        %3915 = vrot.lane.b32.xlu0 %v3021, 127
        %v3916 = vpop.permute.xlu0 %3915
        %3917 = vrot.lane.b32.xlu0 %v3027, 127
        %v3918 = vpop.permute.xlu0 %3917
        %3919 = vrot.lane.b32.xlu0 %v2963, 127
        %v3920 = vpop.permute.xlu0 %3919
        %3921 = vrot.lane.b32.xlu0 %v2969, 127
        %v3922 = vpop.permute.xlu0 %3921
        %3923 = vrot.lane.b32.xlu0 %v2975, 127
        %v3924 = vpop.permute.xlu0 %3923
        %3925 = vrot.lane.b32.xlu0 %v2981, 127
        %v3926 = vpop.permute.xlu0 %3925
        %3927 = vrot.lane.b32.xlu0 %v2987, 127
        %v3928 = vpop.permute.xlu0 %3927
        %3929 = vrot.lane.b32.xlu0 %v2993, 127
        %v3930 = vpop.permute.xlu0 %3929
        %3931 = vrot.lane.b32.xlu0 %v2999, 127
        %v3932 = vpop.permute.xlu0 %3931
        %3933 = vrot.lane.b32.xlu0 %v3005, 127
        %v3934 = vpop.permute.xlu0 %3933
        %3935 = vrot.lane.b32.xlu0 %v3011, 127
        %v3936 = vpop.permute.xlu0 %3935
        %3937 = vrot.lane.b32.xlu0 %v3017, 127
        %v3938 = vpop.permute.xlu0 %3937
        %3939 = vrot.lane.b32.xlu0 %v3023, 127
        %v3940 = vpop.permute.xlu0 %3939
        %3941 = vrot.lane.b32.xlu0 %v3029, 127
        %v3942 = vpop.permute.xlu0 %3941
        %v3943 = vsel %vm1606, %v3896, %v3920
        %v3944 = vsel %vm1606, %v3898, %v3922
        %v3945 = vsel %vm1606, %v3900, %v3924
        %v3946 = vsel %vm1606, %v3902, %v3926
        %v3947 = vsel %vm1606, %v3904, %v3928
        %v3948 = vsel %vm1606, %v3906, %v3930
        %v3949 = vsel %vm1606, %v3908, %v3932
        %v3950 = vsel %vm1606, %v3910, %v3934
        %v3951 = vsel %vm1606, %v3912, %v3936
        %v3952 = vsel %vm1606, %v3914, %v3938
        %v3953 = vsel %vm1606, %v3916, %v3940
        %v3954 = vsel %vm1606, %v3918, %v3942
        %v3955 = vsel %vm1606, %v3920, %v3896
        %v3956 = vsel %vm1606, %v3922, %v3898
        %v3957 = vsel %vm1606, %v3924, %v3900
        %v3958 = vsel %vm1606, %v3926, %v3902
        %v3959 = vsel %vm1606, %v3928, %v3904
        %v3960 = vsel %vm1606, %v3930, %v3906
        %v3961 = vsel %vm1606, %v3932, %v3908
        %v3962 = vsel %vm1606, %v3934, %v3910
        %v3963 = vsel %vm1606, %v3936, %v3912
        %v3964 = vsel %vm1606, %v3938, %v3914
        %v3965 = vsel %vm1606, %v3940, %v3916
        %v3966 = vsel %vm1606, %v3942, %v3918
        %v3967 = vmul.f32 %v1634, %v3943
        %v3968 = vmul.f32 %v1638, %v3955
        %v3969 = vmul.f32 %v1634, %v3944
        %v3970 = vmul.f32 %v1638, %v3956
        %v3971 = vmul.f32 %v1634, %v3945
        %v3972 = vmul.f32 %v1638, %v3957
        %v3973 = vmul.f32 %v1634, %v3946
        %v3974 = vmul.f32 %v1638, %v3958
        %v3975 = vmul.f32 %v1634, %v3947
        %v3976 = vmul.f32 %v1638, %v3959
        %v3977 = vmul.f32 %v1634, %v3948
        %v3978 = vmul.f32 %v1638, %v3960
        %v3979 = vmul.f32 %v1634, %v3949
        %v3980 = vmul.f32 %v1638, %v3961
        %v3981 = vmul.f32 %v1634, %v3950
        %v3982 = vmul.f32 %v1638, %v3962
        %v3983 = vmul.f32 %v1634, %v3951
        %v3984 = vmul.f32 %v1638, %v3963
        %v3985 = vmul.f32 %v1634, %v3952
        %v3986 = vmul.f32 %v1638, %v3964
        %v3987 = vmul.f32 %v1634, %v3953
        %v3988 = vmul.f32 %v1638, %v3965
        %v3989 = vmul.f32 %v1634, %v3954
        %v3990 = vmul.f32 %v1638, %v3966
        %3991 = vset.pattern.permute.xlu0 5
        %3992 = vperm.xlu0 %3991, %v3031
        %v3993 = vpop.permute.xlu0 %3992
        %3995 = vset.pattern.permute.xlu0 5
        %3996 = vperm.xlu0 %3995, %v3032
        %v3997 = vpop.permute.xlu0 %3996
        %3999 = vset.pattern.permute.xlu0 5
        %4000 = vperm.xlu0 %3999, %v3033
        %v4001 = vpop.permute.xlu0 %4000
        %4003 = vset.pattern.permute.xlu0 5
        %4004 = vperm.xlu0 %4003, %v3034
        %v4005 = vpop.permute.xlu0 %4004
        %4007 = vset.pattern.permute.xlu0 5
        %4008 = vperm.xlu0 %4007, %v3035
        %v4009 = vpop.permute.xlu0 %4008
        %4011 = vset.pattern.permute.xlu0 5
        %4012 = vperm.xlu0 %4011, %v3036
        %v4013 = vpop.permute.xlu0 %4012
        %4015 = vset.pattern.permute.xlu0 5
        %4016 = vperm.xlu0 %4015, %v3037
        %v4017 = vpop.permute.xlu0 %4016
        %4019 = vset.pattern.permute.xlu0 5
        %4020 = vperm.xlu0 %4019, %v3038
        %v4021 = vpop.permute.xlu0 %4020
        %4023 = vset.pattern.permute.xlu0 5
        %4024 = vperm.xlu0 %4023, %v3039
        %v4025 = vpop.permute.xlu0 %4024
        %4027 = vset.pattern.permute.xlu0 5
        %4028 = vperm.xlu0 %4027, %v3040
        %v4029 = vpop.permute.xlu0 %4028
        %4031 = vset.pattern.permute.xlu0 5
        %4032 = vperm.xlu0 %4031, %v3041
        %v4033 = vpop.permute.xlu0 %4032
        %4035 = vset.pattern.permute.xlu0 5
        %4036 = vperm.xlu0 %4035, %v3042
        %v4037 = vpop.permute.xlu0 %4036
        %v4039 = vmul.f32 %v3993, %v3967
        %v4040 = vmul.f32 %v3993, %v3968
        %v4041 = vmul.f32 %v3997, %v3969
        %v4042 = vmul.f32 %v3997, %v3970
        %v4043 = vmul.f32 %v4001, %v3971
        %v4044 = vmul.f32 %v4001, %v3972
        %v4045 = vmul.f32 %v4005, %v3973
        %v4046 = vmul.f32 %v4005, %v3974
        %v4047 = vmul.f32 %v4009, %v3975
        %v4048 = vmul.f32 %v4009, %v3976
        %v4049 = vmul.f32 %v4013, %v3977
        %v4050 = vmul.f32 %v4013, %v3978
        %v4051 = vmul.f32 %v4017, %v3979
        %v4052 = vmul.f32 %v4017, %v3980
        %v4053 = vmul.f32 %v4021, %v3981
        %v4054 = vmul.f32 %v4021, %v3982
        %v4055 = vmul.f32 %v4025, %v3983
        %v4056 = vmul.f32 %v4025, %v3984
        %v4057 = vmul.f32 %v4029, %v3985
        %v4058 = vmul.f32 %v4029, %v3986
        %v4059 = vmul.f32 %v4033, %v3987
        %v4060 = vmul.f32 %v4033, %v3988
        %v4061 = vmul.f32 %v4037, %v3989
        %v4062 = vmul.f32 %v4037, %v3990
        %v4063 = vadd.f32 %v3871, %v4039
        %v4064 = vadd.f32 %v3872, %v4040
        %v4065 = vadd.f32 %v3873, %v4041
        %v4066 = vadd.f32 %v3874, %v4042
        %v4067 = vadd.f32 %v3875, %v4043
        %v4068 = vadd.f32 %v3876, %v4044
        %v4069 = vadd.f32 %v3877, %v4045
        %v4070 = vadd.f32 %v3878, %v4046
        %v4071 = vadd.f32 %v3879, %v4047
        %v4072 = vadd.f32 %v3880, %v4048
        %v4073 = vadd.f32 %v3881, %v4049
        %v4074 = vadd.f32 %v3882, %v4050
        %v4075 = vadd.f32 %v3883, %v4051
        %v4076 = vadd.f32 %v3884, %v4052
        %v4077 = vadd.f32 %v3885, %v4053
        %v4078 = vadd.f32 %v3886, %v4054
        %v4079 = vadd.f32 %v3887, %v4055
        %v4080 = vadd.f32 %v3888, %v4056
        %v4081 = vadd.f32 %v3889, %v4057
        %v4082 = vadd.f32 %v3890, %v4058
        %v4083 = vadd.f32 %v3891, %v4059
        %v4084 = vadd.f32 %v3892, %v4060
        %v4085 = vadd.f32 %v3893, %v4061
        %v4086 = vadd.f32 %v3894, %v4062
        %4087 = vrot.lane.b32.xlu0 %v2961, 113
        %v4088 = vpop.permute.xlu0 %4087
        %4089 = vrot.lane.b32.xlu0 %v2967, 113
        %v4090 = vpop.permute.xlu0 %4089
        %4091 = vrot.lane.b32.xlu0 %v2973, 113
        %v4092 = vpop.permute.xlu0 %4091
        %4093 = vrot.lane.b32.xlu0 %v2979, 113
        %v4094 = vpop.permute.xlu0 %4093
        %4095 = vrot.lane.b32.xlu0 %v2985, 113
        %v4096 = vpop.permute.xlu0 %4095
        %4097 = vrot.lane.b32.xlu0 %v2991, 113
        %v4098 = vpop.permute.xlu0 %4097
        %4099 = vrot.lane.b32.xlu0 %v2997, 113
        %v4100 = vpop.permute.xlu0 %4099
        %4101 = vrot.lane.b32.xlu0 %v3003, 113
        %v4102 = vpop.permute.xlu0 %4101
        %4103 = vrot.lane.b32.xlu0 %v3009, 113
        %v4104 = vpop.permute.xlu0 %4103
        %4105 = vrot.lane.b32.xlu0 %v3015, 113
        %v4106 = vpop.permute.xlu0 %4105
        %4107 = vrot.lane.b32.xlu0 %v3021, 113
        %v4108 = vpop.permute.xlu0 %4107
        %4109 = vrot.lane.b32.xlu0 %v3027, 113
        %v4110 = vpop.permute.xlu0 %4109
        %4111 = vrot.lane.b32.xlu0 %v2963, 113
        %v4112 = vpop.permute.xlu0 %4111
        %4113 = vrot.lane.b32.xlu0 %v2969, 113
        %v4114 = vpop.permute.xlu0 %4113
        %4115 = vrot.lane.b32.xlu0 %v2975, 113
        %v4116 = vpop.permute.xlu0 %4115
        %4117 = vrot.lane.b32.xlu0 %v2981, 113
        %v4118 = vpop.permute.xlu0 %4117
        %4119 = vrot.lane.b32.xlu0 %v2987, 113
        %v4120 = vpop.permute.xlu0 %4119
        %4121 = vrot.lane.b32.xlu0 %v2993, 113
        %v4122 = vpop.permute.xlu0 %4121
        %4123 = vrot.lane.b32.xlu0 %v2999, 113
        %v4124 = vpop.permute.xlu0 %4123
        %4125 = vrot.lane.b32.xlu0 %v3005, 113
        %v4126 = vpop.permute.xlu0 %4125
        %4127 = vrot.lane.b32.xlu0 %v3011, 113
        %v4128 = vpop.permute.xlu0 %4127
        %4129 = vrot.lane.b32.xlu0 %v3017, 113
        %v4130 = vpop.permute.xlu0 %4129
        %4131 = vrot.lane.b32.xlu0 %v3023, 113
        %v4132 = vpop.permute.xlu0 %4131
        %4133 = vrot.lane.b32.xlu0 %v3029, 113
        %v4134 = vpop.permute.xlu0 %4133
        %v4135 = vsel %vm1807, %v4088, %v4112
        %v4136 = vsel %vm1807, %v4090, %v4114
        %v4137 = vsel %vm1807, %v4092, %v4116
        %v4138 = vsel %vm1807, %v4094, %v4118
        %v4139 = vsel %vm1807, %v4096, %v4120
        %v4140 = vsel %vm1807, %v4098, %v4122
        %v4141 = vsel %vm1807, %v4100, %v4124
        %v4142 = vsel %vm1807, %v4102, %v4126
        %v4143 = vsel %vm1807, %v4104, %v4128
        %v4144 = vsel %vm1807, %v4106, %v4130
        %v4145 = vsel %vm1807, %v4108, %v4132
        %v4146 = vsel %vm1807, %v4110, %v4134
        %v4147 = vsel %vm1807, %v4112, %v4088
        %v4148 = vsel %vm1807, %v4114, %v4090
        %v4149 = vsel %vm1807, %v4116, %v4092
        %v4150 = vsel %vm1807, %v4118, %v4094
        %v4151 = vsel %vm1807, %v4120, %v4096
        %v4152 = vsel %vm1807, %v4122, %v4098
        %v4153 = vsel %vm1807, %v4124, %v4100
        %v4154 = vsel %vm1807, %v4126, %v4102
        %v4155 = vsel %vm1807, %v4128, %v4104
        %v4156 = vsel %vm1807, %v4130, %v4106
        %v4157 = vsel %vm1807, %v4132, %v4108
        %v4158 = vsel %vm1807, %v4134, %v4110
        %v4159 = vmul.f32 %v1835, %v4135
        %v4160 = vmul.f32 %v1839, %v4147
        %v4161 = vmul.f32 %v1835, %v4136
        %v4162 = vmul.f32 %v1839, %v4148
        %v4163 = vmul.f32 %v1835, %v4137
        %v4164 = vmul.f32 %v1839, %v4149
        %v4165 = vmul.f32 %v1835, %v4138
        %v4166 = vmul.f32 %v1839, %v4150
        %v4167 = vmul.f32 %v1835, %v4139
        %v4168 = vmul.f32 %v1839, %v4151
        %v4169 = vmul.f32 %v1835, %v4140
        %v4170 = vmul.f32 %v1839, %v4152
        %v4171 = vmul.f32 %v1835, %v4141
        %v4172 = vmul.f32 %v1839, %v4153
        %v4173 = vmul.f32 %v1835, %v4142
        %v4174 = vmul.f32 %v1839, %v4154
        %v4175 = vmul.f32 %v1835, %v4143
        %v4176 = vmul.f32 %v1839, %v4155
        %v4177 = vmul.f32 %v1835, %v4144
        %v4178 = vmul.f32 %v1839, %v4156
        %v4179 = vmul.f32 %v1835, %v4145
        %v4180 = vmul.f32 %v1839, %v4157
        %v4181 = vmul.f32 %v1835, %v4146
        %v4182 = vmul.f32 %v1839, %v4158
        %4183 = vset.pattern.permute.xlu0 6
        %4184 = vperm.xlu0 %4183, %v3031
        %v4185 = vpop.permute.xlu0 %4184
        %4187 = vset.pattern.permute.xlu0 6
        %4188 = vperm.xlu0 %4187, %v3032
        %v4189 = vpop.permute.xlu0 %4188
        %4191 = vset.pattern.permute.xlu0 6
        %4192 = vperm.xlu0 %4191, %v3033
        %v4193 = vpop.permute.xlu0 %4192
        %4195 = vset.pattern.permute.xlu0 6
        %4196 = vperm.xlu0 %4195, %v3034
        %v4197 = vpop.permute.xlu0 %4196
        %4199 = vset.pattern.permute.xlu0 6
        %4200 = vperm.xlu0 %4199, %v3035
        %v4201 = vpop.permute.xlu0 %4200
        %4203 = vset.pattern.permute.xlu0 6
        %4204 = vperm.xlu0 %4203, %v3036
        %v4205 = vpop.permute.xlu0 %4204
        %4207 = vset.pattern.permute.xlu0 6
        %4208 = vperm.xlu0 %4207, %v3037
        %v4209 = vpop.permute.xlu0 %4208
        %4211 = vset.pattern.permute.xlu0 6
        %4212 = vperm.xlu0 %4211, %v3038
        %v4213 = vpop.permute.xlu0 %4212
        %4215 = vset.pattern.permute.xlu0 6
        %4216 = vperm.xlu0 %4215, %v3039
        %v4217 = vpop.permute.xlu0 %4216
        %4219 = vset.pattern.permute.xlu0 6
        %4220 = vperm.xlu0 %4219, %v3040
        %v4221 = vpop.permute.xlu0 %4220
        %4223 = vset.pattern.permute.xlu0 6
        %4224 = vperm.xlu0 %4223, %v3041
        %v4225 = vpop.permute.xlu0 %4224
        %4227 = vset.pattern.permute.xlu0 6
        %4228 = vperm.xlu0 %4227, %v3042
        %v4229 = vpop.permute.xlu0 %4228
        %v4231 = vmul.f32 %v4185, %v4159
        %v4232 = vmul.f32 %v4185, %v4160
        %v4233 = vmul.f32 %v4189, %v4161
        %v4234 = vmul.f32 %v4189, %v4162
        %v4235 = vmul.f32 %v4193, %v4163
        %v4236 = vmul.f32 %v4193, %v4164
        %v4237 = vmul.f32 %v4197, %v4165
        %v4238 = vmul.f32 %v4197, %v4166
        %v4239 = vmul.f32 %v4201, %v4167
        %v4240 = vmul.f32 %v4201, %v4168
        %v4241 = vmul.f32 %v4205, %v4169
        %v4242 = vmul.f32 %v4205, %v4170
        %v4243 = vmul.f32 %v4209, %v4171
        %v4244 = vmul.f32 %v4209, %v4172
        %v4245 = vmul.f32 %v4213, %v4173
        %v4246 = vmul.f32 %v4213, %v4174
        %v4247 = vmul.f32 %v4217, %v4175
        %v4248 = vmul.f32 %v4217, %v4176
        %v4249 = vmul.f32 %v4221, %v4177
        %v4250 = vmul.f32 %v4221, %v4178
        %v4251 = vmul.f32 %v4225, %v4179
        %v4252 = vmul.f32 %v4225, %v4180
        %v4253 = vmul.f32 %v4229, %v4181
        %v4254 = vmul.f32 %v4229, %v4182
        %v4255 = vadd.f32 %v4063, %v4231
        %v4256 = vadd.f32 %v4064, %v4232
        %v4257 = vadd.f32 %v4065, %v4233
        %v4258 = vadd.f32 %v4066, %v4234
        %v4259 = vadd.f32 %v4067, %v4235
        %v4260 = vadd.f32 %v4068, %v4236
        %v4261 = vadd.f32 %v4069, %v4237
        %v4262 = vadd.f32 %v4070, %v4238
        %v4263 = vadd.f32 %v4071, %v4239
        %v4264 = vadd.f32 %v4072, %v4240
        %v4265 = vadd.f32 %v4073, %v4241
        %v4266 = vadd.f32 %v4074, %v4242
        %v4267 = vadd.f32 %v4075, %v4243
        %v4268 = vadd.f32 %v4076, %v4244
        %v4269 = vadd.f32 %v4077, %v4245
        %v4270 = vadd.f32 %v4078, %v4246
        %v4271 = vadd.f32 %v4079, %v4247
        %v4272 = vadd.f32 %v4080, %v4248
        %v4273 = vadd.f32 %v4081, %v4249
        %v4274 = vadd.f32 %v4082, %v4250
        %v4275 = vadd.f32 %v4083, %v4251
        %v4276 = vadd.f32 %v4084, %v4252
        %v4277 = vadd.f32 %v4085, %v4253
        %v4278 = vadd.f32 %v4086, %v4254
        %4279 = vrot.lane.b32.xlu0 %v2961, 112
        %v4280 = vpop.permute.xlu0 %4279
        %4281 = vrot.lane.b32.xlu0 %v2967, 112
        %v4282 = vpop.permute.xlu0 %4281
        %4283 = vrot.lane.b32.xlu0 %v2973, 112
        %v4284 = vpop.permute.xlu0 %4283
        %4285 = vrot.lane.b32.xlu0 %v2979, 112
        %v4286 = vpop.permute.xlu0 %4285
        %4287 = vrot.lane.b32.xlu0 %v2985, 112
        %v4288 = vpop.permute.xlu0 %4287
        %4289 = vrot.lane.b32.xlu0 %v2991, 112
        %v4290 = vpop.permute.xlu0 %4289
        %4291 = vrot.lane.b32.xlu0 %v2997, 112
        %v4292 = vpop.permute.xlu0 %4291
        %4293 = vrot.lane.b32.xlu0 %v3003, 112
        %v4294 = vpop.permute.xlu0 %4293
        %4295 = vrot.lane.b32.xlu0 %v3009, 112
        %v4296 = vpop.permute.xlu0 %4295
        %4297 = vrot.lane.b32.xlu0 %v3015, 112
        %v4298 = vpop.permute.xlu0 %4297
        %4299 = vrot.lane.b32.xlu0 %v3021, 112
        %v4300 = vpop.permute.xlu0 %4299
        %4301 = vrot.lane.b32.xlu0 %v3027, 112
        %v4302 = vpop.permute.xlu0 %4301
        %4303 = vrot.lane.b32.xlu0 %v2963, 112
        %v4304 = vpop.permute.xlu0 %4303
        %4305 = vrot.lane.b32.xlu0 %v2969, 112
        %v4306 = vpop.permute.xlu0 %4305
        %4307 = vrot.lane.b32.xlu0 %v2975, 112
        %v4308 = vpop.permute.xlu0 %4307
        %4309 = vrot.lane.b32.xlu0 %v2981, 112
        %v4310 = vpop.permute.xlu0 %4309
        %4311 = vrot.lane.b32.xlu0 %v2987, 112
        %v4312 = vpop.permute.xlu0 %4311
        %4313 = vrot.lane.b32.xlu0 %v2993, 112
        %v4314 = vpop.permute.xlu0 %4313
        %4315 = vrot.lane.b32.xlu0 %v2999, 112
        %v4316 = vpop.permute.xlu0 %4315
        %4317 = vrot.lane.b32.xlu0 %v3005, 112
        %v4318 = vpop.permute.xlu0 %4317
        %4319 = vrot.lane.b32.xlu0 %v3011, 112
        %v4320 = vpop.permute.xlu0 %4319
        %4321 = vrot.lane.b32.xlu0 %v3017, 112
        %v4322 = vpop.permute.xlu0 %4321
        %4323 = vrot.lane.b32.xlu0 %v3023, 112
        %v4324 = vpop.permute.xlu0 %4323
        %4325 = vrot.lane.b32.xlu0 %v3029, 112
        %v4326 = vpop.permute.xlu0 %4325
        %v4327 = vsel %vm2008, %v4280, %v4304
        %v4328 = vsel %vm2008, %v4282, %v4306
        %v4329 = vsel %vm2008, %v4284, %v4308
        %v4330 = vsel %vm2008, %v4286, %v4310
        %v4331 = vsel %vm2008, %v4288, %v4312
        %v4332 = vsel %vm2008, %v4290, %v4314
        %v4333 = vsel %vm2008, %v4292, %v4316
        %v4334 = vsel %vm2008, %v4294, %v4318
        %v4335 = vsel %vm2008, %v4296, %v4320
        %v4336 = vsel %vm2008, %v4298, %v4322
        %v4337 = vsel %vm2008, %v4300, %v4324
        %v4338 = vsel %vm2008, %v4302, %v4326
        %v4339 = vsel %vm2008, %v4304, %v4280
        %v4340 = vsel %vm2008, %v4306, %v4282
        %v4341 = vsel %vm2008, %v4308, %v4284
        %v4342 = vsel %vm2008, %v4310, %v4286
        %v4343 = vsel %vm2008, %v4312, %v4288
        %v4344 = vsel %vm2008, %v4314, %v4290
        %v4345 = vsel %vm2008, %v4316, %v4292
        %v4346 = vsel %vm2008, %v4318, %v4294
        %v4347 = vsel %vm2008, %v4320, %v4296
        %v4348 = vsel %vm2008, %v4322, %v4298
        %v4349 = vsel %vm2008, %v4324, %v4300
        %v4350 = vsel %vm2008, %v4326, %v4302
        %v4351 = vmul.f32 %v2036, %v4327
        %v4352 = vmul.f32 %v2040, %v4339
        %v4353 = vmul.f32 %v2036, %v4328
        %v4354 = vmul.f32 %v2040, %v4340
        %v4355 = vmul.f32 %v2036, %v4329
        %v4356 = vmul.f32 %v2040, %v4341
        %v4357 = vmul.f32 %v2036, %v4330
        %v4358 = vmul.f32 %v2040, %v4342
        %v4359 = vmul.f32 %v2036, %v4331
        %v4360 = vmul.f32 %v2040, %v4343
        %v4361 = vmul.f32 %v2036, %v4332
        %v4362 = vmul.f32 %v2040, %v4344
        %v4363 = vmul.f32 %v2036, %v4333
        %v4364 = vmul.f32 %v2040, %v4345
        %v4365 = vmul.f32 %v2036, %v4334
        %v4366 = vmul.f32 %v2040, %v4346
        %v4367 = vmul.f32 %v2036, %v4335
        %v4368 = vmul.f32 %v2040, %v4347
        %v4369 = vmul.f32 %v2036, %v4336
        %v4370 = vmul.f32 %v2040, %v4348
        %v4371 = vmul.f32 %v2036, %v4337
        %v4372 = vmul.f32 %v2040, %v4349
        %v4373 = vmul.f32 %v2036, %v4338
        %v4374 = vmul.f32 %v2040, %v4350
        %4375 = vset.pattern.permute.xlu0 7
        %4376 = vperm.xlu0 %4375, %v3031
        %v4377 = vpop.permute.xlu0 %4376
        %4379 = vset.pattern.permute.xlu0 7
        %4380 = vperm.xlu0 %4379, %v3032
        %v4381 = vpop.permute.xlu0 %4380
        %4383 = vset.pattern.permute.xlu0 7
        %4384 = vperm.xlu0 %4383, %v3033
        %v4385 = vpop.permute.xlu0 %4384
        %4387 = vset.pattern.permute.xlu0 7
        %4388 = vperm.xlu0 %4387, %v3034
        %v4389 = vpop.permute.xlu0 %4388
        %4391 = vset.pattern.permute.xlu0 7
        %4392 = vperm.xlu0 %4391, %v3035
        %v4393 = vpop.permute.xlu0 %4392
        %4395 = vset.pattern.permute.xlu0 7
        %4396 = vperm.xlu0 %4395, %v3036
        %v4397 = vpop.permute.xlu0 %4396
        %4399 = vset.pattern.permute.xlu0 7
        %4400 = vperm.xlu0 %4399, %v3037
        %v4401 = vpop.permute.xlu0 %4400
        %4403 = vset.pattern.permute.xlu0 7
        %4404 = vperm.xlu0 %4403, %v3038
        %v4405 = vpop.permute.xlu0 %4404
        %4407 = vset.pattern.permute.xlu0 7
        %4408 = vperm.xlu0 %4407, %v3039
        %v4409 = vpop.permute.xlu0 %4408
        %4411 = vset.pattern.permute.xlu0 7
        %4412 = vperm.xlu0 %4411, %v3040
        %v4413 = vpop.permute.xlu0 %4412
        %4415 = vset.pattern.permute.xlu0 7
        %4416 = vperm.xlu0 %4415, %v3041
        %v4417 = vpop.permute.xlu0 %4416
        %4419 = vset.pattern.permute.xlu0 7
        %4420 = vperm.xlu0 %4419, %v3042
        %v4421 = vpop.permute.xlu0 %4420
        %v4423 = vmul.f32 %v4377, %v4351
        %v4424 = vmul.f32 %v4377, %v4352
        %v4425 = vmul.f32 %v4381, %v4353
        %v4426 = vmul.f32 %v4381, %v4354
        %v4427 = vmul.f32 %v4385, %v4355
        %v4428 = vmul.f32 %v4385, %v4356
        %v4429 = vmul.f32 %v4389, %v4357
        %v4430 = vmul.f32 %v4389, %v4358
        %v4431 = vmul.f32 %v4393, %v4359
        %v4432 = vmul.f32 %v4393, %v4360
        %v4433 = vmul.f32 %v4397, %v4361
        %v4434 = vmul.f32 %v4397, %v4362
        %v4435 = vmul.f32 %v4401, %v4363
        %v4436 = vmul.f32 %v4401, %v4364
        %v4437 = vmul.f32 %v4405, %v4365
        %v4438 = vmul.f32 %v4405, %v4366
        %v4439 = vmul.f32 %v4409, %v4367
        %v4440 = vmul.f32 %v4409, %v4368
        %v4441 = vmul.f32 %v4413, %v4369
        %v4442 = vmul.f32 %v4413, %v4370
        %v4443 = vmul.f32 %v4417, %v4371
        %v4444 = vmul.f32 %v4417, %v4372
        %v4445 = vmul.f32 %v4421, %v4373
        %v4446 = vmul.f32 %v4421, %v4374
        %v4447 = vadd.f32 %v4255, %v4423
        %v4448 = vadd.f32 %v4256, %v4424
        %v4449 = vadd.f32 %v4257, %v4425
        %v4450 = vadd.f32 %v4258, %v4426
        %v4451 = vadd.f32 %v4259, %v4427
        %v4452 = vadd.f32 %v4260, %v4428
        %v4453 = vadd.f32 %v4261, %v4429
        %v4454 = vadd.f32 %v4262, %v4430
        %v4455 = vadd.f32 %v4263, %v4431
        %v4456 = vadd.f32 %v4264, %v4432
        %v4457 = vadd.f32 %v4265, %v4433
        %v4458 = vadd.f32 %v4266, %v4434
        %v4459 = vadd.f32 %v4267, %v4435
        %v4460 = vadd.f32 %v4268, %v4436
        %v4461 = vadd.f32 %v4269, %v4437
        %v4462 = vadd.f32 %v4270, %v4438
        %v4463 = vadd.f32 %v4271, %v4439
        %v4464 = vadd.f32 %v4272, %v4440
        %v4465 = vadd.f32 %v4273, %v4441
        %v4466 = vadd.f32 %v4274, %v4442
        %v4467 = vadd.f32 %v4275, %v4443
        %v4468 = vadd.f32 %v4276, %v4444
        %v4469 = vadd.f32 %v4277, %v4445
        %v4470 = vadd.f32 %v4278, %v4446
        %4471 = vrot.lane.b32.xlu0 %v2961, 111
        %v4472 = vpop.permute.xlu0 %4471
        %4473 = vrot.lane.b32.xlu0 %v2967, 111
        %v4474 = vpop.permute.xlu0 %4473
        %4475 = vrot.lane.b32.xlu0 %v2973, 111
        %v4476 = vpop.permute.xlu0 %4475
        %4477 = vrot.lane.b32.xlu0 %v2979, 111
        %v4478 = vpop.permute.xlu0 %4477
        %4479 = vrot.lane.b32.xlu0 %v2985, 111
        %v4480 = vpop.permute.xlu0 %4479
        %4481 = vrot.lane.b32.xlu0 %v2991, 111
        %v4482 = vpop.permute.xlu0 %4481
        %4483 = vrot.lane.b32.xlu0 %v2997, 111
        %v4484 = vpop.permute.xlu0 %4483
        %4485 = vrot.lane.b32.xlu0 %v3003, 111
        %v4486 = vpop.permute.xlu0 %4485
        %4487 = vrot.lane.b32.xlu0 %v3009, 111
        %v4488 = vpop.permute.xlu0 %4487
        %4489 = vrot.lane.b32.xlu0 %v3015, 111
        %v4490 = vpop.permute.xlu0 %4489
        %4491 = vrot.lane.b32.xlu0 %v3021, 111
        %v4492 = vpop.permute.xlu0 %4491
        %4493 = vrot.lane.b32.xlu0 %v3027, 111
        %v4494 = vpop.permute.xlu0 %4493
        %4495 = vrot.lane.b32.xlu0 %v2963, 111
        %v4496 = vpop.permute.xlu0 %4495
        %4497 = vrot.lane.b32.xlu0 %v2969, 111
        %v4498 = vpop.permute.xlu0 %4497
        %4499 = vrot.lane.b32.xlu0 %v2975, 111
        %v4500 = vpop.permute.xlu0 %4499
        %4501 = vrot.lane.b32.xlu0 %v2981, 111
        %v4502 = vpop.permute.xlu0 %4501
        %4503 = vrot.lane.b32.xlu0 %v2987, 111
        %v4504 = vpop.permute.xlu0 %4503
        %4505 = vrot.lane.b32.xlu0 %v2993, 111
        %v4506 = vpop.permute.xlu0 %4505
        %4507 = vrot.lane.b32.xlu0 %v2999, 111
        %v4508 = vpop.permute.xlu0 %4507
        %4509 = vrot.lane.b32.xlu0 %v3005, 111
        %v4510 = vpop.permute.xlu0 %4509
        %4511 = vrot.lane.b32.xlu0 %v3011, 111
        %v4512 = vpop.permute.xlu0 %4511
        %4513 = vrot.lane.b32.xlu0 %v3017, 111
        %v4514 = vpop.permute.xlu0 %4513
        %4515 = vrot.lane.b32.xlu0 %v3023, 111
        %v4516 = vpop.permute.xlu0 %4515
        %4517 = vrot.lane.b32.xlu0 %v3029, 111
        %v4518 = vpop.permute.xlu0 %4517
        %v4519 = vsel %vm2209, %v4472, %v4496
        %v4520 = vsel %vm2209, %v4474, %v4498
        %v4521 = vsel %vm2209, %v4476, %v4500
        %v4522 = vsel %vm2209, %v4478, %v4502
        %v4523 = vsel %vm2209, %v4480, %v4504
        %v4524 = vsel %vm2209, %v4482, %v4506
        %v4525 = vsel %vm2209, %v4484, %v4508
        %v4526 = vsel %vm2209, %v4486, %v4510
        %v4527 = vsel %vm2209, %v4488, %v4512
        %v4528 = vsel %vm2209, %v4490, %v4514
        %v4529 = vsel %vm2209, %v4492, %v4516
        %v4530 = vsel %vm2209, %v4494, %v4518
        %v4531 = vsel %vm2209, %v4496, %v4472
        %v4532 = vsel %vm2209, %v4498, %v4474
        %v4533 = vsel %vm2209, %v4500, %v4476
        %v4534 = vsel %vm2209, %v4502, %v4478
        %v4535 = vsel %vm2209, %v4504, %v4480
        %v4536 = vsel %vm2209, %v4506, %v4482
        %v4537 = vsel %vm2209, %v4508, %v4484
        %v4538 = vsel %vm2209, %v4510, %v4486
        %v4539 = vsel %vm2209, %v4512, %v4488
        %v4540 = vsel %vm2209, %v4514, %v4490
        %v4541 = vsel %vm2209, %v4516, %v4492
        %v4542 = vsel %vm2209, %v4518, %v4494
        %v4543 = vmul.f32 %v2237, %v4519
        %v4544 = vmul.f32 %v2241, %v4531
        %v4545 = vmul.f32 %v2237, %v4520
        %v4546 = vmul.f32 %v2241, %v4532
        %v4547 = vmul.f32 %v2237, %v4521
        %v4548 = vmul.f32 %v2241, %v4533
        %v4549 = vmul.f32 %v2237, %v4522
        %v4550 = vmul.f32 %v2241, %v4534
        %v4551 = vmul.f32 %v2237, %v4523
        %v4552 = vmul.f32 %v2241, %v4535
        %v4553 = vmul.f32 %v2237, %v4524
        %v4554 = vmul.f32 %v2241, %v4536
        %v4555 = vmul.f32 %v2237, %v4525
        %v4556 = vmul.f32 %v2241, %v4537
        %v4557 = vmul.f32 %v2237, %v4526
        %v4558 = vmul.f32 %v2241, %v4538
        %v4559 = vmul.f32 %v2237, %v4527
        %v4560 = vmul.f32 %v2241, %v4539
        %v4561 = vmul.f32 %v2237, %v4528
        %v4562 = vmul.f32 %v2241, %v4540
        %v4563 = vmul.f32 %v2237, %v4529
        %v4564 = vmul.f32 %v2241, %v4541
        %v4565 = vmul.f32 %v2237, %v4530
        %v4566 = vmul.f32 %v2241, %v4542
        %4567 = vset.pattern.permute.xlu0 8
        %4568 = vperm.xlu0 %4567, %v3031
        %v4569 = vpop.permute.xlu0 %4568
        %4571 = vset.pattern.permute.xlu0 8
        %4572 = vperm.xlu0 %4571, %v3032
        %v4573 = vpop.permute.xlu0 %4572
        %4575 = vset.pattern.permute.xlu0 8
        %4576 = vperm.xlu0 %4575, %v3033
        %v4577 = vpop.permute.xlu0 %4576
        %4579 = vset.pattern.permute.xlu0 8
        %4580 = vperm.xlu0 %4579, %v3034
        %v4581 = vpop.permute.xlu0 %4580
        %4583 = vset.pattern.permute.xlu0 8
        %4584 = vperm.xlu0 %4583, %v3035
        %v4585 = vpop.permute.xlu0 %4584
        %4587 = vset.pattern.permute.xlu0 8
        %4588 = vperm.xlu0 %4587, %v3036
        %v4589 = vpop.permute.xlu0 %4588
        %4591 = vset.pattern.permute.xlu0 8
        %4592 = vperm.xlu0 %4591, %v3037
        %v4593 = vpop.permute.xlu0 %4592
        %4595 = vset.pattern.permute.xlu0 8
        %4596 = vperm.xlu0 %4595, %v3038
        %v4597 = vpop.permute.xlu0 %4596
        %4599 = vset.pattern.permute.xlu0 8
        %4600 = vperm.xlu0 %4599, %v3039
        %v4601 = vpop.permute.xlu0 %4600
        %4603 = vset.pattern.permute.xlu0 8
        %4604 = vperm.xlu0 %4603, %v3040
        %v4605 = vpop.permute.xlu0 %4604
        %4607 = vset.pattern.permute.xlu0 8
        %4608 = vperm.xlu0 %4607, %v3041
        %v4609 = vpop.permute.xlu0 %4608
        %4611 = vset.pattern.permute.xlu0 8
        %4612 = vperm.xlu0 %4611, %v3042
        %v4613 = vpop.permute.xlu0 %4612
        %v4615 = vmul.f32 %v4569, %v4543
        %v4616 = vmul.f32 %v4569, %v4544
        %v4617 = vmul.f32 %v4573, %v4545
        %v4618 = vmul.f32 %v4573, %v4546
        %v4619 = vmul.f32 %v4577, %v4547
        %v4620 = vmul.f32 %v4577, %v4548
        %v4621 = vmul.f32 %v4581, %v4549
        %v4622 = vmul.f32 %v4581, %v4550
        %v4623 = vmul.f32 %v4585, %v4551
        %v4624 = vmul.f32 %v4585, %v4552
        %v4625 = vmul.f32 %v4589, %v4553
        %v4626 = vmul.f32 %v4589, %v4554
        %v4627 = vmul.f32 %v4593, %v4555
        %v4628 = vmul.f32 %v4593, %v4556
        %v4629 = vmul.f32 %v4597, %v4557
        %v4630 = vmul.f32 %v4597, %v4558
        %v4631 = vmul.f32 %v4601, %v4559
        %v4632 = vmul.f32 %v4601, %v4560
        %v4633 = vmul.f32 %v4605, %v4561
        %v4634 = vmul.f32 %v4605, %v4562
        %v4635 = vmul.f32 %v4609, %v4563
        %v4636 = vmul.f32 %v4609, %v4564
        %v4637 = vmul.f32 %v4613, %v4565
        %v4638 = vmul.f32 %v4613, %v4566
        %v4639 = vadd.f32 %v4447, %v4615
        %v4640 = vadd.f32 %v4448, %v4616
        %v4641 = vadd.f32 %v4449, %v4617
        %v4642 = vadd.f32 %v4450, %v4618
        %v4643 = vadd.f32 %v4451, %v4619
        %v4644 = vadd.f32 %v4452, %v4620
        %v4645 = vadd.f32 %v4453, %v4621
        %v4646 = vadd.f32 %v4454, %v4622
        %v4647 = vadd.f32 %v4455, %v4623
        %v4648 = vadd.f32 %v4456, %v4624
        %v4649 = vadd.f32 %v4457, %v4625
        %v4650 = vadd.f32 %v4458, %v4626
        %v4651 = vadd.f32 %v4459, %v4627
        %v4652 = vadd.f32 %v4460, %v4628
        %v4653 = vadd.f32 %v4461, %v4629
        %v4654 = vadd.f32 %v4462, %v4630
        %v4655 = vadd.f32 %v4463, %v4631
        %v4656 = vadd.f32 %v4464, %v4632
        %v4657 = vadd.f32 %v4465, %v4633
        %v4658 = vadd.f32 %v4466, %v4634
        %v4659 = vadd.f32 %v4467, %v4635
        %v4660 = vadd.f32 %v4468, %v4636
        %v4661 = vadd.f32 %v4469, %v4637
        %v4662 = vadd.f32 %v4470, %v4638
        %v4663 = vadd.f32 %v4639, 3.0
        %v4664 = vadd.f32 %v4640, 3.0
        %v4665 = vadd.f32 %v4641, 3.0
        %v4666 = vadd.f32 %v4642, 3.0
        %v4667 = vadd.f32 %v4643, 3.0
        %v4668 = vadd.f32 %v4644, 3.0
        %v4669 = vadd.f32 %v4645, 3.0
        %v4670 = vadd.f32 %v4646, 3.0
        %v4671 = vadd.f32 %v4647, 3.0
        %v4672 = vadd.f32 %v4648, 3.0
        %v4673 = vadd.f32 %v4649, 3.0
        %v4674 = vadd.f32 %v4650, 3.0
        %v4675 = vmax.f32 %v4663, 0.0
        %v4676 = vmax.f32 %v4664, 0.0
        %v4677 = vmax.f32 %v4665, 0.0
        %v4678 = vmax.f32 %v4666, 0.0
        %v4679 = vmax.f32 %v4667, 0.0
        %v4680 = vmax.f32 %v4668, 0.0
        %v4681 = vmax.f32 %v4669, 0.0
        %v4682 = vmax.f32 %v4670, 0.0
        %v4683 = vmax.f32 %v4671, 0.0
        %v4684 = vmax.f32 %v4672, 0.0
        %v4685 = vmax.f32 %v4673, 0.0
        %v4686 = vmax.f32 %v4674, 0.0
        %v4687 = vmin.f32 %v4675, 6.0
        %v4688 = vmin.f32 %v4676, 6.0
        %v4689 = vmin.f32 %v4677, 6.0
        %v4690 = vmin.f32 %v4678, 6.0
        %v4691 = vmin.f32 %v4679, 6.0
        %v4692 = vmin.f32 %v4680, 6.0
        %v4693 = vmin.f32 %v4681, 6.0
        %v4694 = vmin.f32 %v4682, 6.0
        %v4695 = vmin.f32 %v4683, 6.0
        %v4696 = vmin.f32 %v4684, 6.0
        %v4697 = vmin.f32 %v4685, 6.0
        %v4698 = vmin.f32 %v4686, 6.0
        %v4699 = vmul.f32 %v4639, %v4687
        %v4700 = vmul.f32 %v4640, %v4688
        %v4701 = vmul.f32 %v4641, %v4689
        %v4702 = vmul.f32 %v4642, %v4690
        %v4703 = vmul.f32 %v4643, %v4691
        %v4704 = vmul.f32 %v4644, %v4692
        %v4705 = vmul.f32 %v4645, %v4693
        %v4706 = vmul.f32 %v4646, %v4694
        %v4707 = vmul.f32 %v4647, %v4695
        %v4708 = vmul.f32 %v4648, %v4696
        %v4709 = vmul.f32 %v4649, %v4697
        %v4710 = vmul.f32 %v4650, %v4698
        %v4711 = vmul.f32 %v4699, 0.16666667
        %v4712 = vmul.f32 %v4700, 0.16666667
        %v4713 = vmul.f32 %v4701, 0.16666667
        %v4714 = vmul.f32 %v4702, 0.16666667
        %v4715 = vmul.f32 %v4703, 0.16666667
        %v4716 = vmul.f32 %v4704, 0.16666667
        %v4717 = vmul.f32 %v4705, 0.16666667
        %v4718 = vmul.f32 %v4706, 0.16666667
        %v4719 = vmul.f32 %v4707, 0.16666667
        %v4720 = vmul.f32 %v4708, 0.16666667
        %v4721 = vmul.f32 %v4709, 0.16666667
        %v4722 = vmul.f32 %v4710, 0.16666667
        %v4723 = vmul.f32 %v4711, %v4651
        %v4724 = vmul.f32 %v4712, %v4652
        %v4725 = vmul.f32 %v4713, %v4653
        %v4726 = vmul.f32 %v4714, %v4654
        %v4727 = vmul.f32 %v4715, %v4655
        %v4728 = vmul.f32 %v4716, %v4656
        %v4729 = vmul.f32 %v4717, %v4657
        %v4730 = vmul.f32 %v4718, %v4658
        %v4731 = vmul.f32 %v4719, %v4659
        %v4732 = vmul.f32 %v4720, %v4660
        %v4733 = vmul.f32 %v4721, %v4661
        %v4734 = vmul.f32 %v4722, %v4662
        %v4735 = vld [vmem:[%s10] sm:$0xff]
        %v4736 = vld [vmem:[%s10 + $0x8] sm:$0xff]
        %vm4737 = vcmask 392192
        %v4739 = vsel %vm4737, %v4735, 0
        %v4742 = vsel %vm4737, %v4736, 0
        %4744 = vmatprep.subr.mxu0 %v4724
        %4745 = vmatpush1.msra.mxu0 %v4723
        %4746 = vmatprep.subr.mxu0 %v4726
        %4747 = vmatpush1.msra.mxu0 %v4725
        %4748 = vmatprep.subr.mxu0 %v4728
        %4749 = vmatpush1.msra.mxu0 %v4727
        %4750 = vmatprep.subr.mxu0 %v4730
        %4751 = vmatpush1.msra.mxu0 %v4729
        %4752 = vmatprep.subr.mxu0 %v4732
        %4753 = vmatpush1.msra.mxu0 %v4731
        %4754 = vmatprep.subr.mxu0 %v4734
        %4755 = vmatpush1.msra.mxu0 %v4733
        %4756 = vmatprep.subr.mxu0 0.0
        %4757 = vmatpush1.msra.mxu0 0.0
        %4758 = vmatprep.subr.mxu0 0.0
        %4759 = vmatpush1.msra.mxu0 0.0
        %4760 = vmatprep.subr.mxu0 0.0
        %4761 = vmatpush1.msra.mxu0 0.0
        %4762 = vmatprep.subr.mxu0 0.0
        %4763 = vmatpush1.msra.mxu0 0.0
        %4764 = vmatprep.subr.mxu0 0.0
        %4765 = vmatpush1.msra.mxu0 0.0
        %4766 = vmatprep.subr.mxu0 0.0
        %4767 = vmatpush1.msra.mxu0 0.0
        %4768 = vmatprep.subr.mxu0 0.0
        %4769 = vmatpush1.msra.mxu0 0.0
        %4770 = vmatprep.subr.mxu0 0.0
        %4771 = vmatpush1.msra.mxu0 0.0
        %4772 = vmatprep.subr.mxu0 0.0
        %4773 = vmatpush1.msra.mxu0 0.0
        %4774 = vmatprep.subr.mxu0 0.0
        %4775 = vmatpush1.msra.mxu0 0.0
        %4776 = vmatprep.subr.mxu0 0.0
        %4777 = vmatpush1.msra.mxu0 0.0
        %4778 = vmatprep.subr.mxu0 0.0
        %4779 = vmatpush1.msra.mxu0 0.0
        %4780 = vmatprep.subr.mxu0 0.0
        %4781 = vmatpush1.msra.mxu0 0.0
        %4782 = vmatprep.subr.mxu0 0.0
        %4783 = vmatpush1.msra.mxu0 0.0
        %4784 = vmatprep.subr.mxu0 0.0
        %4785 = vmatpush1.msra.mxu0 0.0
        %4786 = vmatprep.subr.mxu0 0.0
        %4787 = vmatpush1.msra.mxu0 0.0
        %4788 = vmatprep.subr.mxu0 0.0
        %4789 = vmatpush1.msra.mxu0 0.0
        %4790 = vmatprep.subr.mxu0 0.0
        %4791 = vmatpush1.msra.mxu0 0.0
        %4792 = vmatprep.subr.mxu0 0.0
        %4793 = vmatpush1.msra.mxu0 0.0
        %4794 = vmatprep.subr.mxu0 0.0
        %4795 = vmatpush1.msra.mxu0 0.0
        %4796 = vmatprep.subr.mxu0 0.0
        %4797 = vmatpush1.msra.mxu0 0.0
        %4798 = vmatprep.subr.mxu0 0.0
        %4799 = vmatpush1.msra.mxu0 0.0
        %4800 = vmatprep.subr.mxu0 0.0
        %4801 = vmatpush1.msra.mxu0 0.0
        %4802 = vmatprep.subr.mxu0 0.0
        %4803 = vmatpush1.msra.mxu0 0.0
        %4804 = vmatprep.subr.mxu0 0.0
        %4805 = vmatpush1.msra.mxu0 0.0
        %4806 = vmatprep.subr.mxu0 0.0
        %4807 = vmatpush1.msra.mxu0 0.0
        %4808 = vmatprep.mubr.f32.mxu0 0.0
        %4809 = vmatmul.mubr.f32.gmra.mrb[0].mxu0 %v4739
        %v4810 = vpop.f32.mrb[0].mxu0
        %v4811 = vadd.f32 0.0, %v4810
        %v4812 = vpop.f32.mrb[0].mxu0
        %v4813 = vadd.f32 0.0, %v4812
        %4814 = vmatprep.mubr.f32.mxu0 0.0
        %4815 = vmatmul.mubr.f32.gmra.mrb[0].mxu0 %v4742
        %v4816 = vpop.f32.mrb[0].mxu0
        %v4817 = vadd.f32 0.0, %v4816
        %v4818 = vpop.f32.mrb[0].mxu0
        %v4819 = vadd.f32 0.0, %v4818
        %4820 = vdwg.mxu0
        %v4821 = vadd.f32 %v2770, %v4811
        %v4822 = vadd.f32 %v2771, %v4813
        %v4823 = vadd.f32 %v2772, %v4817
        %v4824 = vadd.f32 %v2773, %v4819
        %4825 = vst [vmem:[%s379] sm:$0xff] %v4821
        %4826 = vst [vmem:[%s379 + $0x8] sm:$0xff] %v4822
        %4827 = vst [vmem:[%s379 + $0x10] sm:$0xff] %v4823
        %4828 = vst [vmem:[%s379 + $0x18] sm:$0xff] %v4824
        %s4829 = sand.u32 %s269, 1
        %s4830 = scalar_lea.sflag [#allocation3], %s4829
        %s4831 = sand.u32 %s269, 1
        %s4832 = smul.addr %s4831, 32
        %s4833 = scalar_lea.vmem [#allocation2], %s4832
        // Predicated region
        $region65: #{tpu_custom_call.1} parent=63 // pred_check
          %p4834 = pneg %p279
        $region66: #{tpu_custom_call.1} parent=63 // pred_check_branch
          %4836 = sbr.rel (%p4834) target = $region68
        $region67: #{tpu_custom_call.1} parent=63 // pred_region
          %s4838 = ssub.s32 512, 512
          %4839 = vsyncadd %s4830, %s4838
          %s4840 = smul.addr %s25, 4
          %s4841 = smul.addr %s4840, 128
          %s4842 = scalar_lea.hbm %s11, %s4841
          %s4843 = sshll.u32 %s4833, 4
          %s4844 = int_to_ptr.vmem [resolvable:$true] %s4843
          %4849 = dma.vmem_to_hbm [thread:$0]  %s4844, 512, %s4842, %s4830, 256, 256, 16
        $region68: #{tpu_custom_call.1} parent=63 // pred_fallthru
          _
      $region64: #{tpu_custom_call.1} parent=5 // pred_fallthru
        _
      %p4850 = scmp.le.s32.totalorder 2, %s20
      // Predicated region
      $region69: #{tpu_custom_call.1} parent=5 // pred_check
        %p4851 = pneg %p4850
      $region70: #{tpu_custom_call.1} parent=5 // pred_check_branch
        %4853 = sbr.rel (%p4851) target = $region72
      $region71: #{tpu_custom_call.1} parent=5 // pred_region
        %s4854 = ssub.s32 %s20, 2
        // Predicated region
        $region73: #{tpu_custom_call.1} parent=71 // pred_check
          %p4855 = pneg %p285
        $region74: #{tpu_custom_call.1} parent=71 // pred_check_branch
          %4857 = sbr.rel (%p4855) target = $region76
        $region75: #{tpu_custom_call.1} parent=71 // pred_region
          %s4858 = sand.u32 %s270, 1
          %s4859 = scalar_lea.sflag [#allocation3], %s4858
          %s4860 = sand.u32 %s270, 1
          %s4861 = smul.addr %s4860, 32
          %s4862 = scalar_lea.vmem [#allocation2], %s4861
          %4863 = dma.done %s4859, 512
        $region76: #{tpu_custom_call.1} parent=71 // pred_fallthru
          _
      $region72: #{tpu_custom_call.1} parent=5 // pred_fallthru
        _
    $region6: #{tpu_custom_call.1} parent=1 // loop_footer
      %s24 = sadd.s32 1, %s20
    $region7: #{tpu_custom_call.1} parent=1 // loop_footer_branch
      %19 = sbr.rel target = $region3
    $region8: #{tpu_custom_call.1} parent=1 // loop_exit
      _
    %4864 = vsyncpa [#allocation3], 1
    %s4865 = scalar_lea.sflag [#allocation3], 1
    %4866 = vsyncpa %s4865, 1

</llo_original>
